<compile_context>
chip_gen: v5e
topology: v5e:2x2
jax: 0.10.0
libtpu: 0.0.40
codegen_flags: <defaults>
</compile_context>

<pallas_src>
import math
import functools

import jax
import jax.numpy as jnp
from jax import lax
from jax.experimental import pallas as pl
from jax.experimental.pallas import tpu as pltpu

# ----------------------------- config ---------------------------------------
NUM_LAYERS = 2
D_MODEL = 32
NUM_HEADS = 4
D_HEAD = D_MODEL // NUM_HEADS
DFF = 64
INPUT_VOCAB = 40
TARGET_VOCAB = 48
MAX_POS = 64
LN_EPS = 1e-6
NEG_INF = -1e9


# ------------------------ in-kernel helper math ------------------------------

def _mm(a, b):
    """MXU matmul: bf16 operands, f32 accumulation."""
    return jnp.dot(a.astype(jnp.bfloat16), b.astype(jnp.bfloat16),
                   preferred_element_type=jnp.float32)


def _mm_nt(a, b):
    """a @ b.T (bf16 operands, f32 accumulation) without explicit transpose."""
    return lax.dot_general(a.astype(jnp.bfloat16), b.astype(jnp.bfloat16),
                           (((1,), (1,)), ((), ())),
                           preferred_element_type=jnp.float32)


def _layer_norm(x, g, b):
    mu = jnp.mean(x, axis=-1, keepdims=True)
    var = jnp.mean(jnp.square(x - mu), axis=-1, keepdims=True)
    return (x - mu) * lax.rsqrt(var + LN_EPS) * g + b


def _attention(q, k, v, mask, w_ref=None):
    """q: (Lq, D), k/v: (Lk, D), mask: (Lq, Lk) (1.0 == masked, TF convention).

    Heads are static lane slices of width D_HEAD handled inside the kernel; the
    per-head softmax weights are optionally written to w_ref[0, h].
    Returns the concatenated head outputs (Lq, D)."""
    scale = 1.0 / math.sqrt(D_HEAD)
    neg = mask * NEG_INF
    outs = []
    for h in range(NUM_HEADS):
        sl = slice(h * D_HEAD, (h + 1) * D_HEAD)
        qh, kh, vh = q[:, sl], k[:, sl], v[:, sl]
        s = _mm_nt(qh, kh) * scale + neg
        s = s - jnp.max(s, axis=-1, keepdims=True)
        e = jnp.exp(s)
        p = e * pl.reciprocal(jnp.sum(e, axis=-1, keepdims=True), approx=True)
        if w_ref is not None:
            w_ref[0, h] = p
        outs.append(_mm(p, vh))
    return jnp.concatenate(outs, axis=-1)


# --------------------------- encoder kernel ----------------------------------

def _encoder_kernel(x_ref, mask_ref,
                    wqkv_ref, bqkv_ref, wo_ref, bo_ref,
                    w1_ref, b1_ref, w2_ref, b2_ref,
                    ln1g_ref, ln1b_ref, ln2g_ref, ln2b_ref,
                    o_ref, xs_ref):
    l = pl.program_id(1)

    @pl.when(l == 0)
    def _():
        xs_ref[...] = x_ref[0]

    x = xs_ref[...]          # (L, D)  VMEM-resident across layers
    mask = mask_ref[0]       # (L, L)

    # fused QKV projection (lane-dense (D, 3D) matmul)
    qkv = _mm(x, wqkv_ref[0]) + bqkv_ref[0]
    q = qkv[:, :D_MODEL]
    k = qkv[:, D_MODEL:2 * D_MODEL]
    v = qkv[:, 2 * D_MODEL:]

    attn = _mm(_attention(q, k, v, mask), wo_ref[0]) + bo_ref[0]
    out1 = _layer_norm(x + attn, ln1g_ref[0], ln1b_ref[0])

    h = jnp.maximum(_mm(out1, w1_ref[0]) + b1_ref[0], 0.0)
    f = _mm(h, w2_ref[0]) + b2_ref[0]
    out2 = _layer_norm(out1 + f, ln2g_ref[0], ln2b_ref[0])

    xs_ref[...] = out2
    o_ref[0] = out2


def encoder_forward(p, x_emb, mask):
    """x_emb: (B, L, D) embedded+pos-encoded input, mask: (B, L, L)."""
    B, L, D = x_emb.shape
    lw = lambda b, l: (l, 0, 0)   # per-layer weight slice
    bx = lambda b, l: (b, 0, 0)   # per-batch activation slice

    return pl.pallas_call(
        _encoder_kernel,
        out_shape=jax.ShapeDtypeStruct((B, L, D), jnp.float32),
        grid_spec=pltpu.PrefetchScalarGridSpec(
            num_scalar_prefetch=0,
            grid=(B, NUM_LAYERS),
            in_specs=[
                pl.BlockSpec((1, L, D), bx),          # x (read at l == 0)
                pl.BlockSpec((1, L, L), bx),          # mask
                pl.BlockSpec((1, D, 3 * D), lw),      # wqkv
                pl.BlockSpec((1, 1, 3 * D), lw),      # bqkv
                pl.BlockSpec((1, D, D), lw),          # wo
                pl.BlockSpec((1, 1, D), lw),          # bo
                pl.BlockSpec((1, D, DFF), lw),        # ffn w1
                pl.BlockSpec((1, 1, DFF), lw),        # ffn b1
                pl.BlockSpec((1, DFF, D), lw),        # ffn w2
                pl.BlockSpec((1, 1, D), lw),          # ffn b2
                pl.BlockSpec((1, 1, D), lw),          # ln1 gamma
                pl.BlockSpec((1, 1, D), lw),          # ln1 beta
                pl.BlockSpec((1, 1, D), lw),          # ln2 gamma
                pl.BlockSpec((1, 1, D), lw),          # ln2 beta
            ],
            out_specs=pl.BlockSpec((1, L, D), bx),
            scratch_shapes=[pltpu.VMEM((L, D), jnp.float32)],
        ),
        compiler_params=pltpu.CompilerParams(
            dimension_semantics=("parallel", "arbitrary")),
    )(x_emb, mask,
      p["wqkv"], p["bqkv"], p["wo"], p["bo"],
      p["ffn_w1"], p["ffn_b1"], p["ffn_w2"], p["ffn_b2"],
      p["ln1_g"], p["ln1_b"], p["ln2_g"], p["ln2_b"])


# --------------------------- decoder kernel ----------------------------------

def _decoder_kernel(x_ref, enc_ref, lam_ref, pad_ref,
                    wqkv1_ref, bqkv1_ref, wo1_ref, bo1_ref,
                    wq2_ref, bq2_ref, wkv2_ref, bkv2_ref, wo2_ref, bo2_ref,
                    w1_ref, b1_ref, w2_ref, b2_ref,
                    ln1g_ref, ln1b_ref, ln2g_ref, ln2b_ref, ln3g_ref, ln3b_ref,
                    fw_ref, fb_ref,
                    logits_ref, aw1_ref, aw2_ref, xs_ref):
    l = pl.program_id(1)

    @pl.when(l == 0)
    def _():
        xs_ref[...] = x_ref[0]

    x = xs_ref[...]            # (Lt, D) VMEM-resident across layers
    enc = enc_ref[0]           # (Lin, D)
    la_mask = lam_ref[0]       # (Lt, Lt)
    pad_mask = pad_ref[0]      # (Lt, Lin)

    # block 1: (masked) self-attention, fused QKV
    qkv = _mm(x, wqkv1_ref[0]) + bqkv1_ref[0]
    q1 = qkv[:, :D_MODEL]
    k1 = qkv[:, D_MODEL:2 * D_MODEL]
    v1 = qkv[:, 2 * D_MODEL:]
    attn1 = _mm(_attention(q1, k1, v1, la_mask, aw1_ref), wo1_ref[0]) + bo1_ref[0]
    out1 = _layer_norm(x + attn1, ln1g_ref[0], ln1b_ref[0])

    # block 2: cross-attention against encoder output, fused KV
    q2 = _mm(out1, wq2_ref[0]) + bq2_ref[0]
    kv = _mm(enc, wkv2_ref[0]) + bkv2_ref[0]
    k2 = kv[:, :D_MODEL]
    v2 = kv[:, D_MODEL:]
    attn2 = _mm(_attention(q2, k2, v2, pad_mask, aw2_ref), wo2_ref[0]) + bo2_ref[0]
    out2 = _layer_norm(out1 + attn2, ln2g_ref[0], ln2b_ref[0])

    # FFN
    h = jnp.maximum(_mm(out2, w1_ref[0]) + b1_ref[0], 0.0)
    f = _mm(h, w2_ref[0]) + b2_ref[0]
    out3 = _layer_norm(out2 + f, ln3g_ref[0], ln3b_ref[0])

    xs_ref[...] = out3

    # final vocab projection fused into the last layer step
    @pl.when(l == NUM_LAYERS - 1)
    def _():
        logits_ref[0] = _mm(out3, fw_ref[...]) + fb_ref[...]


def decoder_forward(p, x_emb, enc_out, la_mask, pad_mask, final_w, final_b):
    """x_emb: (B, Lt, D), enc_out: (B, Lin, D), masks: (B, Lt, Lt)/(B, Lt, Lin)."""
    B, Lt, D = x_emb.shape
    Lin = enc_out.shape[1]
    lw = lambda b, l: (l, 0, 0)
    bx = lambda b, l: (b, 0, 0)
    aw = lambda b, l: (l, b, 0, 0)
    full2 = lambda b, l: (0, 0)

    out_shape = (
        jax.ShapeDtypeStruct((B, Lt, TARGET_VOCAB), jnp.float32),
        jax.ShapeDtypeStruct((NUM_LAYERS, B * NUM_HEADS, Lt, Lt), jnp.float32),
        jax.ShapeDtypeStruct((NUM_LAYERS, B * NUM_HEADS, Lt, Lin), jnp.float32),
    )

    return pl.pallas_call(
        _decoder_kernel,
        out_shape=out_shape,
        grid_spec=pltpu.PrefetchScalarGridSpec(
            num_scalar_prefetch=0,
            grid=(B, NUM_LAYERS),
            in_specs=[
                pl.BlockSpec((1, Lt, D), bx),             # x (read at l == 0)
                pl.BlockSpec((1, Lin, D), bx),            # enc_out
                pl.BlockSpec((1, Lt, Lt), bx),            # look-ahead mask
                pl.BlockSpec((1, Lt, Lin), bx),           # padding mask
                pl.BlockSpec((1, D, 3 * D), lw),          # mha1 wqkv
                pl.BlockSpec((1, 1, 3 * D), lw),          # mha1 bqkv
                pl.BlockSpec((1, D, D), lw),              # mha1 wo
                pl.BlockSpec((1, 1, D), lw),              # mha1 bo
                pl.BlockSpec((1, D, D), lw),              # mha2 wq
                pl.BlockSpec((1, 1, D), lw),              # mha2 bq
                pl.BlockSpec((1, D, 2 * D), lw),          # mha2 wkv
                pl.BlockSpec((1, 1, 2 * D), lw),          # mha2 bkv
                pl.BlockSpec((1, D, D), lw),              # mha2 wo
                pl.BlockSpec((1, 1, D), lw),              # mha2 bo
                pl.BlockSpec((1, D, DFF), lw),            # ffn w1
                pl.BlockSpec((1, 1, DFF), lw),            # ffn b1
                pl.BlockSpec((1, DFF, D), lw),            # ffn w2
                pl.BlockSpec((1, 1, D), lw),              # ffn b2
                pl.BlockSpec((1, 1, D), lw),              # ln1 gamma
                pl.BlockSpec((1, 1, D), lw),              # ln1 beta
                pl.BlockSpec((1, 1, D), lw),              # ln2 gamma
                pl.BlockSpec((1, 1, D), lw),              # ln2 beta
                pl.BlockSpec((1, 1, D), lw),              # ln3 gamma
                pl.BlockSpec((1, 1, D), lw),              # ln3 beta
                pl.BlockSpec((D, TARGET_VOCAB), full2),   # final w
                pl.BlockSpec((1, TARGET_VOCAB), full2),   # final b
            ],
            out_specs=(
                pl.BlockSpec((1, Lt, TARGET_VOCAB), bx),
                pl.BlockSpec((1, NUM_HEADS, Lt, Lt), aw),
                pl.BlockSpec((1, NUM_HEADS, Lt, Lin), aw),
            ),
            scratch_shapes=[pltpu.VMEM((Lt, D), jnp.float32)],
        ),
        compiler_params=pltpu.CompilerParams(
            dimension_semantics=("parallel", "arbitrary")),
    )(x_emb, enc_out, la_mask, pad_mask,
      p["wqkv1"], p["bqkv1"], p["wo1"], p["bo1"],
      p["wq2"], p["bq2"], p["wkv2"], p["bkv2"], p["wo2"], p["bo2"],
      p["ffn_w1"], p["ffn_b1"], p["ffn_w2"], p["ffn_b2"],
      p["ln1_g"], p["ln1_b"], p["ln2_g"], p["ln2_b"], p["ln3_g"], p["ln3_b"],
      final_w, final_b)


# ----------------------------- model glue ------------------------------------

def positional_encoding(max_pos, d_model):
    pos = jnp.arange(max_pos, dtype=jnp.float32)[:, None]
    i = jnp.arange(d_model, dtype=jnp.float32)[None, :]
    angle_rates = 1.0 / jnp.power(10000.0, (2.0 * jnp.floor(i / 2.0)) / d_model)
    angles = pos * angle_rates
    even = (jnp.arange(d_model)[None, :] % 2) == 0
    return jnp.where(even, jnp.sin(angles), jnp.cos(angles))  # (max_pos, d_model)


def _embed(emb_table, tokens, pe):
    # TODO(synk): embedding gather + positional encoding stay in plain JAX
    # (a dedicated DMA-gather kernel is not worth it at these sizes).
    x = jnp.take(emb_table, tokens, axis=0) * math.sqrt(D_MODEL)
    return x + pe[None, :tokens.shape[1], :]


def _prep_mask(mask, B, Lq, Lk):
    """Produce a (B, Lq, Lk) float mask (1.0 == masked).  No per-head broadcast
    is ever materialized in HBM; the None case is a tiny zeros block."""
    if mask is None:
        return jnp.zeros((B, Lq, Lk), jnp.float32)
    m = jnp.asarray(mask, jnp.float32)
    if m.ndim == 4:
        m = jnp.broadcast_to(m, (B, 1, Lq, Lk))[:, 0]
    else:
        m = jnp.broadcast_to(m, (B, Lq, Lk))
    return m


def transformer_forward(params, inp, tar, enc_padding_mask=None,
                        look_ahead_mask=None, dec_padding_mask=None):
    pe = params["pos_encoding"]
    B, L_in = inp.shape
    L_tar = tar.shape[1]

    # ---------------- encoder (1 fused pallas_call) ----------------
    x_enc = _embed(params["encoder"]["embedding"], inp, pe)          # dropout: identity (eval)
    enc_mask = _prep_mask(enc_padding_mask, B, L_in, L_in)
    enc_output = encoder_forward(params["encoder"]["layers"], x_enc, enc_mask)

    # ------------- decoder + final proj (1 fused pallas_call) -------------
    x_dec = _embed(params["decoder"]["embedding"], tar, pe)          # dropout: identity (eval)
    la_mask = _prep_mask(look_ahead_mask, B, L_tar, L_tar)
    pad_mask = _prep_mask(dec_padding_mask, B, L_tar, L_in)
    logits, aw1, aw2 = decoder_forward(
        params["decoder"]["layers"], x_dec, enc_output, la_mask, pad_mask,
        params["final_w"], params["final_b"])

    aw1 = aw1.reshape(NUM_LAYERS, B, NUM_HEADS, L_tar, L_tar)
    aw2 = aw2.reshape(NUM_LAYERS, B, NUM_HEADS, L_tar, L_in)
    attention_weights = {}
    for i in range(NUM_LAYERS):
        attention_weights[f"decoder_layer{i + 1}_block1"] = aw1[i]
        attention_weights[f"decoder_layer{i + 1}_block2"] = aw2[i]
    return logits, attention_weights


# ----------------------------- param init ------------------------------------

def _init_params(key):
    ks = iter(jax.random.split(key, 256))

    def w(shape, scale=0.02):
        return (scale * jax.random.normal(next(ks), shape)).astype(jnp.float32)

    def zeros(shape):
        return jnp.zeros(shape, jnp.float32)

    def ones(shape):
        return jnp.ones(shape, jnp.float32)

    NL, D = NUM_LAYERS, D_MODEL

    # per-layer weights are stored stacked (NUM_LAYERS, ...) so one kernel can
    # loop over layers via the grid; QKV (and cross-attn KV) are pre-merged.
    enc_layers = {
        "wqkv": w((NL, D, 3 * D)), "bqkv": zeros((NL, 1, 3 * D)),
        "wo": w((NL, D, D)), "bo": zeros((NL, 1, D)),
        "ffn_w1": w((NL, D, DFF)), "ffn_b1": zeros((NL, 1, DFF)),
        "ffn_w2": w((NL, DFF, D)), "ffn_b2": zeros((NL, 1, D)),
        "ln1_g": ones((NL, 1, D)), "ln1_b": zeros((NL, 1, D)),
        "ln2_g": ones((NL, 1, D)), "ln2_b": zeros((NL, 1, D)),
    }
    dec_layers = {
        "wqkv1": w((NL, D, 3 * D)), "bqkv1": zeros((NL, 1, 3 * D)),
        "wo1": w((NL, D, D)), "bo1": zeros((NL, 1, D)),
        "wq2": w((NL, D, D)), "bq2": zeros((NL, 1, D)),
        "wkv2": w((NL, D, 2 * D)), "bkv2": zeros((NL, 1, 2 * D)),
        "wo2": w((NL, D, D)), "bo2": zeros((NL, 1, D)),
        "ffn_w1": w((NL, D, DFF)), "ffn_b1": zeros((NL, 1, DFF)),
        "ffn_w2": w((NL, DFF, D)), "ffn_b2": zeros((NL, 1, D)),
        "ln1_g": ones((NL, 1, D)), "ln1_b": zeros((NL, 1, D)),
        "ln2_g": ones((NL, 1, D)), "ln2_b": zeros((NL, 1, D)),
        "ln3_g": ones((NL, 1, D)), "ln3_b": zeros((NL, 1, D)),
    }
    return {
        "encoder": {"embedding": w((INPUT_VOCAB, D), scale=1.0), "layers": enc_layers},
        "decoder": {"embedding": w((TARGET_VOCAB, D), scale=1.0), "layers": dec_layers},
        "final_w": w((D, TARGET_VOCAB)),
        "final_b": zeros((1, TARGET_VOCAB)),
        "pos_encoding": positional_encoding(MAX_POS, D),
    }


# -------------------------------- main ---------------------------------------

if __name__ == "__main__":
    key = jax.random.PRNGKey(0)
    kp, ki, kt = jax.random.split(key, 3)

    params = _init_params(kp)

    B, L_IN, L_TAR = 2, 8, 8
    inp = jax.random.randint(ki, (B, L_IN), 0, INPUT_VOCAB, dtype=jnp.int32)
    tar = jax.random.randint(kt, (B, L_TAR), 0, TARGET_VOCAB, dtype=jnp.int32)

    fwd = jax.jit(transformer_forward)
    final_output, attention_weights = fwd(params, inp, tar)

    final_output = jax.block_until_ready(final_output)
    for v in attention_weights.values():
        jax.block_until_ready(v)

    assert final_output.shape == (B, L_TAR, TARGET_VOCAB)
    assert bool(jnp.all(jnp.isfinite(final_output)))
    for i in range(NUM_LAYERS):
        assert attention_weights[f"decoder_layer{i + 1}_block1"].shape == (B, NUM_HEADS, L_TAR, L_TAR)
        assert attention_weights[f"decoder_layer{i + 1}_block2"].shape == (B, NUM_HEADS, L_TAR, L_IN)
        assert bool(jnp.all(jnp.isfinite(attention_weights[f"decoder_layer{i + 1}_block1"])))
        assert bool(jnp.all(jnp.isfinite(attention_weights[f"decoder_layer{i + 1}_block2"])))
    print("KERNEL_OK")
</pallas_src>

<mosaic_0001>
module attributes {stable_mosaic.version = 11 : i64} {
  func.func @_decoder_kernel(%arg0: i32, %arg1: i32, %arg2: memref<1x8x32xf32, #tpu.memory_space<vmem>>, %arg3: memref<1x8x32xf32, #tpu.memory_space<vmem>>, %arg4: memref<1x8x8xf32, #tpu.memory_space<vmem>>, %arg5: memref<1x8x8xf32, #tpu.memory_space<vmem>>, %arg6: memref<1x32x96xf32, #tpu.memory_space<vmem>>, %arg7: memref<1x1x96xf32, #tpu.memory_space<vmem>>, %arg8: memref<1x32x32xf32, #tpu.memory_space<vmem>>, %arg9: memref<1x1x32xf32, #tpu.memory_space<vmem>>, %arg10: memref<1x32x32xf32, #tpu.memory_space<vmem>>, %arg11: memref<1x1x32xf32, #tpu.memory_space<vmem>>, %arg12: memref<1x32x64xf32, #tpu.memory_space<vmem>>, %arg13: memref<1x1x64xf32, #tpu.memory_space<vmem>>, %arg14: memref<1x32x32xf32, #tpu.memory_space<vmem>>, %arg15: memref<1x1x32xf32, #tpu.memory_space<vmem>>, %arg16: memref<1x32x64xf32, #tpu.memory_space<vmem>>, %arg17: memref<1x1x64xf32, #tpu.memory_space<vmem>>, %arg18: memref<1x64x32xf32, #tpu.memory_space<vmem>>, %arg19: memref<1x1x32xf32, #tpu.memory_space<vmem>>, %arg20: memref<1x1x32xf32, #tpu.memory_space<vmem>>, %arg21: memref<1x1x32xf32, #tpu.memory_space<vmem>>, %arg22: memref<1x1x32xf32, #tpu.memory_space<vmem>>, %arg23: memref<1x1x32xf32, #tpu.memory_space<vmem>>, %arg24: memref<1x1x32xf32, #tpu.memory_space<vmem>>, %arg25: memref<1x1x32xf32, #tpu.memory_space<vmem>>, %arg26: memref<32x48xf32, #tpu.memory_space<vmem>>, %arg27: memref<1x48xf32, #tpu.memory_space<vmem>>, %arg28: memref<1x8x48xf32, #tpu.memory_space<vmem>>, %arg29: memref<1x4x8x8xf32, #tpu.memory_space<vmem>>, %arg30: memref<1x4x8x8xf32, #tpu.memory_space<vmem>>, %arg31: memref<8x32xf32, #tpu.memory_space<vmem>>) attributes {dimension_semantics = [#tpu.dimension_semantics<parallel>, #tpu.dimension_semantics<arbitrary>], iteration_bounds = array<i64: 2, 2>, scalar_prefetch = 0 : i64, scratch_operands = 1 : i64, tpu.core_type = #tpu.core_type<tc>, window_params = [{transform_indices = @transform_0, window_bounds = array<i64: 1, 8, 32>}, {transform_indices = @transform_1, window_bounds = array<i64: 1, 8, 32>}, {transform_indices = @transform_2, window_bounds = array<i64: 1, 8, 8>}, {transform_indices = @transform_3, window_bounds = array<i64: 1, 8, 8>}, {transform_indices = @transform_4, window_bounds = array<i64: 1, 32, 96>}, {transform_indices = @transform_5, window_bounds = array<i64: 1, 1, 96>}, {transform_indices = @transform_6, window_bounds = array<i64: 1, 32, 32>}, {transform_indices = @transform_7, window_bounds = array<i64: 1, 1, 32>}, {transform_indices = @transform_8, window_bounds = array<i64: 1, 32, 32>}, {transform_indices = @transform_9, window_bounds = array<i64: 1, 1, 32>}, {transform_indices = @transform_10, window_bounds = array<i64: 1, 32, 64>}, {transform_indices = @transform_11, window_bounds = array<i64: 1, 1, 64>}, {transform_indices = @transform_12, window_bounds = array<i64: 1, 32, 32>}, {transform_indices = @transform_13, window_bounds = array<i64: 1, 1, 32>}, {transform_indices = @transform_14, window_bounds = array<i64: 1, 32, 64>}, {transform_indices = @transform_15, window_bounds = array<i64: 1, 1, 64>}, {transform_indices = @transform_16, window_bounds = array<i64: 1, 64, 32>}, {transform_indices = @transform_17, window_bounds = array<i64: 1, 1, 32>}, {transform_indices = @transform_18, window_bounds = array<i64: 1, 1, 32>}, {transform_indices = @transform_19, window_bounds = array<i64: 1, 1, 32>}, {transform_indices = @transform_20, window_bounds = array<i64: 1, 1, 32>}, {transform_indices = @transform_21, window_bounds = array<i64: 1, 1, 32>}, {transform_indices = @transform_22, window_bounds = array<i64: 1, 1, 32>}, {transform_indices = @transform_23, window_bounds = array<i64: 1, 1, 32>}, {pipeline_mode = #tpu.pipeline_mode<synchronous>, transform_indices = @transform_24, window_bounds = array<i64: 32, 48>}, {pipeline_mode = #tpu.pipeline_mode<synchronous>, transform_indices = @transform_25, window_bounds = array<i64: 1, 48>}, {transform_indices = @transform_26, window_bounds = array<i64: 1, 8, 48>}, {transform_indices = @transform_27, window_bounds = array<i64: 1, 4, 8, 8>}, {transform_indices = @transform_28, window_bounds = array<i64: 1, 4, 8, 8>}]} {
    %c0_i32 = arith.constant 0 : i32
    %0 = arith.cmpi eq, %arg1, %c0_i32 : i32
    %1 = arith.extui %0 : i1 to i32
    %c0_i32_0 = arith.constant 0 : i32
    %2 = arith.cmpi ne, %1, %c0_i32_0 : i32
    scf.if %2 {
      %c0_167 = arith.constant 0 : index
      %c0_168 = arith.constant 0 : index
      %c0_169 = arith.constant 0 : index
      %371 = vector.load %arg2[%c0_167, %c0_168, %c0_169] : memref<1x8x32xf32, #tpu.memory_space<vmem>>, vector<1x8x32xf32>
      %372 = vector.shape_cast %371 : vector<1x8x32xf32> to vector<8x32xf32>
      %c0_170 = arith.constant 0 : index
      %c0_171 = arith.constant 0 : index
      %373 = vector.load %arg31[%c0_170, %c0_171] : memref<8x32xf32, #tpu.memory_space<vmem>>, vector<8x32xf32>
      tpu.vector_store %arg31[%c0_170, %c0_171], %372 {strides = array<i32>} : memref<8x32xf32, #tpu.memory_space<vmem>>, vector<8x32xf32>,
    } else {
    }
    %c0 = arith.constant 0 : index
    %c0_1 = arith.constant 0 : index
    %3 = vector.load %arg31[%c0, %c0_1] : memref<8x32xf32, #tpu.memory_space<vmem>>, vector<8x32xf32>
    %c0_2 = arith.constant 0 : index
    %c0_3 = arith.constant 0 : index
    %c0_4 = arith.constant 0 : index
    %4 = vector.load %arg3[%c0_2, %c0_3, %c0_4] : memref<1x8x32xf32, #tpu.memory_space<vmem>>, vector<1x8x32xf32>
    %5 = vector.shape_cast %4 : vector<1x8x32xf32> to vector<8x32xf32>
    %c0_5 = arith.constant 0 : index
    %c0_6 = arith.constant 0 : index
    %c0_7 = arith.constant 0 : index
    %6 = vector.load %arg4[%c0_5, %c0_6, %c0_7] : memref<1x8x8xf32, #tpu.memory_space<vmem>>, vector<1x8x8xf32>
    %7 = vector.shape_cast %6 : vector<1x8x8xf32> to vector<8x8xf32>
    %c0_8 = arith.constant 0 : index
    %c0_9 = arith.constant 0 : index
    %c0_10 = arith.constant 0 : index
    %8 = vector.load %arg5[%c0_8, %c0_9, %c0_10] : memref<1x8x8xf32, #tpu.memory_space<vmem>>, vector<1x8x8xf32>
    %9 = vector.shape_cast %8 : vector<1x8x8xf32> to vector<8x8xf32>
    %c0_11 = arith.constant 0 : index
    %c0_12 = arith.constant 0 : index
    %c0_13 = arith.constant 0 : index
    %10 = vector.load %arg6[%c0_11, %c0_12, %c0_13] : memref<1x32x96xf32, #tpu.memory_space<vmem>>, vector<1x32x96xf32>
    %11 = vector.shape_cast %10 : vector<1x32x96xf32> to vector<32x96xf32>
    %12 = arith.truncf %3 : vector<8x32xf32> to vector<8x32xbf16>
    %13 = arith.truncf %11 : vector<32x96xf32> to vector<32x96xbf16>
    %cst = arith.constant dense<0.000000e+00> : vector<8x96xf32>
    %14 = tpu.matmul %12, %13, %cst {dimension_numbers = #tpu.dot_dimension_numbers<[1], [0], [0], [1], [0, 0, 1, 1], [], []>} : vector<8x32xbf16>, vector<32x96xbf16>, vector<8x96xf32> -> vector<8x96xf32>
    %c0_14 = arith.constant 0 : index
    %c0_15 = arith.constant 0 : index
    %c0_16 = arith.constant 0 : index
    %15 = vector.load %arg7[%c0_14, %c0_15, %c0_16] : memref<1x1x96xf32, #tpu.memory_space<vmem>>, vector<1x1x96xf32>
    %16 = vector.shape_cast %15 : vector<1x1x96xf32> to vector<1x96xf32>
    %17 = vector.broadcast %16 : vector<1x96xf32> to vector<8x96xf32>
    %18 = arith.addf %14, %17 : vector<8x96xf32>
    %19 = vector.extract_strided_slice %18 {offsets = [0, 0], sizes = [8, 32], strides = [1, 1]} : vector<8x96xf32> to vector<8x32xf32>
    %20 = vector.extract_strided_slice %18 {offsets = [0, 32], sizes = [8, 32], strides = [1, 1]} : vector<8x96xf32> to vector<8x32xf32>
    %21 = vector.extract_strided_slice %18 {offsets = [0, 64], sizes = [8, 32], strides = [1, 1]} : vector<8x96xf32> to vector<8x32xf32>
    %cst_17 = arith.constant -1.000000e+09 : f32
    %22 = vector.broadcast %cst_17 : f32 to vector<8x8xf32>
    %23 = arith.mulf %7, %22 : vector<8x8xf32>
    %24 = vector.extract_strided_slice %19 {offsets = [0, 0], sizes = [8, 8], strides = [1, 1]} : vector<8x32xf32> to vector<8x8xf32>
    %25 = vector.extract_strided_slice %20 {offsets = [0, 0], sizes = [8, 8], strides = [1, 1]} : vector<8x32xf32> to vector<8x8xf32>
    %26 = vector.extract_strided_slice %21 {offsets = [0, 0], sizes = [8, 8], strides = [1, 1]} : vector<8x32xf32> to vector<8x8xf32>
    %27 = arith.truncf %24 : vector<8x8xf32> to vector<8x8xbf16>
    %28 = arith.truncf %25 : vector<8x8xf32> to vector<8x8xbf16>
    %cst_18 = arith.constant dense<0.000000e+00> : vector<8x8xf32>
    %29 = tpu.matmul %27, %28, %cst_18 {dimension_numbers = #tpu.dot_dimension_numbers<[1], [1], [0], [0], [0, 0, 1, 0], [], []>} : vector<8x8xbf16>, vector<8x8xbf16>, vector<8x8xf32> -> vector<8x8xf32>
    %cst_19 = arith.constant 0.353553385 : f32
    %30 = vector.broadcast %cst_19 : f32 to vector<8x8xf32>
    %31 = arith.mulf %29, %30 : vector<8x8xf32>
    %32 = arith.addf %31, %23 : vector<8x8xf32>
    %cst_20 = arith.constant dense<0xFF800000> : vector<8xf32>
    %33 = vector.multi_reduction <maximumf>, %32, %cst_20 [1] : vector<8x8xf32> to vector<8xf32>
    %34 = vector.shape_cast %33 : vector<8xf32> to vector<8x1xf32>
    %35 = vector.broadcast %34 : vector<8x1xf32> to vector<8x8xf32>
    %36 = arith.subf %32, %35 : vector<8x8xf32>
    %37 = math.exp %36 : vector<8x8xf32>
    %cst_21 = arith.constant dense<0.000000e+00> : vector<8xf32>
    %38 = vector.multi_reduction <add>, %37, %cst_21 [1] : vector<8x8xf32> to vector<8xf32>
    %39 = vector.shape_cast %38 : vector<8xf32> to vector<8x1xf32>
    %40 = tpu.reciprocal %39 {approx = true} : vector<8x1xf32> -> vector<8x1xf32>
    %41 = vector.broadcast %40 : vector<8x1xf32> to vector<8x8xf32>
    %42 = arith.mulf %37, %41 : vector<8x8xf32>
    %c0_22 = arith.constant 0 : index
    %c0_23 = arith.constant 0 : index
    %c0_24 = arith.constant 0 : index
    %c0_25 = arith.constant 0 : index
    %43 = vector.load %arg29[%c0_22, %c0_23, %c0_24, %c0_25] : memref<1x4x8x8xf32, #tpu.memory_space<vmem>>, vector<1x1x8x8xf32>
    %44 = vector.shape_cast %43 : vector<1x1x8x8xf32> to vector<8x8xf32>
    %45 = vector.shape_cast %42 : vector<8x8xf32> to vector<1x1x8x8xf32>
    tpu.vector_store %arg29[%c0_22, %c0_23, %c0_24, %c0_25], %45 {strides = array<i32>} : memref<1x4x8x8xf32, #tpu.memory_space<vmem>>, vector<1x1x8x8xf32>,
    %46 = arith.truncf %42 : vector<8x8xf32> to vector<8x8xbf16>
    %47 = arith.truncf %26 : vector<8x8xf32> to vector<8x8xbf16>
    %cst_26 = arith.constant dense<0.000000e+00> : vector<8x8xf32>
    %48 = tpu.matmul %46, %47, %cst_26 {dimension_numbers = #tpu.dot_dimension_numbers<[1], [0], [0], [1], [0, 0, 1, 1], [], []>} : vector<8x8xbf16>, vector<8x8xbf16>, vector<8x8xf32> -> vector<8x8xf32>
    %49 = vector.extract_strided_slice %19 {offsets = [0, 8], sizes = [8, 8], strides = [1, 1]} : vector<8x32xf32> to vector<8x8xf32>
    %50 = vector.extract_strided_slice %20 {offsets = [0, 8], sizes = [8, 8], strides = [1, 1]} : vector<8x32xf32> to vector<8x8xf32>
    %51 = vector.extract_strided_slice %21 {offsets = [0, 8], sizes = [8, 8], strides = [1, 1]} : vector<8x32xf32> to vector<8x8xf32>
    %52 = arith.truncf %49 : vector<8x8xf32> to vector<8x8xbf16>
    %53 = arith.truncf %50 : vector<8x8xf32> to vector<8x8xbf16>
    %cst_27 = arith.constant dense<0.000000e+00> : vector<8x8xf32>
    %54 = tpu.matmul %52, %53, %cst_27 {dimension_numbers = #tpu.dot_dimension_numbers<[1], [1], [0], [0], [0, 0, 1, 0], [], []>} : vector<8x8xbf16>, vector<8x8xbf16>, vector<8x8xf32> -> vector<8x8xf32>
    %cst_28 = arith.constant 0.353553385 : f32
    %55 = vector.broadcast %cst_28 : f32 to vector<8x8xf32>
    %56 = arith.mulf %54, %55 : vector<8x8xf32>
    %57 = arith.addf %56, %23 : vector<8x8xf32>
    %cst_29 = arith.constant dense<0xFF800000> : vector<8xf32>
    %58 = vector.multi_reduction <maximumf>, %57, %cst_29 [1] : vector<8x8xf32> to vector<8xf32>
    %59 = vector.shape_cast %58 : vector<8xf32> to vector<8x1xf32>
    %60 = vector.broadcast %59 : vector<8x1xf32> to vector<8x8xf32>
    %61 = arith.subf %57, %60 : vector<8x8xf32>
    %62 = math.exp %61 : vector<8x8xf32>
    %cst_30 = arith.constant dense<0.000000e+00> : vector<8xf32>
    %63 = vector.multi_reduction <add>, %62, %cst_30 [1] : vector<8x8xf32> to vector<8xf32>
    %64 = vector.shape_cast %63 : vector<8xf32> to vector<8x1xf32>
    %65 = tpu.reciprocal %64 {approx = true} : vector<8x1xf32> -> vector<8x1xf32>
    %66 = vector.broadcast %65 : vector<8x1xf32> to vector<8x8xf32>
    %67 = arith.mulf %62, %66 : vector<8x8xf32>
    %c0_31 = arith.constant 0 : index
    %c1 = arith.constant 1 : index
    %c0_32 = arith.constant 0 : index
    %c0_33 = arith.constant 0 : index
    %68 = vector.load %arg29[%c0_31, %c1, %c0_32, %c0_33] : memref<1x4x8x8xf32, #tpu.memory_space<vmem>>, vector<1x1x8x8xf32>
    %69 = vector.shape_cast %68 : vector<1x1x8x8xf32> to vector<8x8xf32>
    %70 = vector.shape_cast %67 : vector<8x8xf32> to vector<1x1x8x8xf32>
    tpu.vector_store %arg29[%c0_31, %c1, %c0_32, %c0_33], %70 {strides = array<i32>} : memref<1x4x8x8xf32, #tpu.memory_space<vmem>>, vector<1x1x8x8xf32>,
    %71 = arith.truncf %67 : vector<8x8xf32> to vector<8x8xbf16>
    %72 = arith.truncf %51 : vector<8x8xf32> to vector<8x8xbf16>
    %cst_34 = arith.constant dense<0.000000e+00> : vector<8x8xf32>
    %73 = tpu.matmul %71, %72, %cst_34 {dimension_numbers = #tpu.dot_dimension_numbers<[1], [0], [0], [1], [0, 0, 1, 1], [], []>} : vector<8x8xbf16>, vector<8x8xbf16>, vector<8x8xf32> -> vector<8x8xf32>
    %74 = vector.extract_strided_slice %19 {offsets = [0, 16], sizes = [8, 8], strides = [1, 1]} : vector<8x32xf32> to vector<8x8xf32>
    %75 = vector.extract_strided_slice %20 {offsets = [0, 16], sizes = [8, 8], strides = [1, 1]} : vector<8x32xf32> to vector<8x8xf32>
    %76 = vector.extract_strided_slice %21 {offsets = [0, 16], sizes = [8, 8], strides = [1, 1]} : vector<8x32xf32> to vector<8x8xf32>
    %77 = arith.truncf %74 : vector<8x8xf32> to vector<8x8xbf16>
    %78 = arith.truncf %75 : vector<8x8xf32> to vector<8x8xbf16>
    %cst_35 = arith.constant dense<0.000000e+00> : vector<8x8xf32>
    %79 = tpu.matmul %77, %78, %cst_35 {dimension_numbers = #tpu.dot_dimension_numbers<[1], [1], [0], [0], [0, 0, 1, 0], [], []>} : vector<8x8xbf16>, vector<8x8xbf16>, vector<8x8xf32> -> vector<8x8xf32>
    %cst_36 = arith.constant 0.353553385 : f32
    %80 = vector.broadcast %cst_36 : f32 to vector<8x8xf32>
    %81 = arith.mulf %79, %80 : vector<8x8xf32>
    %82 = arith.addf %81, %23 : vector<8x8xf32>
    %cst_37 = arith.constant dense<0xFF800000> : vector<8xf32>
    %83 = vector.multi_reduction <maximumf>, %82, %cst_37 [1] : vector<8x8xf32> to vector<8xf32>
    %84 = vector.shape_cast %83 : vector<8xf32> to vector<8x1xf32>
    %85 = vector.broadcast %84 : vector<8x1xf32> to vector<8x8xf32>
    %86 = arith.subf %82, %85 : vector<8x8xf32>
    %87 = math.exp %86 : vector<8x8xf32>
    %cst_38 = arith.constant dense<0.000000e+00> : vector<8xf32>
    %88 = vector.multi_reduction <add>, %87, %cst_38 [1] : vector<8x8xf32> to vector<8xf32>
    %89 = vector.shape_cast %88 : vector<8xf32> to vector<8x1xf32>
    %90 = tpu.reciprocal %89 {approx = true} : vector<8x1xf32> -> vector<8x1xf32>
    %91 = vector.broadcast %90 : vector<8x1xf32> to vector<8x8xf32>
    %92 = arith.mulf %87, %91 : vector<8x8xf32>
    %c0_39 = arith.constant 0 : index
    %c2 = arith.constant 2 : index
    %c0_40 = arith.constant 0 : index
    %c0_41 = arith.constant 0 : index
    %93 = vector.load %arg29[%c0_39, %c2, %c0_40, %c0_41] : memref<1x4x8x8xf32, #tpu.memory_space<vmem>>, vector<1x1x8x8xf32>
    %94 = vector.shape_cast %93 : vector<1x1x8x8xf32> to vector<8x8xf32>
    %95 = vector.shape_cast %92 : vector<8x8xf32> to vector<1x1x8x8xf32>
    tpu.vector_store %arg29[%c0_39, %c2, %c0_40, %c0_41], %95 {strides = array<i32>} : memref<1x4x8x8xf32, #tpu.memory_space<vmem>>, vector<1x1x8x8xf32>,
    %96 = arith.truncf %92 : vector<8x8xf32> to vector<8x8xbf16>
    %97 = arith.truncf %76 : vector<8x8xf32> to vector<8x8xbf16>
    %cst_42 = arith.constant dense<0.000000e+00> : vector<8x8xf32>
    %98 = tpu.matmul %96, %97, %cst_42 {dimension_numbers = #tpu.dot_dimension_numbers<[1], [0], [0], [1], [0, 0, 1, 1], [], []>} : vector<8x8xbf16>, vector<8x8xbf16>, vector<8x8xf32> -> vector<8x8xf32>
    %99 = vector.extract_strided_slice %19 {offsets = [0, 24], sizes = [8, 8], strides = [1, 1]} : vector<8x32xf32> to vector<8x8xf32>
    %100 = vector.extract_strided_slice %20 {offsets = [0, 24], sizes = [8, 8], strides = [1, 1]} : vector<8x32xf32> to vector<8x8xf32>
    %101 = vector.extract_strided_slice %21 {offsets = [0, 24], sizes = [8, 8], strides = [1, 1]} : vector<8x32xf32> to vector<8x8xf32>
    %102 = arith.truncf %99 : vector<8x8xf32> to vector<8x8xbf16>
    %103 = arith.truncf %100 : vector<8x8xf32> to vector<8x8xbf16>
    %cst_43 = arith.constant dense<0.000000e+00> : vector<8x8xf32>
    %104 = tpu.matmul %102, %103, %cst_43 {dimension_numbers = #tpu.dot_dimension_numbers<[1], [1], [0], [0], [0, 0, 1, 0], [], []>} : vector<8x8xbf16>, vector<8x8xbf16>, vector<8x8xf32> -> vector<8x8xf32>
    %cst_44 = arith.constant 0.353553385 : f32
    %105 = vector.broadcast %cst_44 : f32 to vector<8x8xf32>
    %106 = arith.mulf %104, %105 : vector<8x8xf32>
    %107 = arith.addf %106, %23 : vector<8x8xf32>
    %cst_45 = arith.constant dense<0xFF800000> : vector<8xf32>
    %108 = vector.multi_reduction <maximumf>, %107, %cst_45 [1] : vector<8x8xf32> to vector<8xf32>
    %109 = vector.shape_cast %108 : vector<8xf32> to vector<8x1xf32>
    %110 = vector.broadcast %109 : vector<8x1xf32> to vector<8x8xf32>
    %111 = arith.subf %107, %110 : vector<8x8xf32>
    %112 = math.exp %111 : vector<8x8xf32>
    %cst_46 = arith.constant dense<0.000000e+00> : vector<8xf32>
    %113 = vector.multi_reduction <add>, %112, %cst_46 [1] : vector<8x8xf32> to vector<8xf32>
    %114 = vector.shape_cast %113 : vector<8xf32> to vector<8x1xf32>
    %115 = tpu.reciprocal %114 {approx = true} : vector<8x1xf32> -> vector<8x1xf32>
    %116 = vector.broadcast %115 : vector<8x1xf32> to vector<8x8xf32>
    %117 = arith.mulf %112, %116 : vector<8x8xf32>
    %c0_47 = arith.constant 0 : index
    %c3 = arith.constant 3 : index
    %c0_48 = arith.constant 0 : index
    %c0_49 = arith.constant 0 : index
    %118 = vector.load %arg29[%c0_47, %c3, %c0_48, %c0_49] : memref<1x4x8x8xf32, #tpu.memory_space<vmem>>, vector<1x1x8x8xf32>
    %119 = vector.shape_cast %118 : vector<1x1x8x8xf32> to vector<8x8xf32>
    %120 = vector.shape_cast %117 : vector<8x8xf32> to vector<1x1x8x8xf32>
    tpu.vector_store %arg29[%c0_47, %c3, %c0_48, %c0_49], %120 {strides = array<i32>} : memref<1x4x8x8xf32, #tpu.memory_space<vmem>>, vector<1x1x8x8xf32>,
    %121 = arith.truncf %117 : vector<8x8xf32> to vector<8x8xbf16>
    %122 = arith.truncf %101 : vector<8x8xf32> to vector<8x8xbf16>
    %cst_50 = arith.constant dense<0.000000e+00> : vector<8x8xf32>
    %123 = tpu.matmul %121, %122, %cst_50 {dimension_numbers = #tpu.dot_dimension_numbers<[1], [0], [0], [1], [0, 0, 1, 1], [], []>} : vector<8x8xbf16>, vector<8x8xbf16>, vector<8x8xf32> -> vector<8x8xf32>
    %124 = tpu.concatenate %48, %73, %98, %123 in 1 : vector<8x8xf32>, vector<8x8xf32>, vector<8x8xf32>, vector<8x8xf32> -> vector<8x32xf32>
    %c0_51 = arith.constant 0 : index
    %c0_52 = arith.constant 0 : index
    %c0_53 = arith.constant 0 : index
    %125 = vector.load %arg8[%c0_51, %c0_52, %c0_53] : memref<1x32x32xf32, #tpu.memory_space<vmem>>, vector<1x32x32xf32>
    %126 = vector.shape_cast %125 : vector<1x32x32xf32> to vector<32x32xf32>
    %127 = arith.truncf %124 : vector<8x32xf32> to vector<8x32xbf16>
    %128 = arith.truncf %126 : vector<32x32xf32> to vector<32x32xbf16>
    %cst_54 = arith.constant dense<0.000000e+00> : vector<8x32xf32>
    %129 = tpu.matmul %127, %128, %cst_54 {dimension_numbers = #tpu.dot_dimension_numbers<[1], [0], [0], [1], [0, 0, 1, 1], [], []>} : vector<8x32xbf16>, vector<32x32xbf16>, vector<8x32xf32> -> vector<8x32xf32>
    %c0_55 = arith.constant 0 : index
    %c0_56 = arith.constant 0 : index
    %c0_57 = arith.constant 0 : index
    %130 = vector.load %arg9[%c0_55, %c0_56, %c0_57] : memref<1x1x32xf32, #tpu.memory_space<vmem>>, vector<1x1x32xf32>
    %131 = vector.shape_cast %130 : vector<1x1x32xf32> to vector<1x32xf32>
    %132 = vector.broadcast %131 : vector<1x32xf32> to vector<8x32xf32>
    %133 = arith.addf %129, %132 : vector<8x32xf32>
    %134 = arith.addf %3, %133 : vector<8x32xf32>
    %c0_58 = arith.constant 0 : index
    %c0_59 = arith.constant 0 : index
    %c0_60 = arith.constant 0 : index
    %135 = vector.load %arg20[%c0_58, %c0_59, %c0_60] : memref<1x1x32xf32, #tpu.memory_space<vmem>>, vector<1x1x32xf32>
    %136 = vector.shape_cast %135 : vector<1x1x32xf32> to vector<1x32xf32>
    %c0_61 = arith.constant 0 : index
    %c0_62 = arith.constant 0 : index
    %c0_63 = arith.constant 0 : index
    %137 = vector.load %arg21[%c0_61, %c0_62, %c0_63] : memref<1x1x32xf32, #tpu.memory_space<vmem>>, vector<1x1x32xf32>
    %138 = vector.shape_cast %137 : vector<1x1x32xf32> to vector<1x32xf32>
    %cst_64 = arith.constant dense<0.000000e+00> : vector<8xf32>
    %139 = vector.multi_reduction <add>, %134, %cst_64 [1] : vector<8x32xf32> to vector<8xf32>
    %140 = vector.shape_cast %139 : vector<8xf32> to vector<8x1xf32>
    %cst_65 = arith.constant 3.200000e+01 : f32
    %141 = vector.broadcast %cst_65 : f32 to vector<8x1xf32>
    %142 = arith.divf %140, %141 : vector<8x1xf32>
    %143 = vector.broadcast %142 : vector<8x1xf32> to vector<8x32xf32>
    %144 = arith.subf %134, %143 : vector<8x32xf32>
    %145 = arith.mulf %144, %144 : vector<8x32xf32>
    %cst_66 = arith.constant dense<0.000000e+00> : vector<8xf32>
    %146 = vector.multi_reduction <add>, %145, %cst_66 [1] : vector<8x32xf32> to vector<8xf32>
    %147 = vector.shape_cast %146 : vector<8xf32> to vector<8x1xf32>
    %cst_67 = arith.constant 3.200000e+01 : f32
    %148 = vector.broadcast %cst_67 : f32 to vector<8x1xf32>
    %149 = arith.divf %147, %148 : vector<8x1xf32>
    %150 = vector.broadcast %142 : vector<8x1xf32> to vector<8x32xf32>
    %151 = arith.subf %134, %150 : vector<8x32xf32>
    %cst_68 = arith.constant 9.99999997E-7 : f32
    %152 = vector.broadcast %cst_68 : f32 to vector<8x1xf32>
    %153 = arith.addf %149, %152 : vector<8x1xf32>
    %154 = math.rsqrt %153 : vector<8x1xf32>
    %155 = vector.broadcast %154 : vector<8x1xf32> to vector<8x32xf32>
    %156 = arith.mulf %151, %155 : vector<8x32xf32>
    %157 = vector.broadcast %136 : vector<1x32xf32> to vector<8x32xf32>
    %158 = arith.mulf %156, %157 : vector<8x32xf32>
    %159 = vector.broadcast %138 : vector<1x32xf32> to vector<8x32xf32>
    %160 = arith.addf %158, %159 : vector<8x32xf32>
    %c0_69 = arith.constant 0 : index
    %c0_70 = arith.constant 0 : index
    %c0_71 = arith.constant 0 : index
    %161 = vector.load %arg10[%c0_69, %c0_70, %c0_71] : memref<1x32x32xf32, #tpu.memory_space<vmem>>, vector<1x32x32xf32>
    %162 = vector.shape_cast %161 : vector<1x32x32xf32> to vector<32x32xf32>
    %163 = arith.truncf %160 : vector<8x32xf32> to vector<8x32xbf16>
    %164 = arith.truncf %162 : vector<32x32xf32> to vector<32x32xbf16>
    %cst_72 = arith.constant dense<0.000000e+00> : vector<8x32xf32>
    %165 = tpu.matmul %163, %164, %cst_72 {dimension_numbers = #tpu.dot_dimension_numbers<[1], [0], [0], [1], [0, 0, 1, 1], [], []>} : vector<8x32xbf16>, vector<32x32xbf16>, vector<8x32xf32> -> vector<8x32xf32>
    %c0_73 = arith.constant 0 : index
    %c0_74 = arith.constant 0 : index
    %c0_75 = arith.constant 0 : index
    %166 = vector.load %arg11[%c0_73, %c0_74, %c0_75] : memref<1x1x32xf32, #tpu.memory_space<vmem>>, vector<1x1x32xf32>
    %167 = vector.shape_cast %166 : vector<1x1x32xf32> to vector<1x32xf32>
    %168 = vector.broadcast %167 : vector<1x32xf32> to vector<8x32xf32>
    %169 = arith.addf %165, %168 : vector<8x32xf32>
    %c0_76 = arith.constant 0 : index
    %c0_77 = arith.constant 0 : index
    %c0_78 = arith.constant 0 : index
    %170 = vector.load %arg12[%c0_76, %c0_77, %c0_78] : memref<1x32x64xf32, #tpu.memory_space<vmem>>, vector<1x32x64xf32>
    %171 = vector.shape_cast %170 : vector<1x32x64xf32> to vector<32x64xf32>
    %172 = arith.truncf %5 : vector<8x32xf32> to vector<8x32xbf16>
    %173 = arith.truncf %171 : vector<32x64xf32> to vector<32x64xbf16>
    %cst_79 = arith.constant dense<0.000000e+00> : vector<8x64xf32>
    %174 = tpu.matmul %172, %173, %cst_79 {dimension_numbers = #tpu.dot_dimension_numbers<[1], [0], [0], [1], [0, 0, 1, 1], [], []>} : vector<8x32xbf16>, vector<32x64xbf16>, vector<8x64xf32> -> vector<8x64xf32>
    %c0_80 = arith.constant 0 : index
    %c0_81 = arith.constant 0 : index
    %c0_82 = arith.constant 0 : index
    %175 = vector.load %arg13[%c0_80, %c0_81, %c0_82] : memref<1x1x64xf32, #tpu.memory_space<vmem>>, vector<1x1x64xf32>
    %176 = vector.shape_cast %175 : vector<1x1x64xf32> to vector<1x64xf32>
    %177 = vector.broadcast %176 : vector<1x64xf32> to vector<8x64xf32>
    %178 = arith.addf %174, %177 : vector<8x64xf32>
    %179 = vector.extract_strided_slice %178 {offsets = [0, 0], sizes = [8, 32], strides = [1, 1]} : vector<8x64xf32> to vector<8x32xf32>
    %180 = vector.extract_strided_slice %178 {offsets = [0, 32], sizes = [8, 32], strides = [1, 1]} : vector<8x64xf32> to vector<8x32xf32>
    %cst_83 = arith.constant -1.000000e+09 : f32
    %181 = vector.broadcast %cst_83 : f32 to vector<8x8xf32>
    %182 = arith.mulf %9, %181 : vector<8x8xf32>
    %183 = vector.extract_strided_slice %169 {offsets = [0, 0], sizes = [8, 8], strides = [1, 1]} : vector<8x32xf32> to vector<8x8xf32>
    %184 = vector.extract_strided_slice %179 {offsets = [0, 0], sizes = [8, 8], strides = [1, 1]} : vector<8x32xf32> to vector<8x8xf32>
    %185 = vector.extract_strided_slice %180 {offsets = [0, 0], sizes = [8, 8], strides = [1, 1]} : vector<8x32xf32> to vector<8x8xf32>
    %186 = arith.truncf %183 : vector<8x8xf32> to vector<8x8xbf16>
    %187 = arith.truncf %184 : vector<8x8xf32> to vector<8x8xbf16>
    %cst_84 = arith.constant dense<0.000000e+00> : vector<8x8xf32>
    %188 = tpu.matmul %186, %187, %cst_84 {dimension_numbers = #tpu.dot_dimension_numbers<[1], [1], [0], [0], [0, 0, 1, 0], [], []>} : vector<8x8xbf16>, vector<8x8xbf16>, vector<8x8xf32> -> vector<8x8xf32>
    %cst_85 = arith.constant 0.353553385 : f32
    %189 = vector.broadcast %cst_85 : f32 to vector<8x8xf32>
    %190 = arith.mulf %188, %189 : vector<8x8xf32>
    %191 = arith.addf %190, %182 : vector<8x8xf32>
    %cst_86 = arith.constant dense<0xFF800000> : vector<8xf32>
    %192 = vector.multi_reduction <maximumf>, %191, %cst_86 [1] : vector<8x8xf32> to vector<8xf32>
    %193 = vector.shape_cast %192 : vector<8xf32> to vector<8x1xf32>
    %194 = vector.broadcast %193 : vector<8x1xf32> to vector<8x8xf32>
    %195 = arith.subf %191, %194 : vector<8x8xf32>
    %196 = math.exp %195 : vector<8x8xf32>
    %cst_87 = arith.constant dense<0.000000e+00> : vector<8xf32>
    %197 = vector.multi_reduction <add>, %196, %cst_87 [1] : vector<8x8xf32> to vector<8xf32>
    %198 = vector.shape_cast %197 : vector<8xf32> to vector<8x1xf32>
    %199 = tpu.reciprocal %198 {approx = true} : vector<8x1xf32> -> vector<8x1xf32>
    %200 = vector.broadcast %199 : vector<8x1xf32> to vector<8x8xf32>
    %201 = arith.mulf %196, %200 : vector<8x8xf32>
    %c0_88 = arith.constant 0 : index
    %c0_89 = arith.constant 0 : index
    %c0_90 = arith.constant 0 : index
    %c0_91 = arith.constant 0 : index
    %202 = vector.load %arg30[%c0_88, %c0_89, %c0_90, %c0_91] : memref<1x4x8x8xf32, #tpu.memory_space<vmem>>, vector<1x1x8x8xf32>
    %203 = vector.shape_cast %202 : vector<1x1x8x8xf32> to vector<8x8xf32>
    %204 = vector.shape_cast %201 : vector<8x8xf32> to vector<1x1x8x8xf32>
    tpu.vector_store %arg30[%c0_88, %c0_89, %c0_90, %c0_91], %204 {strides = array<i32>} : memref<1x4x8x8xf32, #tpu.memory_space<vmem>>, vector<1x1x8x8xf32>,
    %205 = arith.truncf %201 : vector<8x8xf32> to vector<8x8xbf16>
    %206 = arith.truncf %185 : vector<8x8xf32> to vector<8x8xbf16>
    %cst_92 = arith.constant dense<0.000000e+00> : vector<8x8xf32>
    %207 = tpu.matmul %205, %206, %cst_92 {dimension_numbers = #tpu.dot_dimension_numbers<[1], [0], [0], [1], [0, 0, 1, 1], [], []>} : vector<8x8xbf16>, vector<8x8xbf16>, vector<8x8xf32> -> vector<8x8xf32>
    %208 = vector.extract_strided_slice %169 {offsets = [0, 8], sizes = [8, 8], strides = [1, 1]} : vector<8x32xf32> to vector<8x8xf32>
    %209 = vector.extract_strided_slice %179 {offsets = [0, 8], sizes = [8, 8], strides = [1, 1]} : vector<8x32xf32> to vector<8x8xf32>
    %210 = vector.extract_strided_slice %180 {offsets = [0, 8], sizes = [8, 8], strides = [1, 1]} : vector<8x32xf32> to vector<8x8xf32>
    %211 = arith.truncf %208 : vector<8x8xf32> to vector<8x8xbf16>
    %212 = arith.truncf %209 : vector<8x8xf32> to vector<8x8xbf16>
    %cst_93 = arith.constant dense<0.000000e+00> : vector<8x8xf32>
    %213 = tpu.matmul %211, %212, %cst_93 {dimension_numbers = #tpu.dot_dimension_numbers<[1], [1], [0], [0], [0, 0, 1, 0], [], []>} : vector<8x8xbf16>, vector<8x8xbf16>, vector<8x8xf32> -> vector<8x8xf32>
    %cst_94 = arith.constant 0.353553385 : f32
    %214 = vector.broadcast %cst_94 : f32 to vector<8x8xf32>
    %215 = arith.mulf %213, %214 : vector<8x8xf32>
    %216 = arith.addf %215, %182 : vector<8x8xf32>
    %cst_95 = arith.constant dense<0xFF800000> : vector<8xf32>
    %217 = vector.multi_reduction <maximumf>, %216, %cst_95 [1] : vector<8x8xf32> to vector<8xf32>
    %218 = vector.shape_cast %217 : vector<8xf32> to vector<8x1xf32>
    %219 = vector.broadcast %218 : vector<8x1xf32> to vector<8x8xf32>
    %220 = arith.subf %216, %219 : vector<8x8xf32>
    %221 = math.exp %220 : vector<8x8xf32>
    %cst_96 = arith.constant dense<0.000000e+00> : vector<8xf32>
    %222 = vector.multi_reduction <add>, %221, %cst_96 [1] : vector<8x8xf32> to vector<8xf32>
    %223 = vector.shape_cast %222 : vector<8xf32> to vector<8x1xf32>
    %224 = tpu.reciprocal %223 {approx = true} : vector<8x1xf32> -> vector<8x1xf32>
    %225 = vector.broadcast %224 : vector<8x1xf32> to vector<8x8xf32>
    %226 = arith.mulf %221, %225 : vector<8x8xf32>
    %c0_97 = arith.constant 0 : index
    %c1_98 = arith.constant 1 : index
    %c0_99 = arith.constant 0 : index
    %c0_100 = arith.constant 0 : index
    %227 = vector.load %arg30[%c0_97, %c1_98, %c0_99, %c0_100] : memref<1x4x8x8xf32, #tpu.memory_space<vmem>>, vector<1x1x8x8xf32>
    %228 = vector.shape_cast %227 : vector<1x1x8x8xf32> to vector<8x8xf32>
    %229 = vector.shape_cast %226 : vector<8x8xf32> to vector<1x1x8x8xf32>
    tpu.vector_store %arg30[%c0_97, %c1_98, %c0_99, %c0_100], %229 {strides = array<i32>} : memref<1x4x8x8xf32, #tpu.memory_space<vmem>>, vector<1x1x8x8xf32>,
    %230 = arith.truncf %226 : vector<8x8xf32> to vector<8x8xbf16>
    %231 = arith.truncf %210 : vector<8x8xf32> to vector<8x8xbf16>
    %cst_101 = arith.constant dense<0.000000e+00> : vector<8x8xf32>
    %232 = tpu.matmul %230, %231, %cst_101 {dimension_numbers = #tpu.dot_dimension_numbers<[1], [0], [0], [1], [0, 0, 1, 1], [], []>} : vector<8x8xbf16>, vector<8x8xbf16>, vector<8x8xf32> -> vector<8x8xf32>
    %233 = vector.extract_strided_slice %169 {offsets = [0, 16], sizes = [8, 8], strides = [1, 1]} : vector<8x32xf32> to vector<8x8xf32>
    %234 = vector.extract_strided_slice %179 {offsets = [0, 16], sizes = [8, 8], strides = [1, 1]} : vector<8x32xf32> to vector<8x8xf32>
    %235 = vector.extract_strided_slice %180 {offsets = [0, 16], sizes = [8, 8], strides = [1, 1]} : vector<8x32xf32> to vector<8x8xf32>
    %236 = arith.truncf %233 : vector<8x8xf32> to vector<8x8xbf16>
    %237 = arith.truncf %234 : vector<8x8xf32> to vector<8x8xbf16>
    %cst_102 = arith.constant dense<0.000000e+00> : vector<8x8xf32>
    %238 = tpu.matmul %236, %237, %cst_102 {dimension_numbers = #tpu.dot_dimension_numbers<[1], [1], [0], [0], [0, 0, 1, 0], [], []>} : vector<8x8xbf16>, vector<8x8xbf16>, vector<8x8xf32> -> vector<8x8xf32>
    %cst_103 = arith.constant 0.353553385 : f32
    %239 = vector.broadcast %cst_103 : f32 to vector<8x8xf32>
    %240 = arith.mulf %238, %239 : vector<8x8xf32>
    %241 = arith.addf %240, %182 : vector<8x8xf32>
    %cst_104 = arith.constant dense<0xFF800000> : vector<8xf32>
    %242 = vector.multi_reduction <maximumf>, %241, %cst_104 [1] : vector<8x8xf32> to vector<8xf32>
    %243 = vector.shape_cast %242 : vector<8xf32> to vector<8x1xf32>
    %244 = vector.broadcast %243 : vector<8x1xf32> to vector<8x8xf32>
    %245 = arith.subf %241, %244 : vector<8x8xf32>
    %246 = math.exp %245 : vector<8x8xf32>
    %cst_105 = arith.constant dense<0.000000e+00> : vector<8xf32>
    %247 = vector.multi_reduction <add>, %246, %cst_105 [1] : vector<8x8xf32> to vector<8xf32>
    %248 = vector.shape_cast %247 : vector<8xf32> to vector<8x1xf32>
    %249 = tpu.reciprocal %248 {approx = true} : vector<8x1xf32> -> vector<8x1xf32>
    %250 = vector.broadcast %249 : vector<8x1xf32> to vector<8x8xf32>
    %251 = arith.mulf %246, %250 : vector<8x8xf32>
    %c0_106 = arith.constant 0 : index
    %c2_107 = arith.constant 2 : index
    %c0_108 = arith.constant 0 : index
    %c0_109 = arith.constant 0 : index
    %252 = vector.load %arg30[%c0_106, %c2_107, %c0_108, %c0_109] : memref<1x4x8x8xf32, #tpu.memory_space<vmem>>, vector<1x1x8x8xf32>
    %253 = vector.shape_cast %252 : vector<1x1x8x8xf32> to vector<8x8xf32>
    %254 = vector.shape_cast %251 : vector<8x8xf32> to vector<1x1x8x8xf32>
    tpu.vector_store %arg30[%c0_106, %c2_107, %c0_108, %c0_109], %254 {strides = array<i32>} : memref<1x4x8x8xf32, #tpu.memory_space<vmem>>, vector<1x1x8x8xf32>,
    %255 = arith.truncf %251 : vector<8x8xf32> to vector<8x8xbf16>
    %256 = arith.truncf %235 : vector<8x8xf32> to vector<8x8xbf16>
    %cst_110 = arith.constant dense<0.000000e+00> : vector<8x8xf32>
    %257 = tpu.matmul %255, %256, %cst_110 {dimension_numbers = #tpu.dot_dimension_numbers<[1], [0], [0], [1], [0, 0, 1, 1], [], []>} : vector<8x8xbf16>, vector<8x8xbf16>, vector<8x8xf32> -> vector<8x8xf32>
    %258 = vector.extract_strided_slice %169 {offsets = [0, 24], sizes = [8, 8], strides = [1, 1]} : vector<8x32xf32> to vector<8x8xf32>
    %259 = vector.extract_strided_slice %179 {offsets = [0, 24], sizes = [8, 8], strides = [1, 1]} : vector<8x32xf32> to vector<8x8xf32>
    %260 = vector.extract_strided_slice %180 {offsets = [0, 24], sizes = [8, 8], strides = [1, 1]} : vector<8x32xf32> to vector<8x8xf32>
    %261 = arith.truncf %258 : vector<8x8xf32> to vector<8x8xbf16>
    %262 = arith.truncf %259 : vector<8x8xf32> to vector<8x8xbf16>
    %cst_111 = arith.constant dense<0.000000e+00> : vector<8x8xf32>
    %263 = tpu.matmul %261, %262, %cst_111 {dimension_numbers = #tpu.dot_dimension_numbers<[1], [1], [0], [0], [0, 0, 1, 0], [], []>} : vector<8x8xbf16>, vector<8x8xbf16>, vector<8x8xf32> -> vector<8x8xf32>
    %cst_112 = arith.constant 0.353553385 : f32
    %264 = vector.broadcast %cst_112 : f32 to vector<8x8xf32>
    %265 = arith.mulf %263, %264 : vector<8x8xf32>
    %266 = arith.addf %265, %182 : vector<8x8xf32>
    %cst_113 = arith.constant dense<0xFF800000> : vector<8xf32>
    %267 = vector.multi_reduction <maximumf>, %266, %cst_113 [1] : vector<8x8xf32> to vector<8xf32>
    %268 = vector.shape_cast %267 : vector<8xf32> to vector<8x1xf32>
    %269 = vector.broadcast %268 : vector<8x1xf32> to vector<8x8xf32>
    %270 = arith.subf %266, %269 : vector<8x8xf32>
    %271 = math.exp %270 : vector<8x8xf32>
    %cst_114 = arith.constant dense<0.000000e+00> : vector<8xf32>
    %272 = vector.multi_reduction <add>, %271, %cst_114 [1] : vector<8x8xf32> to vector<8xf32>
    %273 = vector.shape_cast %272 : vector<8xf32> to vector<8x1xf32>
    %274 = tpu.reciprocal %273 {approx = true} : vector<8x1xf32> -> vector<8x1xf32>
    %275 = vector.broadcast %274 : vector<8x1xf32> to vector<8x8xf32>
    %276 = arith.mulf %271, %275 : vector<8x8xf32>
    %c0_115 = arith.constant 0 : index
    %c3_116 = arith.constant 3 : index
    %c0_117 = arith.constant 0 : index
    %c0_118 = arith.constant 0 : index
    %277 = vector.load %arg30[%c0_115, %c3_116, %c0_117, %c0_118] : memref<1x4x8x8xf32, #tpu.memory_space<vmem>>, vector<1x1x8x8xf32>
    %278 = vector.shape_cast %277 : vector<1x1x8x8xf32> to vector<8x8xf32>
    %279 = vector.shape_cast %276 : vector<8x8xf32> to vector<1x1x8x8xf32>
    tpu.vector_store %arg30[%c0_115, %c3_116, %c0_117, %c0_118], %279 {strides = array<i32>} : memref<1x4x8x8xf32, #tpu.memory_space<vmem>>, vector<1x1x8x8xf32>,
    %280 = arith.truncf %276 : vector<8x8xf32> to vector<8x8xbf16>
    %281 = arith.truncf %260 : vector<8x8xf32> to vector<8x8xbf16>
    %cst_119 = arith.constant dense<0.000000e+00> : vector<8x8xf32>
    %282 = tpu.matmul %280, %281, %cst_119 {dimension_numbers = #tpu.dot_dimension_numbers<[1], [0], [0], [1], [0, 0, 1, 1], [], []>} : vector<8x8xbf16>, vector<8x8xbf16>, vector<8x8xf32> -> vector<8x8xf32>
    %283 = tpu.concatenate %207, %232, %257, %282 in 1 : vector<8x8xf32>, vector<8x8xf32>, vector<8x8xf32>, vector<8x8xf32> -> vector<8x32xf32>
    %c0_120 = arith.constant 0 : index
    %c0_121 = arith.constant 0 : index
    %c0_122 = arith.constant 0 : index
    %284 = vector.load %arg14[%c0_120, %c0_121, %c0_122] : memref<1x32x32xf32, #tpu.memory_space<vmem>>, vector<1x32x32xf32>
    %285 = vector.shape_cast %284 : vector<1x32x32xf32> to vector<32x32xf32>
    %286 = arith.truncf %283 : vector<8x32xf32> to vector<8x32xbf16>
    %287 = arith.truncf %285 : vector<32x32xf32> to vector<32x32xbf16>
    %cst_123 = arith.constant dense<0.000000e+00> : vector<8x32xf32>
    %288 = tpu.matmul %286, %287, %cst_123 {dimension_numbers = #tpu.dot_dimension_numbers<[1], [0], [0], [1], [0, 0, 1, 1], [], []>} : vector<8x32xbf16>, vector<32x32xbf16>, vector<8x32xf32> -> vector<8x32xf32>
    %c0_124 = arith.constant 0 : index
    %c0_125 = arith.constant 0 : index
    %c0_126 = arith.constant 0 : index
    %289 = vector.load %arg15[%c0_124, %c0_125, %c0_126] : memref<1x1x32xf32, #tpu.memory_space<vmem>>, vector<1x1x32xf32>
    %290 = vector.shape_cast %289 : vector<1x1x32xf32> to vector<1x32xf32>
    %291 = vector.broadcast %290 : vector<1x32xf32> to vector<8x32xf32>
    %292 = arith.addf %288, %291 : vector<8x32xf32>
    %293 = arith.addf %160, %292 : vector<8x32xf32>
    %c0_127 = arith.constant 0 : index
    %c0_128 = arith.constant 0 : index
    %c0_129 = arith.constant 0 : index
    %294 = vector.load %arg22[%c0_127, %c0_128, %c0_129] : memref<1x1x32xf32, #tpu.memory_space<vmem>>, vector<1x1x32xf32>
    %295 = vector.shape_cast %294 : vector<1x1x32xf32> to vector<1x32xf32>
    %c0_130 = arith.constant 0 : index
    %c0_131 = arith.constant 0 : index
    %c0_132 = arith.constant 0 : index
    %296 = vector.load %arg23[%c0_130, %c0_131, %c0_132] : memref<1x1x32xf32, #tpu.memory_space<vmem>>, vector<1x1x32xf32>
    %297 = vector.shape_cast %296 : vector<1x1x32xf32> to vector<1x32xf32>
    %cst_133 = arith.constant dense<0.000000e+00> : vector<8xf32>
    %298 = vector.multi_reduction <add>, %293, %cst_133 [1] : vector<8x32xf32> to vector<8xf32>
    %299 = vector.shape_cast %298 : vector<8xf32> to vector<8x1xf32>
    %cst_134 = arith.constant 3.200000e+01 : f32
    %300 = vector.broadcast %cst_134 : f32 to vector<8x1xf32>
    %301 = arith.divf %299, %300 : vector<8x1xf32>
    %302 = vector.broadcast %301 : vector<8x1xf32> to vector<8x32xf32>
    %303 = arith.subf %293, %302 : vector<8x32xf32>
    %304 = arith.mulf %303, %303 : vector<8x32xf32>
    %cst_135 = arith.constant dense<0.000000e+00> : vector<8xf32>
    %305 = vector.multi_reduction <add>, %304, %cst_135 [1] : vector<8x32xf32> to vector<8xf32>
    %306 = vector.shape_cast %305 : vector<8xf32> to vector<8x1xf32>
    %cst_136 = arith.constant 3.200000e+01 : f32
    %307 = vector.broadcast %cst_136 : f32 to vector<8x1xf32>
    %308 = arith.divf %306, %307 : vector<8x1xf32>
    %309 = vector.broadcast %301 : vector<8x1xf32> to vector<8x32xf32>
    %310 = arith.subf %293, %309 : vector<8x32xf32>
    %cst_137 = arith.constant 9.99999997E-7 : f32
    %311 = vector.broadcast %cst_137 : f32 to vector<8x1xf32>
    %312 = arith.addf %308, %311 : vector<8x1xf32>
    %313 = math.rsqrt %312 : vector<8x1xf32>
    %314 = vector.broadcast %313 : vector<8x1xf32> to vector<8x32xf32>
    %315 = arith.mulf %310, %314 : vector<8x32xf32>
    %316 = vector.broadcast %295 : vector<1x32xf32> to vector<8x32xf32>
    %317 = arith.mulf %315, %316 : vector<8x32xf32>
    %318 = vector.broadcast %297 : vector<1x32xf32> to vector<8x32xf32>
    %319 = arith.addf %317, %318 : vector<8x32xf32>
    %c0_138 = arith.constant 0 : index
    %c0_139 = arith.constant 0 : index
    %c0_140 = arith.constant 0 : index
    %320 = vector.load %arg16[%c0_138, %c0_139, %c0_140] : memref<1x32x64xf32, #tpu.memory_space<vmem>>, vector<1x32x64xf32>
    %321 = vector.shape_cast %320 : vector<1x32x64xf32> to vector<32x64xf32>
    %322 = arith.truncf %319 : vector<8x32xf32> to vector<8x32xbf16>
    %323 = arith.truncf %321 : vector<32x64xf32> to vector<32x64xbf16>
    %cst_141 = arith.constant dense<0.000000e+00> : vector<8x64xf32>
    %324 = tpu.matmul %322, %323, %cst_141 {dimension_numbers = #tpu.dot_dimension_numbers<[1], [0], [0], [1], [0, 0, 1, 1], [], []>} : vector<8x32xbf16>, vector<32x64xbf16>, vector<8x64xf32> -> vector<8x64xf32>
    %c0_142 = arith.constant 0 : index
    %c0_143 = arith.constant 0 : index
    %c0_144 = arith.constant 0 : index
    %325 = vector.load %arg17[%c0_142, %c0_143, %c0_144] : memref<1x1x64xf32, #tpu.memory_space<vmem>>, vector<1x1x64xf32>
    %326 = vector.shape_cast %325 : vector<1x1x64xf32> to vector<1x64xf32>
    %327 = vector.broadcast %326 : vector<1x64xf32> to vector<8x64xf32>
    %328 = arith.addf %324, %327 : vector<8x64xf32>
    %cst_145 = arith.constant 0.000000e+00 : f32
    %329 = vector.broadcast %cst_145 : f32 to vector<8x64xf32>
    %330 = arith.maximumf %328, %329 : vector<8x64xf32>
    %c0_146 = arith.constant 0 : index
    %c0_147 = arith.constant 0 : index
    %c0_148 = arith.constant 0 : index
    %331 = vector.load %arg18[%c0_146, %c0_147, %c0_148] : memref<1x64x32xf32, #tpu.memory_space<vmem>>, vector<1x64x32xf32>
    %332 = vector.shape_cast %331 : vector<1x64x32xf32> to vector<64x32xf32>
    %333 = arith.truncf %330 : vector<8x64xf32> to vector<8x64xbf16>
    %334 = arith.truncf %332 : vector<64x32xf32> to vector<64x32xbf16>
    %cst_149 = arith.constant dense<0.000000e+00> : vector<8x32xf32>
    %335 = tpu.matmul %333, %334, %cst_149 {dimension_numbers = #tpu.dot_dimension_numbers<[1], [0], [0], [1], [0, 0, 1, 1], [], []>} : vector<8x64xbf16>, vector<64x32xbf16>, vector<8x32xf32> -> vector<8x32xf32>
    %c0_150 = arith.constant 0 : index
    %c0_151 = arith.constant 0 : index
    %c0_152 = arith.constant 0 : index
    %336 = vector.load %arg19[%c0_150, %c0_151, %c0_152] : memref<1x1x32xf32, #tpu.memory_space<vmem>>, vector<1x1x32xf32>
    %337 = vector.shape_cast %336 : vector<1x1x32xf32> to vector<1x32xf32>
    %338 = vector.broadcast %337 : vector<1x32xf32> to vector<8x32xf32>
    %339 = arith.addf %335, %338 : vector<8x32xf32>
    %340 = arith.addf %319, %339 : vector<8x32xf32>
    %c0_153 = arith.constant 0 : index
    %c0_154 = arith.constant 0 : index
    %c0_155 = arith.constant 0 : index
    %341 = vector.load %arg24[%c0_153, %c0_154, %c0_155] : memref<1x1x32xf32, #tpu.memory_space<vmem>>, vector<1x1x32xf32>
    %342 = vector.shape_cast %341 : vector<1x1x32xf32> to vector<1x32xf32>
    %c0_156 = arith.constant 0 : index
    %c0_157 = arith.constant 0 : index
    %c0_158 = arith.constant 0 : index
    %343 = vector.load %arg25[%c0_156, %c0_157, %c0_158] : memref<1x1x32xf32, #tpu.memory_space<vmem>>, vector<1x1x32xf32>
    %344 = vector.shape_cast %343 : vector<1x1x32xf32> to vector<1x32xf32>
    %cst_159 = arith.constant dense<0.000000e+00> : vector<8xf32>
    %345 = vector.multi_reduction <add>, %340, %cst_159 [1] : vector<8x32xf32> to vector<8xf32>
    %346 = vector.shape_cast %345 : vector<8xf32> to vector<8x1xf32>
    %cst_160 = arith.constant 3.200000e+01 : f32
    %347 = vector.broadcast %cst_160 : f32 to vector<8x1xf32>
    %348 = arith.divf %346, %347 : vector<8x1xf32>
    %349 = vector.broadcast %348 : vector<8x1xf32> to vector<8x32xf32>
    %350 = arith.subf %340, %349 : vector<8x32xf32>
    %351 = arith.mulf %350, %350 : vector<8x32xf32>
    %cst_161 = arith.constant dense<0.000000e+00> : vector<8xf32>
    %352 = vector.multi_reduction <add>, %351, %cst_161 [1] : vector<8x32xf32> to vector<8xf32>
    %353 = vector.shape_cast %352 : vector<8xf32> to vector<8x1xf32>
    %cst_162 = arith.constant 3.200000e+01 : f32
    %354 = vector.broadcast %cst_162 : f32 to vector<8x1xf32>
    %355 = arith.divf %353, %354 : vector<8x1xf32>
    %356 = vector.broadcast %348 : vector<8x1xf32> to vector<8x32xf32>
    %357 = arith.subf %340, %356 : vector<8x32xf32>
    %cst_163 = arith.constant 9.99999997E-7 : f32
    %358 = vector.broadcast %cst_163 : f32 to vector<8x1xf32>
    %359 = arith.addf %355, %358 : vector<8x1xf32>
    %360 = math.rsqrt %359 : vector<8x1xf32>
    %361 = vector.broadcast %360 : vector<8x1xf32> to vector<8x32xf32>
    %362 = arith.mulf %357, %361 : vector<8x32xf32>
    %363 = vector.broadcast %342 : vector<1x32xf32> to vector<8x32xf32>
    %364 = arith.mulf %362, %363 : vector<8x32xf32>
    %365 = vector.broadcast %344 : vector<1x32xf32> to vector<8x32xf32>
    %366 = arith.addf %364, %365 : vector<8x32xf32>
    %c0_164 = arith.constant 0 : index
    %c0_165 = arith.constant 0 : index
    %367 = vector.load %arg31[%c0_164, %c0_165] : memref<8x32xf32, #tpu.memory_space<vmem>>, vector<8x32xf32>
    tpu.vector_store %arg31[%c0_164, %c0_165], %366 {strides = array<i32>} : memref<8x32xf32, #tpu.memory_space<vmem>>, vector<8x32xf32>,
    %c1_i32 = arith.constant 1 : i32
    %368 = arith.cmpi eq, %arg1, %c1_i32 : i32
    %369 = arith.extui %368 : i1 to i32
    %c0_i32_166 = arith.constant 0 : i32
    %370 = arith.cmpi ne, %369, %c0_i32_166 : i32
    scf.if %370 {
      %c0_167 = arith.constant 0 : index
      %c0_168 = arith.constant 0 : index
      %371 = vector.load %arg26[%c0_167, %c0_168] : memref<32x48xf32, #tpu.memory_space<vmem>>, vector<32x48xf32>
      %372 = arith.truncf %366 : vector<8x32xf32> to vector<8x32xbf16>
      %373 = arith.truncf %371 : vector<32x48xf32> to vector<32x48xbf16>
      %cst_169 = arith.constant dense<0.000000e+00> : vector<8x48xf32>
      %374 = tpu.matmul %372, %373, %cst_169 {dimension_numbers = #tpu.dot_dimension_numbers<[1], [0], [0], [1], [0, 0, 1, 1], [], []>} : vector<8x32xbf16>, vector<32x48xbf16>, vector<8x48xf32> -> vector<8x48xf32>
      %c0_170 = arith.constant 0 : index
      %c0_171 = arith.constant 0 : index
      %375 = vector.load %arg27[%c0_170, %c0_171] : memref<1x48xf32, #tpu.memory_space<vmem>>, vector<1x48xf32>
      %376 = vector.broadcast %375 : vector<1x48xf32> to vector<8x48xf32>
      %377 = arith.addf %374, %376 : vector<8x48xf32>
      %c0_172 = arith.constant 0 : index
      %c0_173 = arith.constant 0 : index
      %c0_174 = arith.constant 0 : index
      %378 = vector.load %arg28[%c0_172, %c0_173, %c0_174] : memref<1x8x48xf32, #tpu.memory_space<vmem>>, vector<1x8x48xf32>
      %379 = vector.shape_cast %378 : vector<1x8x48xf32> to vector<8x48xf32>
      %380 = vector.shape_cast %377 : vector<8x48xf32> to vector<1x8x48xf32>
      tpu.vector_store %arg28[%c0_172, %c0_173, %c0_174], %380 {strides = array<i32>} : memref<1x8x48xf32, #tpu.memory_space<vmem>>, vector<1x8x48xf32>,
    } else {
    }
    return
  }
  func.func @transform_0(%arg0: i32, %arg1: i32) -> (i32, i32, i32) {
    %c0_i32 = arith.constant 0 : i32
    %c0_i32_0 = arith.constant 0 : i32
    %c0_i32_1 = arith.constant 0 : i32
    return %arg0, %c0_i32, %c0_i32_0 : i32, i32, i32
  }
  func.func @transform_1(%arg0: i32, %arg1: i32) -> (i32, i32, i32) {
    %c0_i32 = arith.constant 0 : i32
    %c0_i32_0 = arith.constant 0 : i32
    %c0_i32_1 = arith.constant 0 : i32
    return %arg0, %c0_i32, %c0_i32_0 : i32, i32, i32
  }
  func.func @transform_2(%arg0: i32, %arg1: i32) -> (i32, i32, i32) {
    %c0_i32 = arith.constant 0 : i32
    %c0_i32_0 = arith.constant 0 : i32
    %c0_i32_1 = arith.constant 0 : i32
    return %arg0, %c0_i32, %c0_i32_0 : i32, i32, i32
  }
  func.func @transform_3(%arg0: i32, %arg1: i32) -> (i32, i32, i32) {
    %c0_i32 = arith.constant 0 : i32
    %c0_i32_0 = arith.constant 0 : i32
    %c0_i32_1 = arith.constant 0 : i32
    return %arg0, %c0_i32, %c0_i32_0 : i32, i32, i32
  }
  func.func @transform_4(%arg0: i32, %arg1: i32) -> (i32, i32, i32) {
    %c0_i32 = arith.constant 0 : i32
    %c0_i32_0 = arith.constant 0 : i32
    %c0_i32_1 = arith.constant 0 : i32
    return %arg1, %c0_i32, %c0_i32_0 : i32, i32, i32
  }
  func.func @transform_5(%arg0: i32, %arg1: i32) -> (i32, i32, i32) {
    %c0_i32 = arith.constant 0 : i32
    %c0_i32_0 = arith.constant 0 : i32
    %c0_i32_1 = arith.constant 0 : i32
    return %arg1, %c0_i32, %c0_i32_0 : i32, i32, i32
  }
  func.func @transform_6(%arg0: i32, %arg1: i32) -> (i32, i32, i32) {
    %c0_i32 = arith.constant 0 : i32
    %c0_i32_0 = arith.constant 0 : i32
    %c0_i32_1 = arith.constant 0 : i32
    return %arg1, %c0_i32, %c0_i32_0 : i32, i32, i32
  }
  func.func @transform_7(%arg0: i32, %arg1: i32) -> (i32, i32, i32) {
    %c0_i32 = arith.constant 0 : i32
    %c0_i32_0 = arith.constant 0 : i32
    %c0_i32_1 = arith.constant 0 : i32
    return %arg1, %c0_i32, %c0_i32_0 : i32, i32, i32
  }
  func.func @transform_8(%arg0: i32, %arg1: i32) -> (i32, i32, i32) {
    %c0_i32 = arith.constant 0 : i32
    %c0_i32_0 = arith.constant 0 : i32
    %c0_i32_1 = arith.constant 0 : i32
    return %arg1, %c0_i32, %c0_i32_0 : i32, i32, i32
  }
  func.func @transform_9(%arg0: i32, %arg1: i32) -> (i32, i32, i32) {
    %c0_i32 = arith.constant 0 : i32
    %c0_i32_0 = arith.constant 0 : i32
    %c0_i32_1 = arith.constant 0 : i32
    return %arg1, %c0_i32, %c0_i32_0 : i32, i32, i32
  }
  func.func @transform_10(%arg0: i32, %arg1: i32) -> (i32, i32, i32) {
    %c0_i32 = arith.constant 0 : i32
    %c0_i32_0 = arith.constant 0 : i32
    %c0_i32_1 = arith.constant 0 : i32
    return %arg1, %c0_i32, %c0_i32_0 : i32, i32, i32
  }
  func.func @transform_11(%arg0: i32, %arg1: i32) -> (i32, i32, i32) {
    %c0_i32 = arith.constant 0 : i32
    %c0_i32_0 = arith.constant 0 : i32
    %c0_i32_1 = arith.constant 0 : i32
    return %arg1, %c0_i32, %c0_i32_0 : i32, i32, i32
  }
  func.func @transform_12(%arg0: i32, %arg1: i32) -> (i32, i32, i32) {
    %c0_i32 = arith.constant 0 : i32
    %c0_i32_0 = arith.constant 0 : i32
    %c0_i32_1 = arith.constant 0 : i32
    return %arg1, %c0_i32, %c0_i32_0 : i32, i32, i32
  }
  func.func @transform_13(%arg0: i32, %arg1: i32) -> (i32, i32, i32) {
    %c0_i32 = arith.constant 0 : i32
    %c0_i32_0 = arith.constant 0 : i32
    %c0_i32_1 = arith.constant 0 : i32
    return %arg1, %c0_i32, %c0_i32_0 : i32, i32, i32
  }
  func.func @transform_14(%arg0: i32, %arg1: i32) -> (i32, i32, i32) {
    %c0_i32 = arith.constant 0 : i32
    %c0_i32_0 = arith.constant 0 : i32
    %c0_i32_1 = arith.constant 0 : i32
    return %arg1, %c0_i32, %c0_i32_0 : i32, i32, i32
  }
  func.func @transform_15(%arg0: i32, %arg1: i32) -> (i32, i32, i32) {
    %c0_i32 = arith.constant 0 : i32
    %c0_i32_0 = arith.constant 0 : i32
    %c0_i32_1 = arith.constant 0 : i32
    return %arg1, %c0_i32, %c0_i32_0 : i32, i32, i32
  }
  func.func @transform_16(%arg0: i32, %arg1: i32) -> (i32, i32, i32) {
    %c0_i32 = arith.constant 0 : i32
    %c0_i32_0 = arith.constant 0 : i32
    %c0_i32_1 = arith.constant 0 : i32
    return %arg1, %c0_i32, %c0_i32_0 : i32, i32, i32
  }
  func.func @transform_17(%arg0: i32, %arg1: i32) -> (i32, i32, i32) {
    %c0_i32 = arith.constant 0 : i32
    %c0_i32_0 = arith.constant 0 : i32
    %c0_i32_1 = arith.constant 0 : i32
    return %arg1, %c0_i32, %c0_i32_0 : i32, i32, i32
  }
  func.func @transform_18(%arg0: i32, %arg1: i32) -> (i32, i32, i32) {
    %c0_i32 = arith.constant 0 : i32
    %c0_i32_0 = arith.constant 0 : i32
    %c0_i32_1 = arith.constant 0 : i32
    return %arg1, %c0_i32, %c0_i32_0 : i32, i32, i32
  }
  func.func @transform_19(%arg0: i32, %arg1: i32) -> (i32, i32, i32) {
    %c0_i32 = arith.constant 0 : i32
    %c0_i32_0 = arith.constant 0 : i32
    %c0_i32_1 = arith.constant 0 : i32
    return %arg1, %c0_i32, %c0_i32_0 : i32, i32, i32
  }
  func.func @transform_20(%arg0: i32, %arg1: i32) -> (i32, i32, i32) {
    %c0_i32 = arith.constant 0 : i32
    %c0_i32_0 = arith.constant 0 : i32
    %c0_i32_1 = arith.constant 0 : i32
    return %arg1, %c0_i32, %c0_i32_0 : i32, i32, i32
  }
  func.func @transform_21(%arg0: i32, %arg1: i32) -> (i32, i32, i32) {
    %c0_i32 = arith.constant 0 : i32
    %c0_i32_0 = arith.constant 0 : i32
    %c0_i32_1 = arith.constant 0 : i32
    return %arg1, %c0_i32, %c0_i32_0 : i32, i32, i32
  }
  func.func @transform_22(%arg0: i32, %arg1: i32) -> (i32, i32, i32) {
    %c0_i32 = arith.constant 0 : i32
    %c0_i32_0 = arith.constant 0 : i32
    %c0_i32_1 = arith.constant 0 : i32
    return %arg1, %c0_i32, %c0_i32_0 : i32, i32, i32
  }
  func.func @transform_23(%arg0: i32, %arg1: i32) -> (i32, i32, i32) {
    %c0_i32 = arith.constant 0 : i32
    %c0_i32_0 = arith.constant 0 : i32
    %c0_i32_1 = arith.constant 0 : i32
    return %arg1, %c0_i32, %c0_i32_0 : i32, i32, i32
  }
  func.func @transform_24(%arg0: i32, %arg1: i32) -> (i32, i32) {
    %c0_i32 = arith.constant 0 : i32
    %c0_i32_0 = arith.constant 0 : i32
    %c0_i32_1 = arith.constant 0 : i32
    return %c0_i32, %c0_i32_0 : i32, i32
  }
  func.func @transform_25(%arg0: i32, %arg1: i32) -> (i32, i32) {
    %c0_i32 = arith.constant 0 : i32
    %c0_i32_0 = arith.constant 0 : i32
    %c0_i32_1 = arith.constant 0 : i32
    return %c0_i32, %c0_i32_0 : i32, i32
  }
  func.func @transform_26(%arg0: i32, %arg1: i32) -> (i32, i32, i32) {
    %c0_i32 = arith.constant 0 : i32
    %c0_i32_0 = arith.constant 0 : i32
    %c0_i32_1 = arith.constant 0 : i32
    return %arg0, %c0_i32, %c0_i32_0 : i32, i32, i32
  }
  func.func @transform_27(%arg0: i32, %arg1: i32) -> (i32, i32, i32, i32) {
    %c0_i32 = arith.constant 0 : i32
    %c0_i32_0 = arith.constant 0 : i32
    %c0_i32_1 = arith.constant 0 : i32
    return %arg1, %arg0, %c0_i32, %c0_i32_0 : i32, i32, i32, i32
  }
  func.func @transform_28(%arg0: i32, %arg1: i32) -> (i32, i32, i32, i32) {
    %c0_i32 = arith.constant 0 : i32
    %c0_i32_0 = arith.constant 0 : i32
    %c0_i32_1 = arith.constant 0 : i32
    return %arg1, %arg0, %c0_i32, %c0_i32_0 : i32, i32, i32, i32
  }
}

module attributes {stable_mosaic.version = 11 : i64} {
  func.func @_encoder_kernel(%arg0: i32, %arg1: i32, %arg2: memref<1x8x32xf32, #tpu.memory_space<vmem>>, %arg3: memref<1x8x8xf32, #tpu.memory_space<vmem>>, %arg4: memref<1x32x96xf32, #tpu.memory_space<vmem>>, %arg5: memref<1x1x96xf32, #tpu.memory_space<vmem>>, %arg6: memref<1x32x32xf32, #tpu.memory_space<vmem>>, %arg7: memref<1x1x32xf32, #tpu.memory_space<vmem>>, %arg8: memref<1x32x64xf32, #tpu.memory_space<vmem>>, %arg9: memref<1x1x64xf32, #tpu.memory_space<vmem>>, %arg10: memref<1x64x32xf32, #tpu.memory_space<vmem>>, %arg11: memref<1x1x32xf32, #tpu.memory_space<vmem>>, %arg12: memref<1x1x32xf32, #tpu.memory_space<vmem>>, %arg13: memref<1x1x32xf32, #tpu.memory_space<vmem>>, %arg14: memref<1x1x32xf32, #tpu.memory_space<vmem>>, %arg15: memref<1x1x32xf32, #tpu.memory_space<vmem>>, %arg16: memref<1x8x32xf32, #tpu.memory_space<vmem>>, %arg17: memref<8x32xf32, #tpu.memory_space<vmem>>) attributes {dimension_semantics = [#tpu.dimension_semantics<parallel>, #tpu.dimension_semantics<arbitrary>], iteration_bounds = array<i64: 2, 2>, scalar_prefetch = 0 : i64, scratch_operands = 1 : i64, tpu.core_type = #tpu.core_type<tc>, window_params = [{transform_indices = @transform_0, window_bounds = array<i64: 1, 8, 32>}, {transform_indices = @transform_1, window_bounds = array<i64: 1, 8, 8>}, {transform_indices = @transform_2, window_bounds = array<i64: 1, 32, 96>}, {transform_indices = @transform_3, window_bounds = array<i64: 1, 1, 96>}, {transform_indices = @transform_4, window_bounds = array<i64: 1, 32, 32>}, {transform_indices = @transform_5, window_bounds = array<i64: 1, 1, 32>}, {transform_indices = @transform_6, window_bounds = array<i64: 1, 32, 64>}, {transform_indices = @transform_7, window_bounds = array<i64: 1, 1, 64>}, {transform_indices = @transform_8, window_bounds = array<i64: 1, 64, 32>}, {transform_indices = @transform_9, window_bounds = array<i64: 1, 1, 32>}, {transform_indices = @transform_10, window_bounds = array<i64: 1, 1, 32>}, {transform_indices = @transform_11, window_bounds = array<i64: 1, 1, 32>}, {transform_indices = @transform_12, window_bounds = array<i64: 1, 1, 32>}, {transform_indices = @transform_13, window_bounds = array<i64: 1, 1, 32>}, {transform_indices = @transform_14, window_bounds = array<i64: 1, 8, 32>}]} {
    %c0_i32 = arith.constant 0 : i32
    %0 = arith.cmpi eq, %arg1, %c0_i32 : i32
    %1 = arith.extui %0 : i1 to i32
    %c0_i32_0 = arith.constant 0 : i32
    %2 = arith.cmpi ne, %1, %c0_i32_0 : i32
    scf.if %2 {
      %c0_81 = arith.constant 0 : index
      %c0_82 = arith.constant 0 : index
      %c0_83 = arith.constant 0 : index
      %196 = vector.load %arg2[%c0_81, %c0_82, %c0_83] : memref<1x8x32xf32, #tpu.memory_space<vmem>>, vector<1x8x32xf32>
      %197 = vector.shape_cast %196 : vector<1x8x32xf32> to vector<8x32xf32>
      %c0_84 = arith.constant 0 : index
      %c0_85 = arith.constant 0 : index
      %198 = vector.load %arg17[%c0_84, %c0_85] : memref<8x32xf32, #tpu.memory_space<vmem>>, vector<8x32xf32>
      tpu.vector_store %arg17[%c0_84, %c0_85], %197 {strides = array<i32>} : memref<8x32xf32, #tpu.memory_space<vmem>>, vector<8x32xf32>,
    } else {
    }
    %c0 = arith.constant 0 : index
    %c0_1 = arith.constant 0 : index
    %3 = vector.load %arg17[%c0, %c0_1] : memref<8x32xf32, #tpu.memory_space<vmem>>, vector<8x32xf32>
    %c0_2 = arith.constant 0 : index
    %c0_3 = arith.constant 0 : index
    %c0_4 = arith.constant 0 : index
    %4 = vector.load %arg3[%c0_2, %c0_3, %c0_4] : memref<1x8x8xf32, #tpu.memory_space<vmem>>, vector<1x8x8xf32>
    %5 = vector.shape_cast %4 : vector<1x8x8xf32> to vector<8x8xf32>
    %c0_5 = arith.constant 0 : index
    %c0_6 = arith.constant 0 : index
    %c0_7 = arith.constant 0 : index
    %6 = vector.load %arg4[%c0_5, %c0_6, %c0_7] : memref<1x32x96xf32, #tpu.memory_space<vmem>>, vector<1x32x96xf32>
    %7 = vector.shape_cast %6 : vector<1x32x96xf32> to vector<32x96xf32>
    %8 = arith.truncf %3 : vector<8x32xf32> to vector<8x32xbf16>
    %9 = arith.truncf %7 : vector<32x96xf32> to vector<32x96xbf16>
    %cst = arith.constant dense<0.000000e+00> : vector<8x96xf32>
    %10 = tpu.matmul %8, %9, %cst {dimension_numbers = #tpu.dot_dimension_numbers<[1], [0], [0], [1], [0, 0, 1, 1], [], []>} : vector<8x32xbf16>, vector<32x96xbf16>, vector<8x96xf32> -> vector<8x96xf32>
    %c0_8 = arith.constant 0 : index
    %c0_9 = arith.constant 0 : index
    %c0_10 = arith.constant 0 : index
    %11 = vector.load %arg5[%c0_8, %c0_9, %c0_10] : memref<1x1x96xf32, #tpu.memory_space<vmem>>, vector<1x1x96xf32>
    %12 = vector.shape_cast %11 : vector<1x1x96xf32> to vector<1x96xf32>
    %13 = vector.broadcast %12 : vector<1x96xf32> to vector<8x96xf32>
    %14 = arith.addf %10, %13 : vector<8x96xf32>
    %15 = vector.extract_strided_slice %14 {offsets = [0, 0], sizes = [8, 32], strides = [1, 1]} : vector<8x96xf32> to vector<8x32xf32>
    %16 = vector.extract_strided_slice %14 {offsets = [0, 32], sizes = [8, 32], strides = [1, 1]} : vector<8x96xf32> to vector<8x32xf32>
    %17 = vector.extract_strided_slice %14 {offsets = [0, 64], sizes = [8, 32], strides = [1, 1]} : vector<8x96xf32> to vector<8x32xf32>
    %cst_11 = arith.constant -1.000000e+09 : f32
    %18 = vector.broadcast %cst_11 : f32 to vector<8x8xf32>
    %19 = arith.mulf %5, %18 : vector<8x8xf32>
    %20 = vector.extract_strided_slice %15 {offsets = [0, 0], sizes = [8, 8], strides = [1, 1]} : vector<8x32xf32> to vector<8x8xf32>
    %21 = vector.extract_strided_slice %16 {offsets = [0, 0], sizes = [8, 8], strides = [1, 1]} : vector<8x32xf32> to vector<8x8xf32>
    %22 = vector.extract_strided_slice %17 {offsets = [0, 0], sizes = [8, 8], strides = [1, 1]} : vector<8x32xf32> to vector<8x8xf32>
    %23 = arith.truncf %20 : vector<8x8xf32> to vector<8x8xbf16>
    %24 = arith.truncf %21 : vector<8x8xf32> to vector<8x8xbf16>
    %cst_12 = arith.constant dense<0.000000e+00> : vector<8x8xf32>
    %25 = tpu.matmul %23, %24, %cst_12 {dimension_numbers = #tpu.dot_dimension_numbers<[1], [1], [0], [0], [0, 0, 1, 0], [], []>} : vector<8x8xbf16>, vector<8x8xbf16>, vector<8x8xf32> -> vector<8x8xf32>
    %cst_13 = arith.constant 0.353553385 : f32
    %26 = vector.broadcast %cst_13 : f32 to vector<8x8xf32>
    %27 = arith.mulf %25, %26 : vector<8x8xf32>
    %28 = arith.addf %27, %19 : vector<8x8xf32>
    %cst_14 = arith.constant dense<0xFF800000> : vector<8xf32>
    %29 = vector.multi_reduction <maximumf>, %28, %cst_14 [1] : vector<8x8xf32> to vector<8xf32>
    %30 = vector.shape_cast %29 : vector<8xf32> to vector<8x1xf32>
    %31 = vector.broadcast %30 : vector<8x1xf32> to vector<8x8xf32>
    %32 = arith.subf %28, %31 : vector<8x8xf32>
    %33 = math.exp %32 : vector<8x8xf32>
    %cst_15 = arith.constant dense<0.000000e+00> : vector<8xf32>
    %34 = vector.multi_reduction <add>, %33, %cst_15 [1] : vector<8x8xf32> to vector<8xf32>
    %35 = vector.shape_cast %34 : vector<8xf32> to vector<8x1xf32>
    %36 = tpu.reciprocal %35 {approx = true} : vector<8x1xf32> -> vector<8x1xf32>
    %37 = vector.broadcast %36 : vector<8x1xf32> to vector<8x8xf32>
    %38 = arith.mulf %33, %37 : vector<8x8xf32>
    %39 = arith.truncf %38 : vector<8x8xf32> to vector<8x8xbf16>
    %40 = arith.truncf %22 : vector<8x8xf32> to vector<8x8xbf16>
    %cst_16 = arith.constant dense<0.000000e+00> : vector<8x8xf32>
    %41 = tpu.matmul %39, %40, %cst_16 {dimension_numbers = #tpu.dot_dimension_numbers<[1], [0], [0], [1], [0, 0, 1, 1], [], []>} : vector<8x8xbf16>, vector<8x8xbf16>, vector<8x8xf32> -> vector<8x8xf32>
    %42 = vector.extract_strided_slice %15 {offsets = [0, 8], sizes = [8, 8], strides = [1, 1]} : vector<8x32xf32> to vector<8x8xf32>
    %43 = vector.extract_strided_slice %16 {offsets = [0, 8], sizes = [8, 8], strides = [1, 1]} : vector<8x32xf32> to vector<8x8xf32>
    %44 = vector.extract_strided_slice %17 {offsets = [0, 8], sizes = [8, 8], strides = [1, 1]} : vector<8x32xf32> to vector<8x8xf32>
    %45 = arith.truncf %42 : vector<8x8xf32> to vector<8x8xbf16>
    %46 = arith.truncf %43 : vector<8x8xf32> to vector<8x8xbf16>
    %cst_17 = arith.constant dense<0.000000e+00> : vector<8x8xf32>
    %47 = tpu.matmul %45, %46, %cst_17 {dimension_numbers = #tpu.dot_dimension_numbers<[1], [1], [0], [0], [0, 0, 1, 0], [], []>} : vector<8x8xbf16>, vector<8x8xbf16>, vector<8x8xf32> -> vector<8x8xf32>
    %cst_18 = arith.constant 0.353553385 : f32
    %48 = vector.broadcast %cst_18 : f32 to vector<8x8xf32>
    %49 = arith.mulf %47, %48 : vector<8x8xf32>
    %50 = arith.addf %49, %19 : vector<8x8xf32>
    %cst_19 = arith.constant dense<0xFF800000> : vector<8xf32>
    %51 = vector.multi_reduction <maximumf>, %50, %cst_19 [1] : vector<8x8xf32> to vector<8xf32>
    %52 = vector.shape_cast %51 : vector<8xf32> to vector<8x1xf32>
    %53 = vector.broadcast %52 : vector<8x1xf32> to vector<8x8xf32>
    %54 = arith.subf %50, %53 : vector<8x8xf32>
    %55 = math.exp %54 : vector<8x8xf32>
    %cst_20 = arith.constant dense<0.000000e+00> : vector<8xf32>
    %56 = vector.multi_reduction <add>, %55, %cst_20 [1] : vector<8x8xf32> to vector<8xf32>
    %57 = vector.shape_cast %56 : vector<8xf32> to vector<8x1xf32>
    %58 = tpu.reciprocal %57 {approx = true} : vector<8x1xf32> -> vector<8x1xf32>
    %59 = vector.broadcast %58 : vector<8x1xf32> to vector<8x8xf32>
    %60 = arith.mulf %55, %59 : vector<8x8xf32>
    %61 = arith.truncf %60 : vector<8x8xf32> to vector<8x8xbf16>
    %62 = arith.truncf %44 : vector<8x8xf32> to vector<8x8xbf16>
    %cst_21 = arith.constant dense<0.000000e+00> : vector<8x8xf32>
    %63 = tpu.matmul %61, %62, %cst_21 {dimension_numbers = #tpu.dot_dimension_numbers<[1], [0], [0], [1], [0, 0, 1, 1], [], []>} : vector<8x8xbf16>, vector<8x8xbf16>, vector<8x8xf32> -> vector<8x8xf32>
    %64 = vector.extract_strided_slice %15 {offsets = [0, 16], sizes = [8, 8], strides = [1, 1]} : vector<8x32xf32> to vector<8x8xf32>
    %65 = vector.extract_strided_slice %16 {offsets = [0, 16], sizes = [8, 8], strides = [1, 1]} : vector<8x32xf32> to vector<8x8xf32>
    %66 = vector.extract_strided_slice %17 {offsets = [0, 16], sizes = [8, 8], strides = [1, 1]} : vector<8x32xf32> to vector<8x8xf32>
    %67 = arith.truncf %64 : vector<8x8xf32> to vector<8x8xbf16>
    %68 = arith.truncf %65 : vector<8x8xf32> to vector<8x8xbf16>
    %cst_22 = arith.constant dense<0.000000e+00> : vector<8x8xf32>
    %69 = tpu.matmul %67, %68, %cst_22 {dimension_numbers = #tpu.dot_dimension_numbers<[1], [1], [0], [0], [0, 0, 1, 0], [], []>} : vector<8x8xbf16>, vector<8x8xbf16>, vector<8x8xf32> -> vector<8x8xf32>
    %cst_23 = arith.constant 0.353553385 : f32
    %70 = vector.broadcast %cst_23 : f32 to vector<8x8xf32>
    %71 = arith.mulf %69, %70 : vector<8x8xf32>
    %72 = arith.addf %71, %19 : vector<8x8xf32>
    %cst_24 = arith.constant dense<0xFF800000> : vector<8xf32>
    %73 = vector.multi_reduction <maximumf>, %72, %cst_24 [1] : vector<8x8xf32> to vector<8xf32>
    %74 = vector.shape_cast %73 : vector<8xf32> to vector<8x1xf32>
    %75 = vector.broadcast %74 : vector<8x1xf32> to vector<8x8xf32>
    %76 = arith.subf %72, %75 : vector<8x8xf32>
    %77 = math.exp %76 : vector<8x8xf32>
    %cst_25 = arith.constant dense<0.000000e+00> : vector<8xf32>
    %78 = vector.multi_reduction <add>, %77, %cst_25 [1] : vector<8x8xf32> to vector<8xf32>
    %79 = vector.shape_cast %78 : vector<8xf32> to vector<8x1xf32>
    %80 = tpu.reciprocal %79 {approx = true} : vector<8x1xf32> -> vector<8x1xf32>
    %81 = vector.broadcast %80 : vector<8x1xf32> to vector<8x8xf32>
    %82 = arith.mulf %77, %81 : vector<8x8xf32>
    %83 = arith.truncf %82 : vector<8x8xf32> to vector<8x8xbf16>
    %84 = arith.truncf %66 : vector<8x8xf32> to vector<8x8xbf16>
    %cst_26 = arith.constant dense<0.000000e+00> : vector<8x8xf32>
    %85 = tpu.matmul %83, %84, %cst_26 {dimension_numbers = #tpu.dot_dimension_numbers<[1], [0], [0], [1], [0, 0, 1, 1], [], []>} : vector<8x8xbf16>, vector<8x8xbf16>, vector<8x8xf32> -> vector<8x8xf32>
    %86 = vector.extract_strided_slice %15 {offsets = [0, 24], sizes = [8, 8], strides = [1, 1]} : vector<8x32xf32> to vector<8x8xf32>
    %87 = vector.extract_strided_slice %16 {offsets = [0, 24], sizes = [8, 8], strides = [1, 1]} : vector<8x32xf32> to vector<8x8xf32>
    %88 = vector.extract_strided_slice %17 {offsets = [0, 24], sizes = [8, 8], strides = [1, 1]} : vector<8x32xf32> to vector<8x8xf32>
    %89 = arith.truncf %86 : vector<8x8xf32> to vector<8x8xbf16>
    %90 = arith.truncf %87 : vector<8x8xf32> to vector<8x8xbf16>
    %cst_27 = arith.constant dense<0.000000e+00> : vector<8x8xf32>
    %91 = tpu.matmul %89, %90, %cst_27 {dimension_numbers = #tpu.dot_dimension_numbers<[1], [1], [0], [0], [0, 0, 1, 0], [], []>} : vector<8x8xbf16>, vector<8x8xbf16>, vector<8x8xf32> -> vector<8x8xf32>
    %cst_28 = arith.constant 0.353553385 : f32
    %92 = vector.broadcast %cst_28 : f32 to vector<8x8xf32>
    %93 = arith.mulf %91, %92 : vector<8x8xf32>
    %94 = arith.addf %93, %19 : vector<8x8xf32>
    %cst_29 = arith.constant dense<0xFF800000> : vector<8xf32>
    %95 = vector.multi_reduction <maximumf>, %94, %cst_29 [1] : vector<8x8xf32> to vector<8xf32>
    %96 = vector.shape_cast %95 : vector<8xf32> to vector<8x1xf32>
    %97 = vector.broadcast %96 : vector<8x1xf32> to vector<8x8xf32>
    %98 = arith.subf %94, %97 : vector<8x8xf32>
    %99 = math.exp %98 : vector<8x8xf32>
    %cst_30 = arith.constant dense<0.000000e+00> : vector<8xf32>
    %100 = vector.multi_reduction <add>, %99, %cst_30 [1] : vector<8x8xf32> to vector<8xf32>
    %101 = vector.shape_cast %100 : vector<8xf32> to vector<8x1xf32>
    %102 = tpu.reciprocal %101 {approx = true} : vector<8x1xf32> -> vector<8x1xf32>
    %103 = vector.broadcast %102 : vector<8x1xf32> to vector<8x8xf32>
    %104 = arith.mulf %99, %103 : vector<8x8xf32>
    %105 = arith.truncf %104 : vector<8x8xf32> to vector<8x8xbf16>
    %106 = arith.truncf %88 : vector<8x8xf32> to vector<8x8xbf16>
    %cst_31 = arith.constant dense<0.000000e+00> : vector<8x8xf32>
    %107 = tpu.matmul %105, %106, %cst_31 {dimension_numbers = #tpu.dot_dimension_numbers<[1], [0], [0], [1], [0, 0, 1, 1], [], []>} : vector<8x8xbf16>, vector<8x8xbf16>, vector<8x8xf32> -> vector<8x8xf32>
    %108 = tpu.concatenate %41, %63, %85, %107 in 1 : vector<8x8xf32>, vector<8x8xf32>, vector<8x8xf32>, vector<8x8xf32> -> vector<8x32xf32>
    %c0_32 = arith.constant 0 : index
    %c0_33 = arith.constant 0 : index
    %c0_34 = arith.constant 0 : index
    %109 = vector.load %arg6[%c0_32, %c0_33, %c0_34] : memref<1x32x32xf32, #tpu.memory_space<vmem>>, vector<1x32x32xf32>
    %110 = vector.shape_cast %109 : vector<1x32x32xf32> to vector<32x32xf32>
    %111 = arith.truncf %108 : vector<8x32xf32> to vector<8x32xbf16>
    %112 = arith.truncf %110 : vector<32x32xf32> to vector<32x32xbf16>
    %cst_35 = arith.constant dense<0.000000e+00> : vector<8x32xf32>
    %113 = tpu.matmul %111, %112, %cst_35 {dimension_numbers = #tpu.dot_dimension_numbers<[1], [0], [0], [1], [0, 0, 1, 1], [], []>} : vector<8x32xbf16>, vector<32x32xbf16>, vector<8x32xf32> -> vector<8x32xf32>
    %c0_36 = arith.constant 0 : index
    %c0_37 = arith.constant 0 : index
    %c0_38 = arith.constant 0 : index
    %114 = vector.load %arg7[%c0_36, %c0_37, %c0_38] : memref<1x1x32xf32, #tpu.memory_space<vmem>>, vector<1x1x32xf32>
    %115 = vector.shape_cast %114 : vector<1x1x32xf32> to vector<1x32xf32>
    %116 = vector.broadcast %115 : vector<1x32xf32> to vector<8x32xf32>
    %117 = arith.addf %113, %116 : vector<8x32xf32>
    %118 = arith.addf %3, %117 : vector<8x32xf32>
    %c0_39 = arith.constant 0 : index
    %c0_40 = arith.constant 0 : index
    %c0_41 = arith.constant 0 : index
    %119 = vector.load %arg12[%c0_39, %c0_40, %c0_41] : memref<1x1x32xf32, #tpu.memory_space<vmem>>, vector<1x1x32xf32>
    %120 = vector.shape_cast %119 : vector<1x1x32xf32> to vector<1x32xf32>
    %c0_42 = arith.constant 0 : index
    %c0_43 = arith.constant 0 : index
    %c0_44 = arith.constant 0 : index
    %121 = vector.load %arg13[%c0_42, %c0_43, %c0_44] : memref<1x1x32xf32, #tpu.memory_space<vmem>>, vector<1x1x32xf32>
    %122 = vector.shape_cast %121 : vector<1x1x32xf32> to vector<1x32xf32>
    %cst_45 = arith.constant dense<0.000000e+00> : vector<8xf32>
    %123 = vector.multi_reduction <add>, %118, %cst_45 [1] : vector<8x32xf32> to vector<8xf32>
    %124 = vector.shape_cast %123 : vector<8xf32> to vector<8x1xf32>
    %cst_46 = arith.constant 3.200000e+01 : f32
    %125 = vector.broadcast %cst_46 : f32 to vector<8x1xf32>
    %126 = arith.divf %124, %125 : vector<8x1xf32>
    %127 = vector.broadcast %126 : vector<8x1xf32> to vector<8x32xf32>
    %128 = arith.subf %118, %127 : vector<8x32xf32>
    %129 = arith.mulf %128, %128 : vector<8x32xf32>
    %cst_47 = arith.constant dense<0.000000e+00> : vector<8xf32>
    %130 = vector.multi_reduction <add>, %129, %cst_47 [1] : vector<8x32xf32> to vector<8xf32>
    %131 = vector.shape_cast %130 : vector<8xf32> to vector<8x1xf32>
    %cst_48 = arith.constant 3.200000e+01 : f32
    %132 = vector.broadcast %cst_48 : f32 to vector<8x1xf32>
    %133 = arith.divf %131, %132 : vector<8x1xf32>
    %134 = vector.broadcast %126 : vector<8x1xf32> to vector<8x32xf32>
    %135 = arith.subf %118, %134 : vector<8x32xf32>
    %cst_49 = arith.constant 9.99999997E-7 : f32
    %136 = vector.broadcast %cst_49 : f32 to vector<8x1xf32>
    %137 = arith.addf %133, %136 : vector<8x1xf32>
    %138 = math.rsqrt %137 : vector<8x1xf32>
    %139 = vector.broadcast %138 : vector<8x1xf32> to vector<8x32xf32>
    %140 = arith.mulf %135, %139 : vector<8x32xf32>
    %141 = vector.broadcast %120 : vector<1x32xf32> to vector<8x32xf32>
    %142 = arith.mulf %140, %141 : vector<8x32xf32>
    %143 = vector.broadcast %122 : vector<1x32xf32> to vector<8x32xf32>
    %144 = arith.addf %142, %143 : vector<8x32xf32>
    %c0_50 = arith.constant 0 : index
    %c0_51 = arith.constant 0 : index
    %c0_52 = arith.constant 0 : index
    %145 = vector.load %arg8[%c0_50, %c0_51, %c0_52] : memref<1x32x64xf32, #tpu.memory_space<vmem>>, vector<1x32x64xf32>
    %146 = vector.shape_cast %145 : vector<1x32x64xf32> to vector<32x64xf32>
    %147 = arith.truncf %144 : vector<8x32xf32> to vector<8x32xbf16>
    %148 = arith.truncf %146 : vector<32x64xf32> to vector<32x64xbf16>
    %cst_53 = arith.constant dense<0.000000e+00> : vector<8x64xf32>
    %149 = tpu.matmul %147, %148, %cst_53 {dimension_numbers = #tpu.dot_dimension_numbers<[1], [0], [0], [1], [0, 0, 1, 1], [], []>} : vector<8x32xbf16>, vector<32x64xbf16>, vector<8x64xf32> -> vector<8x64xf32>
    %c0_54 = arith.constant 0 : index
    %c0_55 = arith.constant 0 : index
    %c0_56 = arith.constant 0 : index
    %150 = vector.load %arg9[%c0_54, %c0_55, %c0_56] : memref<1x1x64xf32, #tpu.memory_space<vmem>>, vector<1x1x64xf32>
    %151 = vector.shape_cast %150 : vector<1x1x64xf32> to vector<1x64xf32>
    %152 = vector.broadcast %151 : vector<1x64xf32> to vector<8x64xf32>
    %153 = arith.addf %149, %152 : vector<8x64xf32>
    %cst_57 = arith.constant 0.000000e+00 : f32
    %154 = vector.broadcast %cst_57 : f32 to vector<8x64xf32>
    %155 = arith.maximumf %153, %154 : vector<8x64xf32>
    %c0_58 = arith.constant 0 : index
    %c0_59 = arith.constant 0 : index
    %c0_60 = arith.constant 0 : index
    %156 = vector.load %arg10[%c0_58, %c0_59, %c0_60] : memref<1x64x32xf32, #tpu.memory_space<vmem>>, vector<1x64x32xf32>
    %157 = vector.shape_cast %156 : vector<1x64x32xf32> to vector<64x32xf32>
    %158 = arith.truncf %155 : vector<8x64xf32> to vector<8x64xbf16>
    %159 = arith.truncf %157 : vector<64x32xf32> to vector<64x32xbf16>
    %cst_61 = arith.constant dense<0.000000e+00> : vector<8x32xf32>
    %160 = tpu.matmul %158, %159, %cst_61 {dimension_numbers = #tpu.dot_dimension_numbers<[1], [0], [0], [1], [0, 0, 1, 1], [], []>} : vector<8x64xbf16>, vector<64x32xbf16>, vector<8x32xf32> -> vector<8x32xf32>
    %c0_62 = arith.constant 0 : index
    %c0_63 = arith.constant 0 : index
    %c0_64 = arith.constant 0 : index
    %161 = vector.load %arg11[%c0_62, %c0_63, %c0_64] : memref<1x1x32xf32, #tpu.memory_space<vmem>>, vector<1x1x32xf32>
    %162 = vector.shape_cast %161 : vector<1x1x32xf32> to vector<1x32xf32>
    %163 = vector.broadcast %162 : vector<1x32xf32> to vector<8x32xf32>
    %164 = arith.addf %160, %163 : vector<8x32xf32>
    %165 = arith.addf %144, %164 : vector<8x32xf32>
    %c0_65 = arith.constant 0 : index
    %c0_66 = arith.constant 0 : index
    %c0_67 = arith.constant 0 : index
    %166 = vector.load %arg14[%c0_65, %c0_66, %c0_67] : memref<1x1x32xf32, #tpu.memory_space<vmem>>, vector<1x1x32xf32>
    %167 = vector.shape_cast %166 : vector<1x1x32xf32> to vector<1x32xf32>
    %c0_68 = arith.constant 0 : index
    %c0_69 = arith.constant 0 : index
    %c0_70 = arith.constant 0 : index
    %168 = vector.load %arg15[%c0_68, %c0_69, %c0_70] : memref<1x1x32xf32, #tpu.memory_space<vmem>>, vector<1x1x32xf32>
    %169 = vector.shape_cast %168 : vector<1x1x32xf32> to vector<1x32xf32>
    %cst_71 = arith.constant dense<0.000000e+00> : vector<8xf32>
    %170 = vector.multi_reduction <add>, %165, %cst_71 [1] : vector<8x32xf32> to vector<8xf32>
    %171 = vector.shape_cast %170 : vector<8xf32> to vector<8x1xf32>
    %cst_72 = arith.constant 3.200000e+01 : f32
    %172 = vector.broadcast %cst_72 : f32 to vector<8x1xf32>
    %173 = arith.divf %171, %172 : vector<8x1xf32>
    %174 = vector.broadcast %173 : vector<8x1xf32> to vector<8x32xf32>
    %175 = arith.subf %165, %174 : vector<8x32xf32>
    %176 = arith.mulf %175, %175 : vector<8x32xf32>
    %cst_73 = arith.constant dense<0.000000e+00> : vector<8xf32>
    %177 = vector.multi_reduction <add>, %176, %cst_73 [1] : vector<8x32xf32> to vector<8xf32>
    %178 = vector.shape_cast %177 : vector<8xf32> to vector<8x1xf32>
    %cst_74 = arith.constant 3.200000e+01 : f32
    %179 = vector.broadcast %cst_74 : f32 to vector<8x1xf32>
    %180 = arith.divf %178, %179 : vector<8x1xf32>
    %181 = vector.broadcast %173 : vector<8x1xf32> to vector<8x32xf32>
    %182 = arith.subf %165, %181 : vector<8x32xf32>
    %cst_75 = arith.constant 9.99999997E-7 : f32
    %183 = vector.broadcast %cst_75 : f32 to vector<8x1xf32>
    %184 = arith.addf %180, %183 : vector<8x1xf32>
    %185 = math.rsqrt %184 : vector<8x1xf32>
    %186 = vector.broadcast %185 : vector<8x1xf32> to vector<8x32xf32>
    %187 = arith.mulf %182, %186 : vector<8x32xf32>
    %188 = vector.broadcast %167 : vector<1x32xf32> to vector<8x32xf32>
    %189 = arith.mulf %187, %188 : vector<8x32xf32>
    %190 = vector.broadcast %169 : vector<1x32xf32> to vector<8x32xf32>
    %191 = arith.addf %189, %190 : vector<8x32xf32>
    %c0_76 = arith.constant 0 : index
    %c0_77 = arith.constant 0 : index
    %192 = vector.load %arg17[%c0_76, %c0_77] : memref<8x32xf32, #tpu.memory_space<vmem>>, vector<8x32xf32>
    tpu.vector_store %arg17[%c0_76, %c0_77], %191 {strides = array<i32>} : memref<8x32xf32, #tpu.memory_space<vmem>>, vector<8x32xf32>,
    %c0_78 = arith.constant 0 : index
    %c0_79 = arith.constant 0 : index
    %c0_80 = arith.constant 0 : index
    %193 = vector.load %arg16[%c0_78, %c0_79, %c0_80] : memref<1x8x32xf32, #tpu.memory_space<vmem>>, vector<1x8x32xf32>
    %194 = vector.shape_cast %193 : vector<1x8x32xf32> to vector<8x32xf32>
    %195 = vector.shape_cast %191 : vector<8x32xf32> to vector<1x8x32xf32>
    tpu.vector_store %arg16[%c0_78, %c0_79, %c0_80], %195 {strides = array<i32>} : memref<1x8x32xf32, #tpu.memory_space<vmem>>, vector<1x8x32xf32>,
    return
  }
  func.func @transform_0(%arg0: i32, %arg1: i32) -> (i32, i32, i32) {
    %c0_i32 = arith.constant 0 : i32
    %c0_i32_0 = arith.constant 0 : i32
    %c0_i32_1 = arith.constant 0 : i32
    return %arg0, %c0_i32, %c0_i32_0 : i32, i32, i32
  }
  func.func @transform_1(%arg0: i32, %arg1: i32) -> (i32, i32, i32) {
    %c0_i32 = arith.constant 0 : i32
    %c0_i32_0 = arith.constant 0 : i32
    %c0_i32_1 = arith.constant 0 : i32
    return %arg0, %c0_i32, %c0_i32_0 : i32, i32, i32
  }
  func.func @transform_2(%arg0: i32, %arg1: i32) -> (i32, i32, i32) {
    %c0_i32 = arith.constant 0 : i32
    %c0_i32_0 = arith.constant 0 : i32
    %c0_i32_1 = arith.constant 0 : i32
    return %arg1, %c0_i32, %c0_i32_0 : i32, i32, i32
  }
  func.func @transform_3(%arg0: i32, %arg1: i32) -> (i32, i32, i32) {
    %c0_i32 = arith.constant 0 : i32
    %c0_i32_0 = arith.constant 0 : i32
    %c0_i32_1 = arith.constant 0 : i32
    return %arg1, %c0_i32, %c0_i32_0 : i32, i32, i32
  }
  func.func @transform_4(%arg0: i32, %arg1: i32) -> (i32, i32, i32) {
    %c0_i32 = arith.constant 0 : i32
    %c0_i32_0 = arith.constant 0 : i32
    %c0_i32_1 = arith.constant 0 : i32
    return %arg1, %c0_i32, %c0_i32_0 : i32, i32, i32
  }
  func.func @transform_5(%arg0: i32, %arg1: i32) -> (i32, i32, i32) {
    %c0_i32 = arith.constant 0 : i32
    %c0_i32_0 = arith.constant 0 : i32
    %c0_i32_1 = arith.constant 0 : i32
    return %arg1, %c0_i32, %c0_i32_0 : i32, i32, i32
  }
  func.func @transform_6(%arg0: i32, %arg1: i32) -> (i32, i32, i32) {
    %c0_i32 = arith.constant 0 : i32
    %c0_i32_0 = arith.constant 0 : i32
    %c0_i32_1 = arith.constant 0 : i32
    return %arg1, %c0_i32, %c0_i32_0 : i32, i32, i32
  }
  func.func @transform_7(%arg0: i32, %arg1: i32) -> (i32, i32, i32) {
    %c0_i32 = arith.constant 0 : i32
    %c0_i32_0 = arith.constant 0 : i32
    %c0_i32_1 = arith.constant 0 : i32
    return %arg1, %c0_i32, %c0_i32_0 : i32, i32, i32
  }
  func.func @transform_8(%arg0: i32, %arg1: i32) -> (i32, i32, i32) {
    %c0_i32 = arith.constant 0 : i32
    %c0_i32_0 = arith.constant 0 : i32
    %c0_i32_1 = arith.constant 0 : i32
    return %arg1, %c0_i32, %c0_i32_0 : i32, i32, i32
  }
  func.func @transform_9(%arg0: i32, %arg1: i32) -> (i32, i32, i32) {
    %c0_i32 = arith.constant 0 : i32
    %c0_i32_0 = arith.constant 0 : i32
    %c0_i32_1 = arith.constant 0 : i32
    return %arg1, %c0_i32, %c0_i32_0 : i32, i32, i32
  }
  func.func @transform_10(%arg0: i32, %arg1: i32) -> (i32, i32, i32) {
    %c0_i32 = arith.constant 0 : i32
    %c0_i32_0 = arith.constant 0 : i32
    %c0_i32_1 = arith.constant 0 : i32
    return %arg1, %c0_i32, %c0_i32_0 : i32, i32, i32
  }
  func.func @transform_11(%arg0: i32, %arg1: i32) -> (i32, i32, i32) {
    %c0_i32 = arith.constant 0 : i32
    %c0_i32_0 = arith.constant 0 : i32
    %c0_i32_1 = arith.constant 0 : i32
    return %arg1, %c0_i32, %c0_i32_0 : i32, i32, i32
  }
  func.func @transform_12(%arg0: i32, %arg1: i32) -> (i32, i32, i32) {
    %c0_i32 = arith.constant 0 : i32
    %c0_i32_0 = arith.constant 0 : i32
    %c0_i32_1 = arith.constant 0 : i32
    return %arg1, %c0_i32, %c0_i32_0 : i32, i32, i32
  }
  func.func @transform_13(%arg0: i32, %arg1: i32) -> (i32, i32, i32) {
    %c0_i32 = arith.constant 0 : i32
    %c0_i32_0 = arith.constant 0 : i32
    %c0_i32_1 = arith.constant 0 : i32
    return %arg1, %c0_i32, %c0_i32_0 : i32, i32, i32
  }
  func.func @transform_14(%arg0: i32, %arg1: i32) -> (i32, i32, i32) {
    %c0_i32 = arith.constant 0 : i32
    %c0_i32_0 = arith.constant 0 : i32
    %c0_i32_1 = arith.constant 0 : i32
    return %arg0, %c0_i32, %c0_i32_0 : i32, i32, i32
  }
}

</mosaic_0001>

<llo_original>
// kernel: transformer_forward.3
$region0: #{transformer_forward.3}
  #allocation0 [shape = 'u32[]', space=smem, size = 0x4, offset = 0x4, fixed_abs, tag = 'smem constant byte address 0x4 - core index']
  #allocation1 [shape = 'u32[72,128]{1,0:T(1,128)}', space=vmem, size = 0x9000, scoped, tag = 'internal scratch']
  #allocation2 [shape = 'f32[8,32]{1,0:T(8,128)}', space=vmem, size = 0x1000, scoped, tag = 'scratch operand']
  %s0 = inlined_call_operand.vmem [shape: f32[2,8,32], index: 0, kind: input, shape index: {}]
  %s1 = inlined_call_operand.vmem [shape: f32[2,8,32], index: 1, kind: input, shape index: {}]
  %s2 = inlined_call_operand.vmem [shape: f32[2,8,8], index: 2, kind: input, shape index: {}, may-alias: {2,3}]
  %s3 = inlined_call_operand.vmem [shape: f32[2,8,8], index: 3, kind: input, shape index: {}, may-alias: {2,3}]
  %s4 = inlined_call_operand.vmem [shape: f32[2,32,96], index: 4, kind: input, shape index: {}]
  %s5 = inlined_call_operand.vmem [shape: f32[2,1,96], index: 5, kind: input, shape index: {}]
  %s6 = inlined_call_operand.vmem [shape: f32[2,32,32], index: 6, kind: input, shape index: {}]
  %s7 = inlined_call_operand.vmem [shape: f32[2,1,32], index: 7, kind: input, shape index: {}]
  %s8 = inlined_call_operand.vmem [shape: f32[2,32,32], index: 8, kind: input, shape index: {}]
  %s9 = inlined_call_operand.vmem [shape: f32[2,1,32], index: 9, kind: input, shape index: {}]
  %s10 = inlined_call_operand.vmem [shape: f32[2,32,64], index: 10, kind: input, shape index: {}]
  %s11 = inlined_call_operand.vmem [shape: f32[2,1,64], index: 11, kind: input, shape index: {}]
  %s12 = inlined_call_operand.vmem [shape: f32[2,32,32], index: 12, kind: input, shape index: {}]
  %s13 = inlined_call_operand.vmem [shape: f32[2,1,32], index: 13, kind: input, shape index: {}]
  %s14 = inlined_call_operand.vmem [shape: f32[2,32,64], index: 14, kind: input, shape index: {}]
  %s15 = inlined_call_operand.vmem [shape: f32[2,1,64], index: 15, kind: input, shape index: {}]
  %s16 = inlined_call_operand.vmem [shape: f32[2,64,32], index: 16, kind: input, shape index: {}]
  %s17 = inlined_call_operand.vmem [shape: f32[2,1,32], index: 17, kind: input, shape index: {}]
  %s18 = inlined_call_operand.vmem [shape: f32[2,1,32], index: 18, kind: input, shape index: {}]
  %s19 = inlined_call_operand.vmem [shape: f32[2,1,32], index: 19, kind: input, shape index: {}]
  %s20 = inlined_call_operand.vmem [shape: f32[2,1,32], index: 20, kind: input, shape index: {}]
  %s21 = inlined_call_operand.vmem [shape: f32[2,1,32], index: 21, kind: input, shape index: {}]
  %s22 = inlined_call_operand.vmem [shape: f32[2,1,32], index: 22, kind: input, shape index: {}]
  %s23 = inlined_call_operand.vmem [shape: f32[2,1,32], index: 23, kind: input, shape index: {}]
  %s24 = inlined_call_operand.vmem [shape: f32[32,48], index: 24, kind: input, shape index: {}]
  %s25 = inlined_call_operand.vmem [shape: f32[1,48], index: 25, kind: input, shape index: {}]
  %s26 = inlined_call_operand.hbm [shape: f32[2,8,48], index: 26, kind: output, shape index: {0}]
  %s27 = inlined_call_operand.vmem [shape: f32[2,8,8,8], index: 27, kind: output, shape index: {1}]
  %s28 = inlined_call_operand.vmem [shape: f32[2,8,8,8], index: 28, kind: output, shape index: {2}]
  %29 = xla_tuple %s26, %s27, %s28
  %s30 = sld [smem:[#allocation0]]
  $region161: #{transformer_forward.3} parent=0
    _
  %s32 = ssub.s32 1, %s30
  %s33 = scalar_select 0, %s32, %s30
  $region1: #{transformer_forward.3} parent=0
    #allocation3 [shape = 'u8[8192]{0}', space=vmem, size = 0x2000, scoped, tag = 'output window, operand 0']
    #allocation4 [shape = 's32[2]{0}', space=sflag, size = 0x8, scoped, tag = 'scoped memory for transformer_forward.3']
    %34 = vsyncpa [#allocation4], 0
    %s35 = scalar_lea.sflag [#allocation4], 1
    %36 = vsyncpa %s35, 0
    loop: start=0, step=1, limit=6
    $region2: #{transformer_forward.3} parent=1 // loop_pre_header
      _
    $region3: #{transformer_forward.3} parent=1 // loop_header
      %s38 = sphi 0, %s42
      %p39 = scmp.ge.s32.totalorder %s38, 6
      %s45 = sphi 0, %s57
      %s46 = sphi 0, %s53
      %s47 = sphi 0, %s45
      %s48 = sphi 0, %s46
      %s49 = sphi 0, %s47
      %s50 = sphi 0, %s48
      %s60 = sphi 0, %s62
      %s63 = sphi 0, %s60
      %s64 = sphi 0, %s63
      %s80 = sphi 0, %s64
      %s86 = sphi 0, %s88
      %s89 = sphi 0, %s86
      %s90 = sphi 0, %s89
      %s106 = sphi 0, %s90
      %s112 = sphi 0, %s114
      %s115 = sphi 0, %s112
      %s116 = sphi 0, %s115
      %s132 = sphi 0, %s116
      %s138 = sphi 0, %s140
      %s141 = sphi 0, %s138
      %s142 = sphi 0, %s141
      %s158 = sphi 0, %s142
      %s164 = sphi 0, %s166
      %s167 = sphi 0, %s164
      %s168 = sphi 0, %s167
      %s184 = sphi 0, %s168
      %s190 = sphi 0, %s192
      %s193 = sphi 0, %s190
      %s194 = sphi 0, %s193
      %s210 = sphi 0, %s194
      %s216 = sphi 0, %s218
      %s219 = sphi 0, %s216
      %s220 = sphi 0, %s219
      %s236 = sphi 0, %s220
      %s242 = sphi 0, %s244
      %s245 = sphi 0, %s242
      %s246 = sphi 0, %s245
      %s262 = sphi 0, %s246
      %s268 = sphi 0, %s270
      %s271 = sphi 0, %s268
      %s272 = sphi 0, %s271
      %s288 = sphi 0, %s272
      %s294 = sphi 0, %s296
      %s297 = sphi 0, %s294
      %s298 = sphi 0, %s297
      %s314 = sphi 0, %s298
      %s320 = sphi 0, %s322
      %s323 = sphi 0, %s320
      %s324 = sphi 0, %s323
      %s340 = sphi 0, %s324
      %s346 = sphi 0, %s348
      %s349 = sphi 0, %s346
      %s350 = sphi 0, %s349
      %s366 = sphi 0, %s350
      %s372 = sphi 0, %s374
      %s375 = sphi 0, %s372
      %s376 = sphi 0, %s375
      %s392 = sphi 0, %s376
      %s398 = sphi 0, %s400
      %s401 = sphi 0, %s398
      %s402 = sphi 0, %s401
      %s418 = sphi 0, %s402
      %s424 = sphi 0, %s426
      %s427 = sphi 0, %s424
      %s428 = sphi 0, %s427
      %s444 = sphi 0, %s428
      %s450 = sphi 0, %s452
      %s453 = sphi 0, %s450
      %s454 = sphi 0, %s453
      %s470 = sphi 0, %s454
      %s476 = sphi 0, %s478
      %s479 = sphi 0, %s476
      %s480 = sphi 0, %s479
      %s496 = sphi 0, %s480
      %s502 = sphi 0, %s504
      %s505 = sphi 0, %s502
      %s506 = sphi 0, %s505
      %s522 = sphi 0, %s506
      %s528 = sphi 0, %s530
      %s531 = sphi 0, %s528
      %s532 = sphi 0, %s531
      %s548 = sphi 0, %s532
      %s554 = sphi 0, %s556
      %s557 = sphi 0, %s554
      %s558 = sphi 0, %s557
      %s574 = sphi 0, %s558
      %s580 = sphi 0, %s582
      %s583 = sphi 0, %s580
      %s584 = sphi 0, %s583
      %s600 = sphi 0, %s584
      %s606 = sphi 0, %s608
      %s609 = sphi 0, %s606
      %s610 = sphi 0, %s609
      %s626 = sphi 0, %s610
      %s632 = sphi 0, %s634
      %s635 = sphi 0, %s632
      %s636 = sphi 0, %s635
      %s652 = sphi 0, %s636
      %s658 = sphi 0, %s660
      %s661 = sphi 0, %s658
      %s662 = sphi 0, %s661
      %s678 = sphi 0, %s662
      %s682 = sphi 0, %s682
      %s684 = sphi 0, %s682
      %s685 = sphi 0, %s684
      %s699 = sphi 0, %s685
      %s703 = sphi 0, %s703
      %s705 = sphi 0, %s703
      %s706 = sphi 0, %s705
      %s720 = sphi 0, %s706
      %s726 = sphi 0, %s728
      %s729 = sphi 0, %s726
      %s730 = sphi 0, %s729
      %s746 = sphi 0, %s730
      %s754 = sphi 0, %s756
      %s757 = sphi 0, %s754
      %s758 = sphi 0, %s757
      %s774 = sphi 0, %s758
      %s782 = sphi 0, %s784
      %s785 = sphi 0, %s782
      %s786 = sphi 0, %s785
      %s802 = sphi 0, %s786
    $region4: #{transformer_forward.3} parent=1 // loop_header_branch
      %41 = sbr.rel (%p39) target = $region8
    $region5: #{transformer_forward.3} parent=1 // loop_body
      %s43 = ssub.s32 %s38, 1
      %s44 = ssub.s32 %s38, 2
      %s51 = sadd.s32 1, %s46
      %p52 = scmp.ge.s32.totalorder %s51, 2
      %s53 = scalar_select %p52, 0, %s51
      %s54 = sadd.s32 1, %s45
      %s55 = scalar_select %p52, %s54, %s45
      %p56 = scmp.ge.s32.totalorder %s55, 2
      %s57 = scalar_select %p56, 0, %s55
      %s58 = ssub.s32 %s45, %s57
      %p59 = scmp.eq.s32.totalorder %s58, 0
      %s61 = sadd.s32 %s60, 1
      %s62 = scalar_select %p59, %s60, %s61
      %p65 = pneg %p59
      %p66 = scmp.eq.s32.totalorder %s38, 3
      %p67 = por %p65, %p66
      %p68 = scmp.ne.s32.totalorder %s60, %s63
      %p69 = scmp.eq.s32.totalorder %s38, 0
      %p70 = por %p68, %p69
      %p71 = scmp.ne.s32.totalorder %s60, %s63
      %p72 = scmp.eq.s32.totalorder %s43, 3
      %p73 = por %p71, %p72
      %p74 = scmp.ne.s32.totalorder %s63, %s64
      %p75 = scmp.eq.s32.totalorder %s43, 0
      %p76 = por %p74, %p75
      %p77 = scmp.ne.s32.totalorder %s63, %s64
      %p78 = scmp.eq.s32.totalorder %s44, 3
      %p79 = por %p77, %p78
      %p81 = scmp.ne.s32.totalorder %s64, %s80
      %p82 = scmp.eq.s32.totalorder %s44, 0
      %p83 = por %p81, %p82
      %s84 = ssub.s32 %s45, %s57
      %p85 = scmp.eq.s32.totalorder %s84, 0
      %s87 = sadd.s32 %s86, 1
      %s88 = scalar_select %p85, %s86, %s87
      %p91 = pneg %p85
      %p92 = scmp.eq.s32.totalorder %s38, 3
      %p93 = por %p91, %p92
      %p94 = scmp.ne.s32.totalorder %s86, %s89
      %p95 = scmp.eq.s32.totalorder %s38, 0
      %p96 = por %p94, %p95
      %p97 = scmp.ne.s32.totalorder %s86, %s89
      %p98 = scmp.eq.s32.totalorder %s43, 3
      %p99 = por %p97, %p98
      %p100 = scmp.ne.s32.totalorder %s89, %s90
      %p101 = scmp.eq.s32.totalorder %s43, 0
      %p102 = por %p100, %p101
      %p103 = scmp.ne.s32.totalorder %s89, %s90
      %p104 = scmp.eq.s32.totalorder %s44, 3
      %p105 = por %p103, %p104
      %p107 = scmp.ne.s32.totalorder %s90, %s106
      %p108 = scmp.eq.s32.totalorder %s44, 0
      %p109 = por %p107, %p108
      %s110 = ssub.s32 %s45, %s57
      %p111 = scmp.eq.s32.totalorder %s110, 0
      %s113 = sadd.s32 %s112, 1
      %s114 = scalar_select %p111, %s112, %s113
      %p117 = pneg %p111
      %p118 = scmp.eq.s32.totalorder %s38, 3
      %p119 = por %p117, %p118
      %p120 = scmp.ne.s32.totalorder %s112, %s115
      %p121 = scmp.eq.s32.totalorder %s38, 0
      %p122 = por %p120, %p121
      %p123 = scmp.ne.s32.totalorder %s112, %s115
      %p124 = scmp.eq.s32.totalorder %s43, 3
      %p125 = por %p123, %p124
      %p126 = scmp.ne.s32.totalorder %s115, %s116
      %p127 = scmp.eq.s32.totalorder %s43, 0
      %p128 = por %p126, %p127
      %p129 = scmp.ne.s32.totalorder %s115, %s116
      %p130 = scmp.eq.s32.totalorder %s44, 3
      %p131 = por %p129, %p130
      %p133 = scmp.ne.s32.totalorder %s116, %s132
      %p134 = scmp.eq.s32.totalorder %s44, 0
      %p135 = por %p133, %p134
      %s136 = ssub.s32 %s45, %s57
      %p137 = scmp.eq.s32.totalorder %s136, 0
      %s139 = sadd.s32 %s138, 1
      %s140 = scalar_select %p137, %s138, %s139
      %p143 = pneg %p137
      %p144 = scmp.eq.s32.totalorder %s38, 3
      %p145 = por %p143, %p144
      %p146 = scmp.ne.s32.totalorder %s138, %s141
      %p147 = scmp.eq.s32.totalorder %s38, 0
      %p148 = por %p146, %p147
      %p149 = scmp.ne.s32.totalorder %s138, %s141
      %p150 = scmp.eq.s32.totalorder %s43, 3
      %p151 = por %p149, %p150
      %p152 = scmp.ne.s32.totalorder %s141, %s142
      %p153 = scmp.eq.s32.totalorder %s43, 0
      %p154 = por %p152, %p153
      %p155 = scmp.ne.s32.totalorder %s141, %s142
      %p156 = scmp.eq.s32.totalorder %s44, 3
      %p157 = por %p155, %p156
      %p159 = scmp.ne.s32.totalorder %s142, %s158
      %p160 = scmp.eq.s32.totalorder %s44, 0
      %p161 = por %p159, %p160
      %s162 = ssub.s32 %s46, %s53
      %p163 = scmp.eq.s32.totalorder %s162, 0
      %s165 = sadd.s32 %s164, 1
      %s166 = scalar_select %p163, %s164, %s165
      %p169 = pneg %p163
      %p170 = scmp.eq.s32.totalorder %s38, 3
      %p171 = por %p169, %p170
      %p172 = scmp.ne.s32.totalorder %s164, %s167
      %p173 = scmp.eq.s32.totalorder %s38, 0
      %p174 = por %p172, %p173
      %p175 = scmp.ne.s32.totalorder %s164, %s167
      %p176 = scmp.eq.s32.totalorder %s43, 3
      %p177 = por %p175, %p176
      %p178 = scmp.ne.s32.totalorder %s167, %s168
      %p179 = scmp.eq.s32.totalorder %s43, 0
      %p180 = por %p178, %p179
      %p181 = scmp.ne.s32.totalorder %s167, %s168
      %p182 = scmp.eq.s32.totalorder %s44, 3
      %p183 = por %p181, %p182
      %p185 = scmp.ne.s32.totalorder %s168, %s184
      %p186 = scmp.eq.s32.totalorder %s44, 0
      %p187 = por %p185, %p186
      %s188 = ssub.s32 %s46, %s53
      %p189 = scmp.eq.s32.totalorder %s188, 0
      %s191 = sadd.s32 %s190, 1
      %s192 = scalar_select %p189, %s190, %s191
      %p195 = pneg %p189
      %p196 = scmp.eq.s32.totalorder %s38, 3
      %p197 = por %p195, %p196
      %p198 = scmp.ne.s32.totalorder %s190, %s193
      %p199 = scmp.eq.s32.totalorder %s38, 0
      %p200 = por %p198, %p199
      %p201 = scmp.ne.s32.totalorder %s190, %s193
      %p202 = scmp.eq.s32.totalorder %s43, 3
      %p203 = por %p201, %p202
      %p204 = scmp.ne.s32.totalorder %s193, %s194
      %p205 = scmp.eq.s32.totalorder %s43, 0
      %p206 = por %p204, %p205
      %p207 = scmp.ne.s32.totalorder %s193, %s194
      %p208 = scmp.eq.s32.totalorder %s44, 3
      %p209 = por %p207, %p208
      %p211 = scmp.ne.s32.totalorder %s194, %s210
      %p212 = scmp.eq.s32.totalorder %s44, 0
      %p213 = por %p211, %p212
      %s214 = ssub.s32 %s46, %s53
      %p215 = scmp.eq.s32.totalorder %s214, 0
      %s217 = sadd.s32 %s216, 1
      %s218 = scalar_select %p215, %s216, %s217
      %p221 = pneg %p215
      %p222 = scmp.eq.s32.totalorder %s38, 3
      %p223 = por %p221, %p222
      %p224 = scmp.ne.s32.totalorder %s216, %s219
      %p225 = scmp.eq.s32.totalorder %s38, 0
      %p226 = por %p224, %p225
      %p227 = scmp.ne.s32.totalorder %s216, %s219
      %p228 = scmp.eq.s32.totalorder %s43, 3
      %p229 = por %p227, %p228
      %p230 = scmp.ne.s32.totalorder %s219, %s220
      %p231 = scmp.eq.s32.totalorder %s43, 0
      %p232 = por %p230, %p231
      %p233 = scmp.ne.s32.totalorder %s219, %s220
      %p234 = scmp.eq.s32.totalorder %s44, 3
      %p235 = por %p233, %p234
      %p237 = scmp.ne.s32.totalorder %s220, %s236
      %p238 = scmp.eq.s32.totalorder %s44, 0
      %p239 = por %p237, %p238
      %s240 = ssub.s32 %s46, %s53
      %p241 = scmp.eq.s32.totalorder %s240, 0
      %s243 = sadd.s32 %s242, 1
      %s244 = scalar_select %p241, %s242, %s243
      %p247 = pneg %p241
      %p248 = scmp.eq.s32.totalorder %s38, 3
      %p249 = por %p247, %p248
      %p250 = scmp.ne.s32.totalorder %s242, %s245
      %p251 = scmp.eq.s32.totalorder %s38, 0
      %p252 = por %p250, %p251
      %p253 = scmp.ne.s32.totalorder %s242, %s245
      %p254 = scmp.eq.s32.totalorder %s43, 3
      %p255 = por %p253, %p254
      %p256 = scmp.ne.s32.totalorder %s245, %s246
      %p257 = scmp.eq.s32.totalorder %s43, 0
      %p258 = por %p256, %p257
      %p259 = scmp.ne.s32.totalorder %s245, %s246
      %p260 = scmp.eq.s32.totalorder %s44, 3
      %p261 = por %p259, %p260
      %p263 = scmp.ne.s32.totalorder %s246, %s262
      %p264 = scmp.eq.s32.totalorder %s44, 0
      %p265 = por %p263, %p264
      %s266 = ssub.s32 %s46, %s53
      %p267 = scmp.eq.s32.totalorder %s266, 0
      %s269 = sadd.s32 %s268, 1
      %s270 = scalar_select %p267, %s268, %s269
      %p273 = pneg %p267
      %p274 = scmp.eq.s32.totalorder %s38, 3
      %p275 = por %p273, %p274
      %p276 = scmp.ne.s32.totalorder %s268, %s271
      %p277 = scmp.eq.s32.totalorder %s38, 0
      %p278 = por %p276, %p277
      %p279 = scmp.ne.s32.totalorder %s268, %s271
      %p280 = scmp.eq.s32.totalorder %s43, 3
      %p281 = por %p279, %p280
      %p282 = scmp.ne.s32.totalorder %s271, %s272
      %p283 = scmp.eq.s32.totalorder %s43, 0
      %p284 = por %p282, %p283
      %p285 = scmp.ne.s32.totalorder %s271, %s272
      %p286 = scmp.eq.s32.totalorder %s44, 3
      %p287 = por %p285, %p286
      %p289 = scmp.ne.s32.totalorder %s272, %s288
      %p290 = scmp.eq.s32.totalorder %s44, 0
      %p291 = por %p289, %p290
      %s292 = ssub.s32 %s46, %s53
      %p293 = scmp.eq.s32.totalorder %s292, 0
      %s295 = sadd.s32 %s294, 1
      %s296 = scalar_select %p293, %s294, %s295
      %p299 = pneg %p293
      %p300 = scmp.eq.s32.totalorder %s38, 3
      %p301 = por %p299, %p300
      %p302 = scmp.ne.s32.totalorder %s294, %s297
      %p303 = scmp.eq.s32.totalorder %s38, 0
      %p304 = por %p302, %p303
      %p305 = scmp.ne.s32.totalorder %s294, %s297
      %p306 = scmp.eq.s32.totalorder %s43, 3
      %p307 = por %p305, %p306
      %p308 = scmp.ne.s32.totalorder %s297, %s298
      %p309 = scmp.eq.s32.totalorder %s43, 0
      %p310 = por %p308, %p309
      %p311 = scmp.ne.s32.totalorder %s297, %s298
      %p312 = scmp.eq.s32.totalorder %s44, 3
      %p313 = por %p311, %p312
      %p315 = scmp.ne.s32.totalorder %s298, %s314
      %p316 = scmp.eq.s32.totalorder %s44, 0
      %p317 = por %p315, %p316
      %s318 = ssub.s32 %s46, %s53
      %p319 = scmp.eq.s32.totalorder %s318, 0
      %s321 = sadd.s32 %s320, 1
      %s322 = scalar_select %p319, %s320, %s321
      %p325 = pneg %p319
      %p326 = scmp.eq.s32.totalorder %s38, 3
      %p327 = por %p325, %p326
      %p328 = scmp.ne.s32.totalorder %s320, %s323
      %p329 = scmp.eq.s32.totalorder %s38, 0
      %p330 = por %p328, %p329
      %p331 = scmp.ne.s32.totalorder %s320, %s323
      %p332 = scmp.eq.s32.totalorder %s43, 3
      %p333 = por %p331, %p332
      %p334 = scmp.ne.s32.totalorder %s323, %s324
      %p335 = scmp.eq.s32.totalorder %s43, 0
      %p336 = por %p334, %p335
      %p337 = scmp.ne.s32.totalorder %s323, %s324
      %p338 = scmp.eq.s32.totalorder %s44, 3
      %p339 = por %p337, %p338
      %p341 = scmp.ne.s32.totalorder %s324, %s340
      %p342 = scmp.eq.s32.totalorder %s44, 0
      %p343 = por %p341, %p342
      %s344 = ssub.s32 %s46, %s53
      %p345 = scmp.eq.s32.totalorder %s344, 0
      %s347 = sadd.s32 %s346, 1
      %s348 = scalar_select %p345, %s346, %s347
      %p351 = pneg %p345
      %p352 = scmp.eq.s32.totalorder %s38, 3
      %p353 = por %p351, %p352
      %p354 = scmp.ne.s32.totalorder %s346, %s349
      %p355 = scmp.eq.s32.totalorder %s38, 0
      %p356 = por %p354, %p355
      %p357 = scmp.ne.s32.totalorder %s346, %s349
      %p358 = scmp.eq.s32.totalorder %s43, 3
      %p359 = por %p357, %p358
      %p360 = scmp.ne.s32.totalorder %s349, %s350
      %p361 = scmp.eq.s32.totalorder %s43, 0
      %p362 = por %p360, %p361
      %p363 = scmp.ne.s32.totalorder %s349, %s350
      %p364 = scmp.eq.s32.totalorder %s44, 3
      %p365 = por %p363, %p364
      %p367 = scmp.ne.s32.totalorder %s350, %s366
      %p368 = scmp.eq.s32.totalorder %s44, 0
      %p369 = por %p367, %p368
      %s370 = ssub.s32 %s46, %s53
      %p371 = scmp.eq.s32.totalorder %s370, 0
      %s373 = sadd.s32 %s372, 1
      %s374 = scalar_select %p371, %s372, %s373
      %p377 = pneg %p371
      %p378 = scmp.eq.s32.totalorder %s38, 3
      %p379 = por %p377, %p378
      %p380 = scmp.ne.s32.totalorder %s372, %s375
      %p381 = scmp.eq.s32.totalorder %s38, 0
      %p382 = por %p380, %p381
      %p383 = scmp.ne.s32.totalorder %s372, %s375
      %p384 = scmp.eq.s32.totalorder %s43, 3
      %p385 = por %p383, %p384
      %p386 = scmp.ne.s32.totalorder %s375, %s376
      %p387 = scmp.eq.s32.totalorder %s43, 0
      %p388 = por %p386, %p387
      %p389 = scmp.ne.s32.totalorder %s375, %s376
      %p390 = scmp.eq.s32.totalorder %s44, 3
      %p391 = por %p389, %p390
      %p393 = scmp.ne.s32.totalorder %s376, %s392
      %p394 = scmp.eq.s32.totalorder %s44, 0
      %p395 = por %p393, %p394
      %s396 = ssub.s32 %s46, %s53
      %p397 = scmp.eq.s32.totalorder %s396, 0
      %s399 = sadd.s32 %s398, 1
      %s400 = scalar_select %p397, %s398, %s399
      %p403 = pneg %p397
      %p404 = scmp.eq.s32.totalorder %s38, 3
      %p405 = por %p403, %p404
      %p406 = scmp.ne.s32.totalorder %s398, %s401
      %p407 = scmp.eq.s32.totalorder %s38, 0
      %p408 = por %p406, %p407
      %p409 = scmp.ne.s32.totalorder %s398, %s401
      %p410 = scmp.eq.s32.totalorder %s43, 3
      %p411 = por %p409, %p410
      %p412 = scmp.ne.s32.totalorder %s401, %s402
      %p413 = scmp.eq.s32.totalorder %s43, 0
      %p414 = por %p412, %p413
      %p415 = scmp.ne.s32.totalorder %s401, %s402
      %p416 = scmp.eq.s32.totalorder %s44, 3
      %p417 = por %p415, %p416
      %p419 = scmp.ne.s32.totalorder %s402, %s418
      %p420 = scmp.eq.s32.totalorder %s44, 0
      %p421 = por %p419, %p420
      %s422 = ssub.s32 %s46, %s53
      %p423 = scmp.eq.s32.totalorder %s422, 0
      %s425 = sadd.s32 %s424, 1
      %s426 = scalar_select %p423, %s424, %s425
      %p429 = pneg %p423
      %p430 = scmp.eq.s32.totalorder %s38, 3
      %p431 = por %p429, %p430
      %p432 = scmp.ne.s32.totalorder %s424, %s427
      %p433 = scmp.eq.s32.totalorder %s38, 0
      %p434 = por %p432, %p433
      %p435 = scmp.ne.s32.totalorder %s424, %s427
      %p436 = scmp.eq.s32.totalorder %s43, 3
      %p437 = por %p435, %p436
      %p438 = scmp.ne.s32.totalorder %s427, %s428
      %p439 = scmp.eq.s32.totalorder %s43, 0
      %p440 = por %p438, %p439
      %p441 = scmp.ne.s32.totalorder %s427, %s428
      %p442 = scmp.eq.s32.totalorder %s44, 3
      %p443 = por %p441, %p442
      %p445 = scmp.ne.s32.totalorder %s428, %s444
      %p446 = scmp.eq.s32.totalorder %s44, 0
      %p447 = por %p445, %p446
      %s448 = ssub.s32 %s46, %s53
      %p449 = scmp.eq.s32.totalorder %s448, 0
      %s451 = sadd.s32 %s450, 1
      %s452 = scalar_select %p449, %s450, %s451
      %p455 = pneg %p449
      %p456 = scmp.eq.s32.totalorder %s38, 3
      %p457 = por %p455, %p456
      %p458 = scmp.ne.s32.totalorder %s450, %s453
      %p459 = scmp.eq.s32.totalorder %s38, 0
      %p460 = por %p458, %p459
      %p461 = scmp.ne.s32.totalorder %s450, %s453
      %p462 = scmp.eq.s32.totalorder %s43, 3
      %p463 = por %p461, %p462
      %p464 = scmp.ne.s32.totalorder %s453, %s454
      %p465 = scmp.eq.s32.totalorder %s43, 0
      %p466 = por %p464, %p465
      %p467 = scmp.ne.s32.totalorder %s453, %s454
      %p468 = scmp.eq.s32.totalorder %s44, 3
      %p469 = por %p467, %p468
      %p471 = scmp.ne.s32.totalorder %s454, %s470
      %p472 = scmp.eq.s32.totalorder %s44, 0
      %p473 = por %p471, %p472
      %s474 = ssub.s32 %s46, %s53
      %p475 = scmp.eq.s32.totalorder %s474, 0
      %s477 = sadd.s32 %s476, 1
      %s478 = scalar_select %p475, %s476, %s477
      %p481 = pneg %p475
      %p482 = scmp.eq.s32.totalorder %s38, 3
      %p483 = por %p481, %p482
      %p484 = scmp.ne.s32.totalorder %s476, %s479
      %p485 = scmp.eq.s32.totalorder %s38, 0
      %p486 = por %p484, %p485
      %p487 = scmp.ne.s32.totalorder %s476, %s479
      %p488 = scmp.eq.s32.totalorder %s43, 3
      %p489 = por %p487, %p488
      %p490 = scmp.ne.s32.totalorder %s479, %s480
      %p491 = scmp.eq.s32.totalorder %s43, 0
      %p492 = por %p490, %p491
      %p493 = scmp.ne.s32.totalorder %s479, %s480
      %p494 = scmp.eq.s32.totalorder %s44, 3
      %p495 = por %p493, %p494
      %p497 = scmp.ne.s32.totalorder %s480, %s496
      %p498 = scmp.eq.s32.totalorder %s44, 0
      %p499 = por %p497, %p498
      %s500 = ssub.s32 %s46, %s53
      %p501 = scmp.eq.s32.totalorder %s500, 0
      %s503 = sadd.s32 %s502, 1
      %s504 = scalar_select %p501, %s502, %s503
      %p507 = pneg %p501
      %p508 = scmp.eq.s32.totalorder %s38, 3
      %p509 = por %p507, %p508
      %p510 = scmp.ne.s32.totalorder %s502, %s505
      %p511 = scmp.eq.s32.totalorder %s38, 0
      %p512 = por %p510, %p511
      %p513 = scmp.ne.s32.totalorder %s502, %s505
      %p514 = scmp.eq.s32.totalorder %s43, 3
      %p515 = por %p513, %p514
      %p516 = scmp.ne.s32.totalorder %s505, %s506
      %p517 = scmp.eq.s32.totalorder %s43, 0
      %p518 = por %p516, %p517
      %p519 = scmp.ne.s32.totalorder %s505, %s506
      %p520 = scmp.eq.s32.totalorder %s44, 3
      %p521 = por %p519, %p520
      %p523 = scmp.ne.s32.totalorder %s506, %s522
      %p524 = scmp.eq.s32.totalorder %s44, 0
      %p525 = por %p523, %p524
      %s526 = ssub.s32 %s46, %s53
      %p527 = scmp.eq.s32.totalorder %s526, 0
      %s529 = sadd.s32 %s528, 1
      %s530 = scalar_select %p527, %s528, %s529
      %p533 = pneg %p527
      %p534 = scmp.eq.s32.totalorder %s38, 3
      %p535 = por %p533, %p534
      %p536 = scmp.ne.s32.totalorder %s528, %s531
      %p537 = scmp.eq.s32.totalorder %s38, 0
      %p538 = por %p536, %p537
      %p539 = scmp.ne.s32.totalorder %s528, %s531
      %p540 = scmp.eq.s32.totalorder %s43, 3
      %p541 = por %p539, %p540
      %p542 = scmp.ne.s32.totalorder %s531, %s532
      %p543 = scmp.eq.s32.totalorder %s43, 0
      %p544 = por %p542, %p543
      %p545 = scmp.ne.s32.totalorder %s531, %s532
      %p546 = scmp.eq.s32.totalorder %s44, 3
      %p547 = por %p545, %p546
      %p549 = scmp.ne.s32.totalorder %s532, %s548
      %p550 = scmp.eq.s32.totalorder %s44, 0
      %p551 = por %p549, %p550
      %s552 = ssub.s32 %s46, %s53
      %p553 = scmp.eq.s32.totalorder %s552, 0
      %s555 = sadd.s32 %s554, 1
      %s556 = scalar_select %p553, %s554, %s555
      %p559 = pneg %p553
      %p560 = scmp.eq.s32.totalorder %s38, 3
      %p561 = por %p559, %p560
      %p562 = scmp.ne.s32.totalorder %s554, %s557
      %p563 = scmp.eq.s32.totalorder %s38, 0
      %p564 = por %p562, %p563
      %p565 = scmp.ne.s32.totalorder %s554, %s557
      %p566 = scmp.eq.s32.totalorder %s43, 3
      %p567 = por %p565, %p566
      %p568 = scmp.ne.s32.totalorder %s557, %s558
      %p569 = scmp.eq.s32.totalorder %s43, 0
      %p570 = por %p568, %p569
      %p571 = scmp.ne.s32.totalorder %s557, %s558
      %p572 = scmp.eq.s32.totalorder %s44, 3
      %p573 = por %p571, %p572
      %p575 = scmp.ne.s32.totalorder %s558, %s574
      %p576 = scmp.eq.s32.totalorder %s44, 0
      %p577 = por %p575, %p576
      %s578 = ssub.s32 %s46, %s53
      %p579 = scmp.eq.s32.totalorder %s578, 0
      %s581 = sadd.s32 %s580, 1
      %s582 = scalar_select %p579, %s580, %s581
      %p585 = pneg %p579
      %p586 = scmp.eq.s32.totalorder %s38, 3
      %p587 = por %p585, %p586
      %p588 = scmp.ne.s32.totalorder %s580, %s583
      %p589 = scmp.eq.s32.totalorder %s38, 0
      %p590 = por %p588, %p589
      %p591 = scmp.ne.s32.totalorder %s580, %s583
      %p592 = scmp.eq.s32.totalorder %s43, 3
      %p593 = por %p591, %p592
      %p594 = scmp.ne.s32.totalorder %s583, %s584
      %p595 = scmp.eq.s32.totalorder %s43, 0
      %p596 = por %p594, %p595
      %p597 = scmp.ne.s32.totalorder %s583, %s584
      %p598 = scmp.eq.s32.totalorder %s44, 3
      %p599 = por %p597, %p598
      %p601 = scmp.ne.s32.totalorder %s584, %s600
      %p602 = scmp.eq.s32.totalorder %s44, 0
      %p603 = por %p601, %p602
      %s604 = ssub.s32 %s46, %s53
      %p605 = scmp.eq.s32.totalorder %s604, 0
      %s607 = sadd.s32 %s606, 1
      %s608 = scalar_select %p605, %s606, %s607
      %p611 = pneg %p605
      %p612 = scmp.eq.s32.totalorder %s38, 3
      %p613 = por %p611, %p612
      %p614 = scmp.ne.s32.totalorder %s606, %s609
      %p615 = scmp.eq.s32.totalorder %s38, 0
      %p616 = por %p614, %p615
      %p617 = scmp.ne.s32.totalorder %s606, %s609
      %p618 = scmp.eq.s32.totalorder %s43, 3
      %p619 = por %p617, %p618
      %p620 = scmp.ne.s32.totalorder %s609, %s610
      %p621 = scmp.eq.s32.totalorder %s43, 0
      %p622 = por %p620, %p621
      %p623 = scmp.ne.s32.totalorder %s609, %s610
      %p624 = scmp.eq.s32.totalorder %s44, 3
      %p625 = por %p623, %p624
      %p627 = scmp.ne.s32.totalorder %s610, %s626
      %p628 = scmp.eq.s32.totalorder %s44, 0
      %p629 = por %p627, %p628
      %s630 = ssub.s32 %s46, %s53
      %p631 = scmp.eq.s32.totalorder %s630, 0
      %s633 = sadd.s32 %s632, 1
      %s634 = scalar_select %p631, %s632, %s633
      %p637 = pneg %p631
      %p638 = scmp.eq.s32.totalorder %s38, 3
      %p639 = por %p637, %p638
      %p640 = scmp.ne.s32.totalorder %s632, %s635
      %p641 = scmp.eq.s32.totalorder %s38, 0
      %p642 = por %p640, %p641
      %p643 = scmp.ne.s32.totalorder %s632, %s635
      %p644 = scmp.eq.s32.totalorder %s43, 3
      %p645 = por %p643, %p644
      %p646 = scmp.ne.s32.totalorder %s635, %s636
      %p647 = scmp.eq.s32.totalorder %s43, 0
      %p648 = por %p646, %p647
      %p649 = scmp.ne.s32.totalorder %s635, %s636
      %p650 = scmp.eq.s32.totalorder %s44, 3
      %p651 = por %p649, %p650
      %p653 = scmp.ne.s32.totalorder %s636, %s652
      %p654 = scmp.eq.s32.totalorder %s44, 0
      %p655 = por %p653, %p654
      %s656 = ssub.s32 %s46, %s53
      %p657 = scmp.eq.s32.totalorder %s656, 0
      %s659 = sadd.s32 %s658, 1
      %s660 = scalar_select %p657, %s658, %s659
      %p663 = pneg %p657
      %p664 = scmp.eq.s32.totalorder %s38, 3
      %p665 = por %p663, %p664
      %p666 = scmp.ne.s32.totalorder %s658, %s661
      %p667 = scmp.eq.s32.totalorder %s38, 0
      %p668 = por %p666, %p667
      %p669 = scmp.ne.s32.totalorder %s658, %s661
      %p670 = scmp.eq.s32.totalorder %s43, 3
      %p671 = por %p669, %p670
      %p672 = scmp.ne.s32.totalorder %s661, %s662
      %p673 = scmp.eq.s32.totalorder %s43, 0
      %p674 = por %p672, %p673
      %p675 = scmp.ne.s32.totalorder %s661, %s662
      %p676 = scmp.eq.s32.totalorder %s44, 3
      %p677 = por %p675, %p676
      %p679 = scmp.ne.s32.totalorder %s662, %s678
      %p680 = scmp.eq.s32.totalorder %s44, 0
      %p681 = por %p679, %p680
      %s683 = sadd.s32 %s682, 1
      %p686 = scmp.eq.s32.totalorder %s38, 3
      %p687 = scmp.ne.s32.totalorder %s682, %s684
      %p688 = scmp.eq.s32.totalorder %s38, 0
      %p689 = por %p687, %p688
      %p690 = scmp.ne.s32.totalorder %s682, %s684
      %p691 = scmp.eq.s32.totalorder %s43, 3
      %p692 = por %p690, %p691
      %p693 = scmp.ne.s32.totalorder %s684, %s685
      %p694 = scmp.eq.s32.totalorder %s43, 0
      %p695 = por %p693, %p694
      %p696 = scmp.ne.s32.totalorder %s684, %s685
      %p697 = scmp.eq.s32.totalorder %s44, 3
      %p698 = por %p696, %p697
      %p700 = scmp.ne.s32.totalorder %s685, %s699
      %p701 = scmp.eq.s32.totalorder %s44, 0
      %p702 = por %p700, %p701
      %s704 = sadd.s32 %s703, 1
      %p707 = scmp.eq.s32.totalorder %s38, 3
      %p708 = scmp.ne.s32.totalorder %s703, %s705
      %p709 = scmp.eq.s32.totalorder %s38, 0
      %p710 = por %p708, %p709
      %p711 = scmp.ne.s32.totalorder %s703, %s705
      %p712 = scmp.eq.s32.totalorder %s43, 3
      %p713 = por %p711, %p712
      %p714 = scmp.ne.s32.totalorder %s705, %s706
      %p715 = scmp.eq.s32.totalorder %s43, 0
      %p716 = por %p714, %p715
      %p717 = scmp.ne.s32.totalorder %s705, %s706
      %p718 = scmp.eq.s32.totalorder %s44, 3
      %p719 = por %p717, %p718
      %p721 = scmp.ne.s32.totalorder %s706, %s720
      %p722 = scmp.eq.s32.totalorder %s44, 0
      %p723 = por %p721, %p722
      %s724 = ssub.s32 %s45, %s57
      %p725 = scmp.eq.s32.totalorder %s724, 0
      %s727 = sadd.s32 %s726, 1
      %s728 = scalar_select %p725, %s726, %s727
      %p731 = pneg %p725
      %p732 = scmp.eq.s32.totalorder %s38, 3
      %p733 = por %p731, %p732
      %p734 = scmp.ne.s32.totalorder %s726, %s729
      %p735 = scmp.eq.s32.totalorder %s38, 0
      %p736 = por %p734, %p735
      %p737 = scmp.ne.s32.totalorder %s726, %s729
      %p738 = scmp.eq.s32.totalorder %s43, 3
      %p739 = por %p737, %p738
      %p740 = scmp.ne.s32.totalorder %s729, %s730
      %p741 = scmp.eq.s32.totalorder %s43, 0
      %p742 = por %p740, %p741
      %p743 = scmp.ne.s32.totalorder %s729, %s730
      %p744 = scmp.eq.s32.totalorder %s44, 3
      %p745 = por %p743, %p744
      %p747 = scmp.ne.s32.totalorder %s730, %s746
      %p748 = scmp.eq.s32.totalorder %s44, 0
      %p749 = por %p747, %p748
      %s750 = ssub.s32 %s46, %s53
      %s751 = ssub.s32 %s45, %s57
      %s752 = sor.u32 %s750, %s751
      %p753 = scmp.eq.s32.totalorder %s752, 0
      %s755 = sadd.s32 %s754, 1
      %s756 = scalar_select %p753, %s754, %s755
      %p759 = pneg %p753
      %p760 = scmp.eq.s32.totalorder %s38, 3
      %p761 = por %p759, %p760
      %p762 = scmp.ne.s32.totalorder %s754, %s757
      %p763 = scmp.eq.s32.totalorder %s38, 0
      %p764 = por %p762, %p763
      %p765 = scmp.ne.s32.totalorder %s754, %s757
      %p766 = scmp.eq.s32.totalorder %s43, 3
      %p767 = por %p765, %p766
      %p768 = scmp.ne.s32.totalorder %s757, %s758
      %p769 = scmp.eq.s32.totalorder %s43, 0
      %p770 = por %p768, %p769
      %p771 = scmp.ne.s32.totalorder %s757, %s758
      %p772 = scmp.eq.s32.totalorder %s44, 3
      %p773 = por %p771, %p772
      %p775 = scmp.ne.s32.totalorder %s758, %s774
      %p776 = scmp.eq.s32.totalorder %s44, 0
      %p777 = por %p775, %p776
      %s778 = ssub.s32 %s46, %s53
      %s779 = ssub.s32 %s45, %s57
      %s780 = sor.u32 %s778, %s779
      %p781 = scmp.eq.s32.totalorder %s780, 0
      %s783 = sadd.s32 %s782, 1
      %s784 = scalar_select %p781, %s782, %s783
      %p787 = pneg %p781
      %p788 = scmp.eq.s32.totalorder %s38, 3
      %p789 = por %p787, %p788
      %p790 = scmp.ne.s32.totalorder %s782, %s785
      %p791 = scmp.eq.s32.totalorder %s38, 0
      %p792 = por %p790, %p791
      %p793 = scmp.ne.s32.totalorder %s782, %s785
      %p794 = scmp.eq.s32.totalorder %s43, 3
      %p795 = por %p793, %p794
      %p796 = scmp.ne.s32.totalorder %s785, %s786
      %p797 = scmp.eq.s32.totalorder %s43, 0
      %p798 = por %p796, %p797
      %p799 = scmp.ne.s32.totalorder %s785, %s786
      %p800 = scmp.eq.s32.totalorder %s44, 3
      %p801 = por %p799, %p800
      %p803 = scmp.ne.s32.totalorder %s786, %s802
      %p804 = scmp.eq.s32.totalorder %s44, 0
      %p805 = por %p803, %p804
      %p806 = scmp.le.s32.totalorder 1, %s38
      %p807 = scmp.lt.s32.totalorder %s38, 5
      %p808 = pnand %p806, %p807
      %p809 = pneg %p808
      // Predicated region
      $region9: #{transformer_forward.3} parent=5 // pred_check
        _
      $region10: #{transformer_forward.3} parent=5 // pred_check_branch
        %811 = sbr.rel (%p808) target = $region12
      $region11: #{transformer_forward.3} parent=5 // pred_region
        %s812 = ssub.s32 %s38, 1
        // Predicated region
        $region13: #{transformer_forward.3} parent=11 // pred_check
          %p813 = pneg %p695
        $region14: #{transformer_forward.3} parent=11 // pred_check_branch
          %815 = sbr.rel (%p813) target = $region16
        $region15: #{transformer_forward.3} parent=11 // pred_region
          _
        $region16: #{transformer_forward.3} parent=11 // pred_fallthru
          _
        // Predicated region
        $region17: #{transformer_forward.3} parent=11 // pred_check
          %p816 = pneg %p716
        $region18: #{transformer_forward.3} parent=11 // pred_check_branch
          %818 = sbr.rel (%p816) target = $region20
        $region19: #{transformer_forward.3} parent=11 // pred_region
          _
        $region20: #{transformer_forward.3} parent=11 // pred_fallthru
          _
      $region12: #{transformer_forward.3} parent=5 // pred_fallthru
        _
      %p819 = scmp.lt.s32.totalorder %s38, 4
      // Predicated region
      $region21: #{transformer_forward.3} parent=5 // pred_check
        %p820 = pneg %p819
      $region22: #{transformer_forward.3} parent=5 // pred_check_branch
        %822 = sbr.rel (%p820) target = $region24
      $region23: #{transformer_forward.3} parent=5 // pred_region
        // Predicated region
        $region25: #{transformer_forward.3} parent=23 // pred_check
          %p823 = pneg %p70
        $region26: #{transformer_forward.3} parent=23 // pred_check_branch
          %825 = sbr.rel (%p823) target = $region28
        $region27: #{transformer_forward.3} parent=23 // pred_region
          %p826 = scmp.lt.s32.totalorder %s45, 1
          %s827 = scalar_select %p826, %s45, 1
          %s828 = smul.addr %s827, 8
          %s829 = scalar_lea.vmem %s0, %s828
        $region28: #{transformer_forward.3} parent=23 // pred_fallthru
          _
        // Predicated region
        $region29: #{transformer_forward.3} parent=23 // pred_check
          %p830 = pneg %p96
        $region30: #{transformer_forward.3} parent=23 // pred_check_branch
          %832 = sbr.rel (%p830) target = $region32
        $region31: #{transformer_forward.3} parent=23 // pred_region
          %p833 = scmp.lt.s32.totalorder %s45, 1
          %s834 = scalar_select %p833, %s45, 1
          %s835 = smul.addr %s834, 8
          %s836 = scalar_lea.vmem %s1, %s835
        $region32: #{transformer_forward.3} parent=23 // pred_fallthru
          _
        // Predicated region
        $region33: #{transformer_forward.3} parent=23 // pred_check
          %p837 = pneg %p122
        $region34: #{transformer_forward.3} parent=23 // pred_check_branch
          %839 = sbr.rel (%p837) target = $region36
        $region35: #{transformer_forward.3} parent=23 // pred_region
          %p840 = scmp.lt.s32.totalorder %s45, 1
          %s841 = scalar_select %p840, %s45, 1
          %s842 = smul.addr %s841, 8
          %s843 = scalar_lea.vmem %s2, %s842
        $region36: #{transformer_forward.3} parent=23 // pred_fallthru
          _
        // Predicated region
        $region37: #{transformer_forward.3} parent=23 // pred_check
          %p844 = pneg %p148
        $region38: #{transformer_forward.3} parent=23 // pred_check_branch
          %846 = sbr.rel (%p844) target = $region40
        $region39: #{transformer_forward.3} parent=23 // pred_region
          %p847 = scmp.lt.s32.totalorder %s45, 1
          %s848 = scalar_select %p847, %s45, 1
          %s849 = smul.addr %s848, 8
          %s850 = scalar_lea.vmem %s3, %s849
        $region40: #{transformer_forward.3} parent=23 // pred_fallthru
          _
        // Predicated region
        $region41: #{transformer_forward.3} parent=23 // pred_check
          %p851 = pneg %p174
        $region42: #{transformer_forward.3} parent=23 // pred_check_branch
          %853 = sbr.rel (%p851) target = $region44
        $region43: #{transformer_forward.3} parent=23 // pred_region
          %p854 = scmp.lt.s32.totalorder %s46, 1
          %s855 = scalar_select %p854, %s46, 1
          %s856 = smul.addr %s855, 4
          %s857 = smul.addr %s856, 8
          %s858 = scalar_lea.vmem %s4, %s857
        $region44: #{transformer_forward.3} parent=23 // pred_fallthru
          _
        // Predicated region
        $region45: #{transformer_forward.3} parent=23 // pred_check
          %p859 = pneg %p200
        $region46: #{transformer_forward.3} parent=23 // pred_check_branch
          %861 = sbr.rel (%p859) target = $region48
        $region47: #{transformer_forward.3} parent=23 // pred_region
          %p862 = scmp.lt.s32.totalorder %s46, 1
          %s863 = scalar_select %p862, %s46, 1
          %s864 = scalar_lea.vmem %s5, %s863
        $region48: #{transformer_forward.3} parent=23 // pred_fallthru
          _
        // Predicated region
        $region49: #{transformer_forward.3} parent=23 // pred_check
          %p865 = pneg %p226
        $region50: #{transformer_forward.3} parent=23 // pred_check_branch
          %867 = sbr.rel (%p865) target = $region52
        $region51: #{transformer_forward.3} parent=23 // pred_region
          %p868 = scmp.lt.s32.totalorder %s46, 1
          %s869 = scalar_select %p868, %s46, 1
          %s870 = smul.addr %s869, 4
          %s871 = smul.addr %s870, 8
          %s872 = scalar_lea.vmem %s6, %s871
        $region52: #{transformer_forward.3} parent=23 // pred_fallthru
          _
        // Predicated region
        $region53: #{transformer_forward.3} parent=23 // pred_check
          %p873 = pneg %p252
        $region54: #{transformer_forward.3} parent=23 // pred_check_branch
          %875 = sbr.rel (%p873) target = $region56
        $region55: #{transformer_forward.3} parent=23 // pred_region
          %p876 = scmp.lt.s32.totalorder %s46, 1
          %s877 = scalar_select %p876, %s46, 1
          %s878 = scalar_lea.vmem %s7, %s877
        $region56: #{transformer_forward.3} parent=23 // pred_fallthru
          _
        // Predicated region
        $region57: #{transformer_forward.3} parent=23 // pred_check
          %p879 = pneg %p278
        $region58: #{transformer_forward.3} parent=23 // pred_check_branch
          %881 = sbr.rel (%p879) target = $region60
        $region59: #{transformer_forward.3} parent=23 // pred_region
          %p882 = scmp.lt.s32.totalorder %s46, 1
          %s883 = scalar_select %p882, %s46, 1
          %s884 = smul.addr %s883, 4
          %s885 = smul.addr %s884, 8
          %s886 = scalar_lea.vmem %s8, %s885
        $region60: #{transformer_forward.3} parent=23 // pred_fallthru
          _
        // Predicated region
        $region61: #{transformer_forward.3} parent=23 // pred_check
          %p887 = pneg %p304
        $region62: #{transformer_forward.3} parent=23 // pred_check_branch
          %889 = sbr.rel (%p887) target = $region64
        $region63: #{transformer_forward.3} parent=23 // pred_region
          %p890 = scmp.lt.s32.totalorder %s46, 1
          %s891 = scalar_select %p890, %s46, 1
          %s892 = scalar_lea.vmem %s9, %s891
        $region64: #{transformer_forward.3} parent=23 // pred_fallthru
          _
        // Predicated region
        $region65: #{transformer_forward.3} parent=23 // pred_check
          %p893 = pneg %p330
        $region66: #{transformer_forward.3} parent=23 // pred_check_branch
          %895 = sbr.rel (%p893) target = $region68
        $region67: #{transformer_forward.3} parent=23 // pred_region
          %p896 = scmp.lt.s32.totalorder %s46, 1
          %s897 = scalar_select %p896, %s46, 1
          %s898 = smul.addr %s897, 4
          %s899 = smul.addr %s898, 8
          %s900 = scalar_lea.vmem %s10, %s899
        $region68: #{transformer_forward.3} parent=23 // pred_fallthru
          _
        // Predicated region
        $region69: #{transformer_forward.3} parent=23 // pred_check
          %p901 = pneg %p356
        $region70: #{transformer_forward.3} parent=23 // pred_check_branch
          %903 = sbr.rel (%p901) target = $region72
        $region71: #{transformer_forward.3} parent=23 // pred_region
          %p904 = scmp.lt.s32.totalorder %s46, 1
          %s905 = scalar_select %p904, %s46, 1
          %s906 = scalar_lea.vmem %s11, %s905
        $region72: #{transformer_forward.3} parent=23 // pred_fallthru
          _
        // Predicated region
        $region73: #{transformer_forward.3} parent=23 // pred_check
          %p907 = pneg %p382
        $region74: #{transformer_forward.3} parent=23 // pred_check_branch
          %909 = sbr.rel (%p907) target = $region76
        $region75: #{transformer_forward.3} parent=23 // pred_region
          %p910 = scmp.lt.s32.totalorder %s46, 1
          %s911 = scalar_select %p910, %s46, 1
          %s912 = smul.addr %s911, 4
          %s913 = smul.addr %s912, 8
          %s914 = scalar_lea.vmem %s12, %s913
        $region76: #{transformer_forward.3} parent=23 // pred_fallthru
          _
        // Predicated region
        $region77: #{transformer_forward.3} parent=23 // pred_check
          %p915 = pneg %p408
        $region78: #{transformer_forward.3} parent=23 // pred_check_branch
          %917 = sbr.rel (%p915) target = $region80
        $region79: #{transformer_forward.3} parent=23 // pred_region
          %p918 = scmp.lt.s32.totalorder %s46, 1
          %s919 = scalar_select %p918, %s46, 1
          %s920 = scalar_lea.vmem %s13, %s919
        $region80: #{transformer_forward.3} parent=23 // pred_fallthru
          _
        // Predicated region
        $region81: #{transformer_forward.3} parent=23 // pred_check
          %p921 = pneg %p434
        $region82: #{transformer_forward.3} parent=23 // pred_check_branch
          %923 = sbr.rel (%p921) target = $region84
        $region83: #{transformer_forward.3} parent=23 // pred_region
          %p924 = scmp.lt.s32.totalorder %s46, 1
          %s925 = scalar_select %p924, %s46, 1
          %s926 = smul.addr %s925, 4
          %s927 = smul.addr %s926, 8
          %s928 = scalar_lea.vmem %s14, %s927
        $region84: #{transformer_forward.3} parent=23 // pred_fallthru
          _
        // Predicated region
        $region85: #{transformer_forward.3} parent=23 // pred_check
          %p929 = pneg %p460
        $region86: #{transformer_forward.3} parent=23 // pred_check_branch
          %931 = sbr.rel (%p929) target = $region88
        $region87: #{transformer_forward.3} parent=23 // pred_region
          %p932 = scmp.lt.s32.totalorder %s46, 1
          %s933 = scalar_select %p932, %s46, 1
          %s934 = scalar_lea.vmem %s15, %s933
        $region88: #{transformer_forward.3} parent=23 // pred_fallthru
          _
        // Predicated region
        $region89: #{transformer_forward.3} parent=23 // pred_check
          %p935 = pneg %p486
        $region90: #{transformer_forward.3} parent=23 // pred_check_branch
          %937 = sbr.rel (%p935) target = $region92
        $region91: #{transformer_forward.3} parent=23 // pred_region
          %p938 = scmp.lt.s32.totalorder %s46, 1
          %s939 = scalar_select %p938, %s46, 1
          %s940 = smul.addr %s939, 8
          %s941 = smul.addr %s940, 8
          %s942 = scalar_lea.vmem %s16, %s941
        $region92: #{transformer_forward.3} parent=23 // pred_fallthru
          _
        // Predicated region
        $region93: #{transformer_forward.3} parent=23 // pred_check
          %p943 = pneg %p512
        $region94: #{transformer_forward.3} parent=23 // pred_check_branch
          %945 = sbr.rel (%p943) target = $region96
        $region95: #{transformer_forward.3} parent=23 // pred_region
          %p946 = scmp.lt.s32.totalorder %s46, 1
          %s947 = scalar_select %p946, %s46, 1
          %s948 = scalar_lea.vmem %s17, %s947
        $region96: #{transformer_forward.3} parent=23 // pred_fallthru
          _
        // Predicated region
        $region97: #{transformer_forward.3} parent=23 // pred_check
          %p949 = pneg %p538
        $region98: #{transformer_forward.3} parent=23 // pred_check_branch
          %951 = sbr.rel (%p949) target = $region100
        $region99: #{transformer_forward.3} parent=23 // pred_region
          %p952 = scmp.lt.s32.totalorder %s46, 1
          %s953 = scalar_select %p952, %s46, 1
          %s954 = scalar_lea.vmem %s18, %s953
        $region100: #{transformer_forward.3} parent=23 // pred_fallthru
          _
        // Predicated region
        $region101: #{transformer_forward.3} parent=23 // pred_check
          %p955 = pneg %p564
        $region102: #{transformer_forward.3} parent=23 // pred_check_branch
          %957 = sbr.rel (%p955) target = $region104
        $region103: #{transformer_forward.3} parent=23 // pred_region
          %p958 = scmp.lt.s32.totalorder %s46, 1
          %s959 = scalar_select %p958, %s46, 1
          %s960 = scalar_lea.vmem %s19, %s959
        $region104: #{transformer_forward.3} parent=23 // pred_fallthru
          _
        // Predicated region
        $region105: #{transformer_forward.3} parent=23 // pred_check
          %p961 = pneg %p590
        $region106: #{transformer_forward.3} parent=23 // pred_check_branch
          %963 = sbr.rel (%p961) target = $region108
        $region107: #{transformer_forward.3} parent=23 // pred_region
          %p964 = scmp.lt.s32.totalorder %s46, 1
          %s965 = scalar_select %p964, %s46, 1
          %s966 = scalar_lea.vmem %s20, %s965
        $region108: #{transformer_forward.3} parent=23 // pred_fallthru
          _
        // Predicated region
        $region109: #{transformer_forward.3} parent=23 // pred_check
          %p967 = pneg %p616
        $region110: #{transformer_forward.3} parent=23 // pred_check_branch
          %969 = sbr.rel (%p967) target = $region112
        $region111: #{transformer_forward.3} parent=23 // pred_region
          %p970 = scmp.lt.s32.totalorder %s46, 1
          %s971 = scalar_select %p970, %s46, 1
          %s972 = scalar_lea.vmem %s21, %s971
        $region112: #{transformer_forward.3} parent=23 // pred_fallthru
          _
        // Predicated region
        $region113: #{transformer_forward.3} parent=23 // pred_check
          %p973 = pneg %p642
        $region114: #{transformer_forward.3} parent=23 // pred_check_branch
          %975 = sbr.rel (%p973) target = $region116
        $region115: #{transformer_forward.3} parent=23 // pred_region
          %p976 = scmp.lt.s32.totalorder %s46, 1
          %s977 = scalar_select %p976, %s46, 1
          %s978 = scalar_lea.vmem %s22, %s977
        $region116: #{transformer_forward.3} parent=23 // pred_fallthru
          _
        // Predicated region
        $region117: #{transformer_forward.3} parent=23 // pred_check
          %p979 = pneg %p668
        $region118: #{transformer_forward.3} parent=23 // pred_check_branch
          %981 = sbr.rel (%p979) target = $region120
        $region119: #{transformer_forward.3} parent=23 // pred_region
          %p982 = scmp.lt.s32.totalorder %s46, 1
          %s983 = scalar_select %p982, %s46, 1
          %s984 = scalar_lea.vmem %s23, %s983
        $region120: #{transformer_forward.3} parent=23 // pred_fallthru
          _
      $region24: #{transformer_forward.3} parent=5 // pred_fallthru
        _
      %p985 = scmp.le.s32.totalorder 1, %s38
      %p986 = scmp.lt.s32.totalorder %s38, 5
      %p987 = pnand %p985, %p986
      %p988 = pneg %p987
      // Predicated region
      $region121: #{transformer_forward.3} parent=5 // pred_check
        _
      $region122: #{transformer_forward.3} parent=5 // pred_check_branch
        %990 = sbr.rel (%p987) target = $region124
      $region123: #{transformer_forward.3} parent=5 // pred_region
        %s991 = ssub.s32 %s38, 1
        %p992 = scmp.lt.s32.totalorder %s47, 1
        %s993 = scalar_select %p992, %s47, 1
        %s994 = smul.addr %s993, 8
        %s995 = scalar_lea.vmem %s0, %s994
        %p996 = pneg %p76
        %p997 = pneg %p73
        %p998 = scmp.lt.s32.totalorder %s47, 1
        %s999 = scalar_select %p998, %s47, 1
        %s1000 = smul.addr %s999, 8
        %s1001 = scalar_lea.vmem %s1, %s1000
        %p1002 = pneg %p102
        %p1003 = pneg %p99
        %p1004 = scmp.lt.s32.totalorder %s47, 1
        %s1005 = scalar_select %p1004, %s47, 1
        %s1006 = smul.addr %s1005, 8
        %s1007 = scalar_lea.vmem %s2, %s1006
        %p1008 = pneg %p128
        %p1009 = pneg %p125
        %p1010 = scmp.lt.s32.totalorder %s47, 1
        %s1011 = scalar_select %p1010, %s47, 1
        %s1012 = smul.addr %s1011, 8
        %s1013 = scalar_lea.vmem %s3, %s1012
        %p1014 = pneg %p154
        %p1015 = pneg %p151
        %p1016 = scmp.lt.s32.totalorder %s48, 1
        %s1017 = scalar_select %p1016, %s48, 1
        %s1018 = smul.addr %s1017, 4
        %s1019 = smul.addr %s1018, 8
        %s1020 = scalar_lea.vmem %s4, %s1019
        %p1021 = pneg %p180
        %p1022 = pneg %p177
        %p1023 = scmp.lt.s32.totalorder %s48, 1
        %s1024 = scalar_select %p1023, %s48, 1
        %s1025 = scalar_lea.vmem %s5, %s1024
        %p1026 = pneg %p206
        %p1027 = pneg %p203
        %p1028 = scmp.lt.s32.totalorder %s48, 1
        %s1029 = scalar_select %p1028, %s48, 1
        %s1030 = smul.addr %s1029, 4
        %s1031 = smul.addr %s1030, 8
        %s1032 = scalar_lea.vmem %s6, %s1031
        %p1033 = pneg %p232
        %p1034 = pneg %p229
        %p1035 = scmp.lt.s32.totalorder %s48, 1
        %s1036 = scalar_select %p1035, %s48, 1
        %s1037 = scalar_lea.vmem %s7, %s1036
        %p1038 = pneg %p258
        %p1039 = pneg %p255
        %p1040 = scmp.lt.s32.totalorder %s48, 1
        %s1041 = scalar_select %p1040, %s48, 1
        %s1042 = smul.addr %s1041, 4
        %s1043 = smul.addr %s1042, 8
        %s1044 = scalar_lea.vmem %s8, %s1043
        %p1045 = pneg %p284
        %p1046 = pneg %p281
        %p1047 = scmp.lt.s32.totalorder %s48, 1
        %s1048 = scalar_select %p1047, %s48, 1
        %s1049 = scalar_lea.vmem %s9, %s1048
        %p1050 = pneg %p310
        %p1051 = pneg %p307
        %p1052 = scmp.lt.s32.totalorder %s48, 1
        %s1053 = scalar_select %p1052, %s48, 1
        %s1054 = smul.addr %s1053, 4
        %s1055 = smul.addr %s1054, 8
        %s1056 = scalar_lea.vmem %s10, %s1055
        %p1057 = pneg %p336
        %p1058 = pneg %p333
        %p1059 = scmp.lt.s32.totalorder %s48, 1
        %s1060 = scalar_select %p1059, %s48, 1
        %s1061 = scalar_lea.vmem %s11, %s1060
        %p1062 = pneg %p362
        %p1063 = pneg %p359
        %p1064 = scmp.lt.s32.totalorder %s48, 1
        %s1065 = scalar_select %p1064, %s48, 1
        %s1066 = smul.addr %s1065, 4
        %s1067 = smul.addr %s1066, 8
        %s1068 = scalar_lea.vmem %s12, %s1067
        %p1069 = pneg %p388
        %p1070 = pneg %p385
        %p1071 = scmp.lt.s32.totalorder %s48, 1
        %s1072 = scalar_select %p1071, %s48, 1
        %s1073 = scalar_lea.vmem %s13, %s1072
        %p1074 = pneg %p414
        %p1075 = pneg %p411
        %p1076 = scmp.lt.s32.totalorder %s48, 1
        %s1077 = scalar_select %p1076, %s48, 1
        %s1078 = smul.addr %s1077, 4
        %s1079 = smul.addr %s1078, 8
        %s1080 = scalar_lea.vmem %s14, %s1079
        %p1081 = pneg %p440
        %p1082 = pneg %p437
        %p1083 = scmp.lt.s32.totalorder %s48, 1
        %s1084 = scalar_select %p1083, %s48, 1
        %s1085 = scalar_lea.vmem %s15, %s1084
        %p1086 = pneg %p466
        %p1087 = pneg %p463
        %p1088 = scmp.lt.s32.totalorder %s48, 1
        %s1089 = scalar_select %p1088, %s48, 1
        %s1090 = smul.addr %s1089, 8
        %s1091 = smul.addr %s1090, 8
        %s1092 = scalar_lea.vmem %s16, %s1091
        %p1093 = pneg %p492
        %p1094 = pneg %p489
        %p1095 = scmp.lt.s32.totalorder %s48, 1
        %s1096 = scalar_select %p1095, %s48, 1
        %s1097 = scalar_lea.vmem %s17, %s1096
        %p1098 = pneg %p518
        %p1099 = pneg %p515
        %p1100 = scmp.lt.s32.totalorder %s48, 1
        %s1101 = scalar_select %p1100, %s48, 1
        %s1102 = scalar_lea.vmem %s18, %s1101
        %p1103 = pneg %p544
        %p1104 = pneg %p541
        %p1105 = scmp.lt.s32.totalorder %s48, 1
        %s1106 = scalar_select %p1105, %s48, 1
        %s1107 = scalar_lea.vmem %s19, %s1106
        %p1108 = pneg %p570
        %p1109 = pneg %p567
        %p1110 = scmp.lt.s32.totalorder %s48, 1
        %s1111 = scalar_select %p1110, %s48, 1
        %s1112 = scalar_lea.vmem %s20, %s1111
        %p1113 = pneg %p596
        %p1114 = pneg %p593
        %p1115 = scmp.lt.s32.totalorder %s48, 1
        %s1116 = scalar_select %p1115, %s48, 1
        %s1117 = scalar_lea.vmem %s21, %s1116
        %p1118 = pneg %p622
        %p1119 = pneg %p619
        %p1120 = scmp.lt.s32.totalorder %s48, 1
        %s1121 = scalar_select %p1120, %s48, 1
        %s1122 = scalar_lea.vmem %s22, %s1121
        %p1123 = pneg %p648
        %p1124 = pneg %p645
        %p1125 = scmp.lt.s32.totalorder %s48, 1
        %s1126 = scalar_select %p1125, %s48, 1
        %s1127 = scalar_lea.vmem %s23, %s1126
        %p1128 = pneg %p674
        %p1129 = pneg %p671
        %p1130 = pneg %p695
        %p1131 = pneg %p692
        %p1132 = pneg %p716
        %p1133 = pneg %p713
        %p1134 = pneg %p742
        %p1135 = pneg %p739
        %s1136 = sand.u32 %s729, 1
        %s1137 = scalar_lea.sflag [#allocation4], %s1136
        %s1138 = sand.u32 %s729, 1
        %s1139 = smul.addr %s1138, 8
        %s1140 = scalar_lea.vmem [#allocation3], %s1139
        %p1141 = pneg %p770
        %p1142 = pneg %p767
        %s1143 = smul.u32 4, %s47
        %p1144 = scmp.lt.s32.totalorder %s48, 1
        %s1145 = scalar_select %p1144, %s48, 1
        %p1146 = scmp.lt.s32.totalorder %s1143, 7
        %s1147 = scalar_select %p1146, %s1143, 7
        %s1148 = smul.addr %s1145, 8
        %s1149 = sadd.s32 %s1147, %s1148
        %s1150 = smul.addr %s1149, 8
        %s1151 = scalar_lea.vmem %s27, %s1150
        %p1152 = pneg %p798
        %p1153 = pneg %p795
        %s1154 = smul.u32 4, %s47
        %p1155 = scmp.lt.s32.totalorder %s48, 1
        %s1156 = scalar_select %p1155, %s48, 1
        %p1157 = scmp.lt.s32.totalorder %s1154, 7
        %s1158 = scalar_select %p1157, %s1154, 7
        %s1159 = smul.addr %s1156, 8
        %s1160 = sadd.s32 %s1158, %s1159
        %s1161 = smul.addr %s1160, 8
        %s1162 = scalar_lea.vmem %s28, %s1161
        %p1163 = scmp.lt.s32.totalorder %s47, 1
        %s1164 = scalar_select %p1163, %s47, 1
        %s1165 = smul.addr %s1164, 8
        %s1166 = scalar_lea.vmem %s0, %s1165
        %p1167 = scmp.lt.s32.totalorder %s47, 1
        %s1168 = scalar_select %p1167, %s47, 1
        %s1169 = smul.addr %s1168, 8
        %s1170 = scalar_lea.vmem %s1, %s1169
        %p1171 = scmp.lt.s32.totalorder %s47, 1
        %s1172 = scalar_select %p1171, %s47, 1
        %s1173 = smul.addr %s1172, 8
        %s1174 = scalar_lea.vmem %s2, %s1173
        %p1175 = scmp.lt.s32.totalorder %s47, 1
        %s1176 = scalar_select %p1175, %s47, 1
        %s1177 = smul.addr %s1176, 8
        %s1178 = scalar_lea.vmem %s3, %s1177
        %p1179 = scmp.lt.s32.totalorder %s48, 1
        %s1180 = scalar_select %p1179, %s48, 1
        %s1181 = smul.addr %s1180, 4
        %s1182 = smul.addr %s1181, 8
        %s1183 = scalar_lea.vmem %s4, %s1182
        %p1184 = scmp.lt.s32.totalorder %s48, 1
        %s1185 = scalar_select %p1184, %s48, 1
        %s1186 = scalar_lea.vmem %s5, %s1185
        %p1187 = scmp.lt.s32.totalorder %s48, 1
        %s1188 = scalar_select %p1187, %s48, 1
        %s1189 = smul.addr %s1188, 4
        %s1190 = smul.addr %s1189, 8
        %s1191 = scalar_lea.vmem %s6, %s1190
        %p1192 = scmp.lt.s32.totalorder %s48, 1
        %s1193 = scalar_select %p1192, %s48, 1
        %s1194 = scalar_lea.vmem %s7, %s1193
        %p1195 = scmp.lt.s32.totalorder %s48, 1
        %s1196 = scalar_select %p1195, %s48, 1
        %s1197 = smul.addr %s1196, 4
        %s1198 = smul.addr %s1197, 8
        %s1199 = scalar_lea.vmem %s8, %s1198
        %p1200 = scmp.lt.s32.totalorder %s48, 1
        %s1201 = scalar_select %p1200, %s48, 1
        %s1202 = scalar_lea.vmem %s9, %s1201
        %p1203 = scmp.lt.s32.totalorder %s48, 1
        %s1204 = scalar_select %p1203, %s48, 1
        %s1205 = smul.addr %s1204, 4
        %s1206 = smul.addr %s1205, 8
        %s1207 = scalar_lea.vmem %s10, %s1206
        %p1208 = scmp.lt.s32.totalorder %s48, 1
        %s1209 = scalar_select %p1208, %s48, 1
        %s1210 = scalar_lea.vmem %s11, %s1209
        %p1211 = scmp.lt.s32.totalorder %s48, 1
        %s1212 = scalar_select %p1211, %s48, 1
        %s1213 = smul.addr %s1212, 4
        %s1214 = smul.addr %s1213, 8
        %s1215 = scalar_lea.vmem %s12, %s1214
        %p1216 = scmp.lt.s32.totalorder %s48, 1
        %s1217 = scalar_select %p1216, %s48, 1
        %s1218 = scalar_lea.vmem %s13, %s1217
        %p1219 = scmp.lt.s32.totalorder %s48, 1
        %s1220 = scalar_select %p1219, %s48, 1
        %s1221 = smul.addr %s1220, 4
        %s1222 = smul.addr %s1221, 8
        %s1223 = scalar_lea.vmem %s14, %s1222
        %p1224 = scmp.lt.s32.totalorder %s48, 1
        %s1225 = scalar_select %p1224, %s48, 1
        %s1226 = scalar_lea.vmem %s15, %s1225
        %p1227 = scmp.lt.s32.totalorder %s48, 1
        %s1228 = scalar_select %p1227, %s48, 1
        %s1229 = smul.addr %s1228, 8
        %s1230 = smul.addr %s1229, 8
        %s1231 = scalar_lea.vmem %s16, %s1230
        %p1232 = scmp.lt.s32.totalorder %s48, 1
        %s1233 = scalar_select %p1232, %s48, 1
        %s1234 = scalar_lea.vmem %s17, %s1233
        %p1235 = scmp.lt.s32.totalorder %s48, 1
        %s1236 = scalar_select %p1235, %s48, 1
        %s1237 = scalar_lea.vmem %s18, %s1236
        %p1238 = scmp.lt.s32.totalorder %s48, 1
        %s1239 = scalar_select %p1238, %s48, 1
        %s1240 = scalar_lea.vmem %s19, %s1239
        %p1241 = scmp.lt.s32.totalorder %s48, 1
        %s1242 = scalar_select %p1241, %s48, 1
        %s1243 = scalar_lea.vmem %s20, %s1242
        %p1244 = scmp.lt.s32.totalorder %s48, 1
        %s1245 = scalar_select %p1244, %s48, 1
        %s1246 = scalar_lea.vmem %s21, %s1245
        %p1247 = scmp.lt.s32.totalorder %s48, 1
        %s1248 = scalar_select %p1247, %s48, 1
        %s1249 = scalar_lea.vmem %s22, %s1248
        %p1250 = scmp.lt.s32.totalorder %s48, 1
        %s1251 = scalar_select %p1250, %s48, 1
        %s1252 = scalar_lea.vmem %s23, %s1251
        %s1253 = smul.u32 4, %s47
        %p1254 = scmp.lt.s32.totalorder %s48, 1
        %s1255 = scalar_select %p1254, %s48, 1
        %p1256 = scmp.lt.s32.totalorder %s1253, 7
        %s1257 = scalar_select %p1256, %s1253, 7
        %s1258 = smul.addr %s1255, 8
        %s1259 = sadd.s32 %s1257, %s1258
        %s1260 = smul.addr %s1259, 8
        %s1261 = scalar_lea.vmem %s27, %s1260
        %s1262 = smul.u32 4, %s47
        %s1263 = smul.u32 4, %s47
        %p1264 = scmp.lt.s32.totalorder %s48, 1
        %s1265 = scalar_select %p1264, %s48, 1
        %p1266 = scmp.lt.s32.totalorder %s1263, 7
        %s1267 = scalar_select %p1266, %s1263, 7
        %s1268 = smul.addr %s1265, 8
        %s1269 = sadd.s32 %s1267, %s1268
        %s1270 = smul.addr %s1269, 8
        %s1271 = scalar_lea.vmem %s28, %s1270
        %s1272 = smul.u32 4, %s47
        %p1274 = scmp.eq.s32.totalorder %s48, 0
        // Predicated region
        $region125: #{transformer_forward.3} parent=123 // pred_check
          %p1275 = pneg %p1274
        $region126: #{transformer_forward.3} parent=123 // pred_check_branch
          %1277 = sbr.rel (%p1275) target = $region128
        $region127: #{transformer_forward.3} parent=123 // pred_region
          %v1278 = vld [vmem:[%s1166] sm:$0xff]
          %vm1279 = vcmask 261120
          %1280 = vst.msk [vmem:[#allocation2] sm:$0xff] %vm1279, %v1278
        $region128: #{transformer_forward.3} parent=123 // pred_fallthru
          _
        %v1281 = vld [vmem:[#allocation2] sm:$0xff]
        %v1282 = vld [vmem:[%s1170] sm:$0xff]
        %v1283 = vld [vmem:[%s1174] sm:$0xff]
        %v1284 = vld [vmem:[%s1178] sm:$0xff]
        %v1285 = vld [vmem:[%s1183] sm:$0xff]
        %v1286 = vld [vmem:[%s1183 + $0x8] sm:$0xff]
        %v1287 = vld [vmem:[%s1183 + $0x10] sm:$0xff]
        %v1288 = vld [vmem:[%s1183 + $0x18] sm:$0xff]
        %v1289 = vpack.c.bf16 %v1281, %v1281
        %v1290 = vpack.c.bf16 %v1286, %v1285
        %v1291 = vpack.c.bf16 %v1288, %v1287
        %v1292 = vld [vmem:[%s1186] sm:$0x1]
        %v1294 = vperm.slane %v1292, 0
        %vm1296 = vcmask 261120
        %v1298 = vsel %vm1296, %v1289, 0
        %1300 = vmatpush.bf16.msra.mxu0 0
        %1301 = vmatpush.bf16.msra.mxu0 0
        %1302 = vmatpush.bf16.msra.mxu0 0
        %1303 = vmatpush.bf16.msra.mxu0 0
        %1304 = vmatpush.bf16.msra.mxu0 0
        %1305 = vmatpush.bf16.msra.mxu0 0
        %1306 = vmatpush.bf16.msra.mxu0 %v1291
        %1307 = vmatpush.bf16.msra.mxu0 %v1290
        %1308 = vmatmul.bf16.gmra.mxu0 %v1298
        %v1309 = vpop.f32.mrf.mxu0
        %v1310 = vadd.f32 %v1294, %v1309
        %v1311 = vpop.f32.mrf.mxu0
        %1312 = vdwg.mxu0
        %v1313 = vmul.f32 %v1283, -1e+09
        %v1314 = vpack.c.bf16 %v1310, %v1310
        %1316 = vrot.lane.b32.xlu0 %v1314, 96
        %v1317 = vpop.permute.xlu0 %1316
        %vm1318 = vcmask 64512
        %v1320 = vsel %vm1318, %v1314, 0
        %v1323 = vsel %vm1318, %v1317, 0
        %1325 = vmatpush.bf16.xpose.msra.mxu0 0
        %1326 = vmatpush.bf16.xpose.msra.mxu0 0
        %1327 = vmatpush.bf16.xpose.msra.mxu0 0
        %1328 = vmatpush.bf16.xpose.msra.mxu0 0
        %1329 = vmatpush.bf16.xpose.msra.mxu0 0
        %1330 = vmatpush.bf16.xpose.msra.mxu0 0
        %1331 = vmatpush.bf16.xpose.msra.mxu0 0
        %1332 = vmatpush.bf16.xpose.msra.mxu0 %v1323
        %1333 = vmatmul.bf16.gmra.mxu0 %v1320
        %v1334 = vpop.f32.mrf.mxu0
        %v1335 = vadd.f32 0.0, %v1334
        %v1336 = vpop.f32.mrf.mxu0
        %1337 = vdwg.mxu0
        %v1338 = vmul.f32 %v1335, 0.35355338
        %v1339 = vadd.f32 %v1338, %v1313
        %v1340 = vsel %vm1318, %v1339, -inf
        %1341 = vmax.xlane.f32.xlu0 %v1340
        %v1342 = vpop.xlane.xlu0 %1341
        %v1343 = vsub.f32 %v1339, %v1342
        %v1344 = vmul.f32 %v1343, 1.442695
        %v1345 = vpow.pop %v1344
        %v1346 = vsel %vm1318, %v1345, 0.0
        %1347 = vadd.xlane.f32.xlu0 %v1346
        %v1348 = vpop.xlane.xlu0 %1347
        %v1349 = vrcp.pop %v1348
        %v1350 = vmul.f32 %v1345, %v1349
        %1351 = vst.msk [vmem:[%s1261] sm:$0xff] %vm1318, %v1350
        %v1352 = vpack.c.bf16 %v1350, %v1350
        %1353 = vrot.lane.b32.xlu0 %v1314, 64
        %v1354 = vpop.permute.xlu0 %1353
        %v1356 = vsel %vm1318, %v1352, 0
        %vm1358 = vcmask 1043456
        %v1360 = vsel %vm1358, %v1354, 0
        %1362 = vmatpush.bf16.msra.mxu0 0
        %1363 = vmatpush.bf16.msra.mxu0 0
        %1364 = vmatpush.bf16.msra.mxu0 0
        %1365 = vmatpush.bf16.msra.mxu0 0
        %1366 = vmatpush.bf16.msra.mxu0 0
        %1367 = vmatpush.bf16.msra.mxu0 0
        %1368 = vmatpush.bf16.msra.mxu0 0
        %1369 = vmatpush.bf16.msra.mxu0 %v1360
        %1370 = vmatmul.bf16.gmra.mxu0 %v1356
        %v1371 = vpop.f32.mrf.mxu0
        %v1372 = vadd.f32 0.0, %v1371
        %v1373 = vpop.f32.mrf.mxu0
        %1374 = vdwg.mxu0
        %1375 = vrot.lane.b32.xlu0 %v1314, 120
        %v1376 = vpop.permute.xlu0 %1375
        %1377 = vrot.lane.b32.xlu0 %v1314, 88
        %v1378 = vpop.permute.xlu0 %1377
        %v1380 = vsel %vm1318, %v1376, 0
        %v1383 = vsel %vm1318, %v1378, 0
        %1385 = vmatpush.bf16.xpose.msra.mxu0 0
        %1386 = vmatpush.bf16.xpose.msra.mxu0 0
        %1387 = vmatpush.bf16.xpose.msra.mxu0 0
        %1388 = vmatpush.bf16.xpose.msra.mxu0 0
        %1389 = vmatpush.bf16.xpose.msra.mxu0 0
        %1390 = vmatpush.bf16.xpose.msra.mxu0 0
        %1391 = vmatpush.bf16.xpose.msra.mxu0 0
        %1392 = vmatpush.bf16.xpose.msra.mxu0 %v1383
        %1393 = vmatmul.bf16.gmra.mxu0 %v1380
        %v1394 = vpop.f32.mrf.mxu0
        %v1395 = vadd.f32 0.0, %v1394
        %v1396 = vpop.f32.mrf.mxu0
        %1397 = vdwg.mxu0
        %v1398 = vmul.f32 %v1395, 0.35355338
        %v1399 = vadd.f32 %v1398, %v1313
        %v1400 = vsel %vm1318, %v1399, -inf
        %1401 = vmax.xlane.f32.xlu0 %v1400
        %v1402 = vpop.xlane.xlu0 %1401
        %v1403 = vsub.f32 %v1399, %v1402
        %v1404 = vmul.f32 %v1403, 1.442695
        %v1405 = vpow.pop %v1404
        %v1406 = vsel %vm1318, %v1405, 0.0
        %1407 = vadd.xlane.f32.xlu0 %v1406
        %v1408 = vpop.xlane.xlu0 %1407
        %v1409 = vrcp.pop %v1408
        %v1410 = vmul.f32 %v1405, %v1409
        %s1411 = scalar_lea.vmem %s1261, 8
        %1412 = vst.msk [vmem:[%s1411] sm:$0xff] %vm1318, %v1410
        %v1413 = vpack.c.bf16 %v1410, %v1410
        %1414 = vrot.lane.b32.xlu0 %v1314, 56
        %v1415 = vpop.permute.xlu0 %1414
        %v1417 = vsel %vm1318, %v1413, 0
        %v1420 = vsel %vm1358, %v1415, 0
        %1422 = vmatpush.bf16.msra.mxu0 0
        %1423 = vmatpush.bf16.msra.mxu0 0
        %1424 = vmatpush.bf16.msra.mxu0 0
        %1425 = vmatpush.bf16.msra.mxu0 0
        %1426 = vmatpush.bf16.msra.mxu0 0
        %1427 = vmatpush.bf16.msra.mxu0 0
        %1428 = vmatpush.bf16.msra.mxu0 0
        %1429 = vmatpush.bf16.msra.mxu0 %v1420
        %1430 = vmatmul.bf16.gmra.mxu0 %v1417
        %v1431 = vpop.f32.mrf.mxu0
        %v1432 = vadd.f32 0.0, %v1431
        %v1433 = vpop.f32.mrf.mxu0
        %1434 = vdwg.mxu0
        %1435 = vrot.lane.b32.xlu0 %v1314, 112
        %v1436 = vpop.permute.xlu0 %1435
        %1437 = vrot.lane.b32.xlu0 %v1314, 80
        %v1438 = vpop.permute.xlu0 %1437
        %v1440 = vsel %vm1318, %v1436, 0
        %v1443 = vsel %vm1318, %v1438, 0
        %1445 = vmatpush.bf16.xpose.msra.mxu0 0
        %1446 = vmatpush.bf16.xpose.msra.mxu0 0
        %1447 = vmatpush.bf16.xpose.msra.mxu0 0
        %1448 = vmatpush.bf16.xpose.msra.mxu0 0
        %1449 = vmatpush.bf16.xpose.msra.mxu0 0
        %1450 = vmatpush.bf16.xpose.msra.mxu0 0
        %1451 = vmatpush.bf16.xpose.msra.mxu0 0
        %1452 = vmatpush.bf16.xpose.msra.mxu0 %v1443
        %1453 = vmatmul.bf16.gmra.mxu0 %v1440
        %v1454 = vpop.f32.mrf.mxu0
        %v1455 = vadd.f32 0.0, %v1454
        %v1456 = vpop.f32.mrf.mxu0
        %1457 = vdwg.mxu0
        %v1458 = vmul.f32 %v1455, 0.35355338
        %v1459 = vadd.f32 %v1458, %v1313
        %v1460 = vsel %vm1318, %v1459, -inf
        %1461 = vmax.xlane.f32.xlu0 %v1460
        %v1462 = vpop.xlane.xlu0 %1461
        %v1463 = vsub.f32 %v1459, %v1462
        %v1464 = vmul.f32 %v1463, 1.442695
        %v1465 = vpow.pop %v1464
        %v1466 = vsel %vm1318, %v1465, 0.0
        %1467 = vadd.xlane.f32.xlu0 %v1466
        %v1468 = vpop.xlane.xlu0 %1467
        %v1469 = vrcp.pop %v1468
        %v1470 = vmul.f32 %v1465, %v1469
        %s1471 = scalar_lea.vmem %s1261, 16
        %1472 = vst.msk [vmem:[%s1471] sm:$0xff] %vm1318, %v1470
        %v1473 = vpack.c.bf16 %v1470, %v1470
        %1474 = vrot.lane.b32.xlu0 %v1314, 48
        %v1475 = vpop.permute.xlu0 %1474
        %v1477 = vsel %vm1318, %v1473, 0
        %v1480 = vsel %vm1358, %v1475, 0
        %1482 = vmatpush.bf16.msra.mxu0 0
        %1483 = vmatpush.bf16.msra.mxu0 0
        %1484 = vmatpush.bf16.msra.mxu0 0
        %1485 = vmatpush.bf16.msra.mxu0 0
        %1486 = vmatpush.bf16.msra.mxu0 0
        %1487 = vmatpush.bf16.msra.mxu0 0
        %1488 = vmatpush.bf16.msra.mxu0 0
        %1489 = vmatpush.bf16.msra.mxu0 %v1480
        %1490 = vmatmul.bf16.gmra.mxu0 %v1477
        %v1491 = vpop.f32.mrf.mxu0
        %v1492 = vadd.f32 0.0, %v1491
        %v1493 = vpop.f32.mrf.mxu0
        %1494 = vdwg.mxu0
        %1495 = vrot.lane.b32.xlu0 %v1314, 104
        %v1496 = vpop.permute.xlu0 %1495
        %1497 = vrot.lane.b32.xlu0 %v1314, 72
        %v1498 = vpop.permute.xlu0 %1497
        %v1500 = vsel %vm1318, %v1496, 0
        %v1503 = vsel %vm1318, %v1498, 0
        %1505 = vmatpush.bf16.xpose.msra.mxu0 0
        %1506 = vmatpush.bf16.xpose.msra.mxu0 0
        %1507 = vmatpush.bf16.xpose.msra.mxu0 0
        %1508 = vmatpush.bf16.xpose.msra.mxu0 0
        %1509 = vmatpush.bf16.xpose.msra.mxu0 0
        %1510 = vmatpush.bf16.xpose.msra.mxu0 0
        %1511 = vmatpush.bf16.xpose.msra.mxu0 0
        %1512 = vmatpush.bf16.xpose.msra.mxu0 %v1503
        %1513 = vmatmul.bf16.gmra.mxu0 %v1500
        %v1514 = vpop.f32.mrf.mxu0
        %v1515 = vadd.f32 0.0, %v1514
        %v1516 = vpop.f32.mrf.mxu0
        %1517 = vdwg.mxu0
        %v1518 = vmul.f32 %v1515, 0.35355338
        %v1519 = vadd.f32 %v1518, %v1313
        %v1520 = vsel %vm1318, %v1519, -inf
        %1521 = vmax.xlane.f32.xlu0 %v1520
        %v1522 = vpop.xlane.xlu0 %1521
        %v1523 = vsub.f32 %v1519, %v1522
        %v1524 = vmul.f32 %v1523, 1.442695
        %v1525 = vpow.pop %v1524
        %v1526 = vsel %vm1318, %v1525, 0.0
        %1527 = vadd.xlane.f32.xlu0 %v1526
        %v1528 = vpop.xlane.xlu0 %1527
        %v1529 = vrcp.pop %v1528
        %v1530 = vmul.f32 %v1525, %v1529
        %s1531 = scalar_lea.vmem %s1261, 24
        %1532 = vst.msk [vmem:[%s1531] sm:$0xff] %vm1318, %v1530
        %v1533 = vpack.c.bf16 %v1530, %v1530
        %1534 = vrot.lane.b32.xlu0 %v1314, 40
        %v1535 = vpop.permute.xlu0 %1534
        %v1537 = vsel %vm1318, %v1533, 0
        %v1540 = vsel %vm1358, %v1535, 0
        %1542 = vmatpush.bf16.msra.mxu0 0
        %1543 = vmatpush.bf16.msra.mxu0 0
        %1544 = vmatpush.bf16.msra.mxu0 0
        %1545 = vmatpush.bf16.msra.mxu0 0
        %1546 = vmatpush.bf16.msra.mxu0 0
        %1547 = vmatpush.bf16.msra.mxu0 0
        %1548 = vmatpush.bf16.msra.mxu0 0
        %1549 = vmatpush.bf16.msra.mxu0 %v1540
        %1550 = vmatmul.bf16.gmra.mxu0 %v1537
        %v1551 = vpop.f32.mrf.mxu0
        %v1552 = vadd.f32 0.0, %v1551
        %v1553 = vpop.f32.mrf.mxu0
        %1554 = vdwg.mxu0
        %1556 = vrot.lane.b32.xlu0 %v1432, 8
        %v1557 = vpop.permute.xlu0 %1556
        %1560 = vrot.lane.b32.xlu0 %v1492, 16
        %v1561 = vpop.permute.xlu0 %1560
        %1564 = vrot.lane.b32.xlu0 %v1552, 24
        %v1565 = vpop.permute.xlu0 %1564
        %v1567 = vsel %vm1318, %v1372, %v1557
        %vm1568 = vcmask 130048
        %v1569 = vsel %vm1568, %v1567, %v1561
        %vm1570 = vcmask 195584
        %v1571 = vsel %vm1570, %v1569, %v1565
        %v1572 = vld [vmem:[%s1191] sm:$0xff]
        %v1573 = vld [vmem:[%s1191 + $0x8] sm:$0xff]
        %v1574 = vld [vmem:[%s1191 + $0x10] sm:$0xff]
        %v1575 = vld [vmem:[%s1191 + $0x18] sm:$0xff]
        %v1576 = vpack.c.bf16 %v1571, %v1571
        %v1577 = vpack.c.bf16 %v1573, %v1572
        %v1578 = vpack.c.bf16 %v1575, %v1574
        %v1579 = vld [vmem:[%s1194] sm:$0x1]
        %v1581 = vperm.slane %v1579, 0
        %v1584 = vsel %vm1296, %v1576, 0
        %1586 = vmatpush.bf16.msra.mxu0 0
        %1587 = vmatpush.bf16.msra.mxu0 0
        %1588 = vmatpush.bf16.msra.mxu0 0
        %1589 = vmatpush.bf16.msra.mxu0 0
        %1590 = vmatpush.bf16.msra.mxu0 0
        %1591 = vmatpush.bf16.msra.mxu0 0
        %1592 = vmatpush.bf16.msra.mxu0 %v1578
        %1593 = vmatpush.bf16.msra.mxu0 %v1577
        %1594 = vmatmul.bf16.gmra.mxu0 %v1584
        %v1595 = vpop.f32.mrf.mxu0
        %v1596 = vadd.f32 %v1581, %v1595
        %v1597 = vpop.f32.mrf.mxu0
        %1598 = vdwg.mxu0
        %v1599 = vadd.f32 %v1281, %v1596
        %v1600 = vld [vmem:[%s1237] sm:$0x1]
        %v1601 = vld [vmem:[%s1240] sm:$0x1]
        %v1602 = vsel %vm1296, %v1599, 0.0
        %1603 = vadd.xlane.f32.xlu0 %v1602
        %v1604 = vpop.xlane.xlu0 %1603
        %v1605 = vrcp.pop 32.0
        %v1606 = vmul.f32 32.0, %v1605
        %v1607 = vsub.f32 1.0, %v1606
        %v1608 = vmul.f32 %v1605, %v1607
        %v1609 = vadd.f32 %v1605, %v1608
        %vm1610 = vweird.f32 %v1605
        %v1611 = vsel %vm1610, %v1605, %v1609
        %v1612 = vmul.f32 %v1604, %v1611
        %v1613 = vsub.f32 %v1599, %v1612
        %v1614 = vmul.f32 %v1613, %v1613
        %v1615 = vsel %vm1296, %v1614, 0.0
        %1616 = vadd.xlane.f32.xlu0 %v1615
        %v1617 = vpop.xlane.xlu0 %1616
        %v1618 = vmul.f32 %v1617, %v1611
        %v1619 = vadd.f32 %v1618, 1e-06
        %v1620 = vrsqrt.pop %v1619
        %v1621 = vmul.f32 %v1620, %v1619
        %v1622 = vmul.f32 %v1621, %v1620
        %v1623 = vmul.f32 0.5, %v1622
        %v1624 = vsub.f32 1.5, %v1623
        %v1625 = vmul.f32 %v1620, %v1624
        %vm1626 = vweird.f32 %v1619
        %vm1627 = vweird.f32 %v1620
        %vm1628 = vmor %vm1626, %vm1627
        %v1629 = vsel %vm1628, %v1620, %v1625
        %v1630 = vmul.f32 %v1613, %v1629
        %v1632 = vperm.slane %v1600, 0
        %v1634 = vmul.f32 %v1630, %v1632
        %v1636 = vperm.slane %v1601, 0
        %v1638 = vadd.f32 %v1634, %v1636
        %v1639 = vld [vmem:[%s1199] sm:$0xff]
        %v1640 = vld [vmem:[%s1199 + $0x8] sm:$0xff]
        %v1641 = vld [vmem:[%s1199 + $0x10] sm:$0xff]
        %v1642 = vld [vmem:[%s1199 + $0x18] sm:$0xff]
        %v1643 = vpack.c.bf16 %v1638, %v1638
        %v1644 = vpack.c.bf16 %v1640, %v1639
        %v1645 = vpack.c.bf16 %v1642, %v1641
        %v1646 = vld [vmem:[%s1202] sm:$0x1]
        %v1648 = vperm.slane %v1646, 0
        %v1651 = vsel %vm1296, %v1643, 0
        %1653 = vmatpush.bf16.msra.mxu0 0
        %1654 = vmatpush.bf16.msra.mxu0 0
        %1655 = vmatpush.bf16.msra.mxu0 0
        %1656 = vmatpush.bf16.msra.mxu0 0
        %1657 = vmatpush.bf16.msra.mxu0 0
        %1658 = vmatpush.bf16.msra.mxu0 0
        %1659 = vmatpush.bf16.msra.mxu0 %v1645
        %1660 = vmatpush.bf16.msra.mxu0 %v1644
        %1661 = vmatmul.bf16.gmra.mxu0 %v1651
        %v1662 = vpop.f32.mrf.mxu0
        %v1663 = vadd.f32 %v1648, %v1662
        %v1664 = vpop.f32.mrf.mxu0
        %1665 = vdwg.mxu0
        %v1666 = vld [vmem:[%s1207] sm:$0xff]
        %v1667 = vld [vmem:[%s1207 + $0x8] sm:$0xff]
        %v1668 = vld [vmem:[%s1207 + $0x10] sm:$0xff]
        %v1669 = vld [vmem:[%s1207 + $0x18] sm:$0xff]
        %v1670 = vpack.c.bf16 %v1282, %v1282
        %v1671 = vpack.c.bf16 %v1667, %v1666
        %v1672 = vpack.c.bf16 %v1669, %v1668
        %v1673 = vld [vmem:[%s1210] sm:$0x1]
        %v1675 = vperm.slane %v1673, 0
        %v1678 = vsel %vm1296, %v1670, 0
        %1680 = vmatpush.bf16.msra.mxu0 0
        %1681 = vmatpush.bf16.msra.mxu0 0
        %1682 = vmatpush.bf16.msra.mxu0 0
        %1683 = vmatpush.bf16.msra.mxu0 0
        %1684 = vmatpush.bf16.msra.mxu0 0
        %1685 = vmatpush.bf16.msra.mxu0 0
        %1686 = vmatpush.bf16.msra.mxu0 %v1672
        %1687 = vmatpush.bf16.msra.mxu0 %v1671
        %1688 = vmatmul.bf16.gmra.mxu0 %v1678
        %v1689 = vpop.f32.mrf.mxu0
        %v1690 = vadd.f32 %v1675, %v1689
        %v1691 = vpop.f32.mrf.mxu0
        %1692 = vdwg.mxu0
        %v1693 = vmul.f32 %v1284, -1e+09
        %v1694 = vpack.c.bf16 %v1663, %v1663
        %v1695 = vpack.c.bf16 %v1690, %v1690
        %v1697 = vsel %vm1318, %v1694, 0
        %v1700 = vsel %vm1318, %v1695, 0
        %1702 = vmatpush.bf16.xpose.msra.mxu0 0
        %1703 = vmatpush.bf16.xpose.msra.mxu0 0
        %1704 = vmatpush.bf16.xpose.msra.mxu0 0
        %1705 = vmatpush.bf16.xpose.msra.mxu0 0
        %1706 = vmatpush.bf16.xpose.msra.mxu0 0
        %1707 = vmatpush.bf16.xpose.msra.mxu0 0
        %1708 = vmatpush.bf16.xpose.msra.mxu0 0
        %1709 = vmatpush.bf16.xpose.msra.mxu0 %v1700
        %1710 = vmatmul.bf16.gmra.mxu0 %v1697
        %v1711 = vpop.f32.mrf.mxu0
        %v1712 = vadd.f32 0.0, %v1711
        %v1713 = vpop.f32.mrf.mxu0
        %1714 = vdwg.mxu0
        %v1715 = vmul.f32 %v1712, 0.35355338
        %v1716 = vadd.f32 %v1715, %v1693
        %v1717 = vsel %vm1318, %v1716, -inf
        %1718 = vmax.xlane.f32.xlu0 %v1717
        %v1719 = vpop.xlane.xlu0 %1718
        %v1720 = vsub.f32 %v1716, %v1719
        %v1721 = vmul.f32 %v1720, 1.442695
        %v1722 = vpow.pop %v1721
        %v1723 = vsel %vm1318, %v1722, 0.0
        %1724 = vadd.xlane.f32.xlu0 %v1723
        %v1725 = vpop.xlane.xlu0 %1724
        %v1726 = vrcp.pop %v1725
        %v1727 = vmul.f32 %v1722, %v1726
        %1728 = vst.msk [vmem:[%s1271] sm:$0xff] %vm1318, %v1727
        %v1729 = vpack.c.bf16 %v1727, %v1727
        %1731 = vrot.lane.b32.xlu0 %v1695, 96
        %v1732 = vpop.permute.xlu0 %1731
        %v1734 = vsel %vm1318, %v1729, 0
        %v1737 = vsel %vm1358, %v1732, 0
        %1739 = vmatpush.bf16.msra.mxu0 0
        %1740 = vmatpush.bf16.msra.mxu0 0
        %1741 = vmatpush.bf16.msra.mxu0 0
        %1742 = vmatpush.bf16.msra.mxu0 0
        %1743 = vmatpush.bf16.msra.mxu0 0
        %1744 = vmatpush.bf16.msra.mxu0 0
        %1745 = vmatpush.bf16.msra.mxu0 0
        %1746 = vmatpush.bf16.msra.mxu0 %v1737
        %1747 = vmatmul.bf16.gmra.mxu0 %v1734
        %v1748 = vpop.f32.mrf.mxu0
        %v1749 = vadd.f32 0.0, %v1748
        %v1750 = vpop.f32.mrf.mxu0
        %1751 = vdwg.mxu0
        %1753 = vrot.lane.b32.xlu0 %v1694, 120
        %v1754 = vpop.permute.xlu0 %1753
        %1755 = vrot.lane.b32.xlu0 %v1695, 120
        %v1756 = vpop.permute.xlu0 %1755
        %v1758 = vsel %vm1318, %v1754, 0
        %v1761 = vsel %vm1318, %v1756, 0
        %1763 = vmatpush.bf16.xpose.msra.mxu0 0
        %1764 = vmatpush.bf16.xpose.msra.mxu0 0
        %1765 = vmatpush.bf16.xpose.msra.mxu0 0
        %1766 = vmatpush.bf16.xpose.msra.mxu0 0
        %1767 = vmatpush.bf16.xpose.msra.mxu0 0
        %1768 = vmatpush.bf16.xpose.msra.mxu0 0
        %1769 = vmatpush.bf16.xpose.msra.mxu0 0
        %1770 = vmatpush.bf16.xpose.msra.mxu0 %v1761
        %1771 = vmatmul.bf16.gmra.mxu0 %v1758
        %v1772 = vpop.f32.mrf.mxu0
        %v1773 = vadd.f32 0.0, %v1772
        %v1774 = vpop.f32.mrf.mxu0
        %1775 = vdwg.mxu0
        %v1776 = vmul.f32 %v1773, 0.35355338
        %v1777 = vadd.f32 %v1776, %v1693
        %v1778 = vsel %vm1318, %v1777, -inf
        %1779 = vmax.xlane.f32.xlu0 %v1778
        %v1780 = vpop.xlane.xlu0 %1779
        %v1781 = vsub.f32 %v1777, %v1780
        %v1782 = vmul.f32 %v1781, 1.442695
        %v1783 = vpow.pop %v1782
        %v1784 = vsel %vm1318, %v1783, 0.0
        %1785 = vadd.xlane.f32.xlu0 %v1784
        %v1786 = vpop.xlane.xlu0 %1785
        %v1787 = vrcp.pop %v1786
        %v1788 = vmul.f32 %v1783, %v1787
        %s1789 = scalar_lea.vmem %s1271, 8
        %1790 = vst.msk [vmem:[%s1789] sm:$0xff] %vm1318, %v1788
        %v1791 = vpack.c.bf16 %v1788, %v1788
        %1792 = vrot.lane.b32.xlu0 %v1695, 88
        %v1793 = vpop.permute.xlu0 %1792
        %v1795 = vsel %vm1318, %v1791, 0
        %v1798 = vsel %vm1358, %v1793, 0
        %1800 = vmatpush.bf16.msra.mxu0 0
        %1801 = vmatpush.bf16.msra.mxu0 0
        %1802 = vmatpush.bf16.msra.mxu0 0
        %1803 = vmatpush.bf16.msra.mxu0 0
        %1804 = vmatpush.bf16.msra.mxu0 0
        %1805 = vmatpush.bf16.msra.mxu0 0
        %1806 = vmatpush.bf16.msra.mxu0 0
        %1807 = vmatpush.bf16.msra.mxu0 %v1798
        %1808 = vmatmul.bf16.gmra.mxu0 %v1795
        %v1809 = vpop.f32.mrf.mxu0
        %v1810 = vadd.f32 0.0, %v1809
        %v1811 = vpop.f32.mrf.mxu0
        %1812 = vdwg.mxu0
        %1813 = vrot.lane.b32.xlu0 %v1694, 112
        %v1814 = vpop.permute.xlu0 %1813
        %1815 = vrot.lane.b32.xlu0 %v1695, 112
        %v1816 = vpop.permute.xlu0 %1815
        %v1818 = vsel %vm1318, %v1814, 0
        %v1821 = vsel %vm1318, %v1816, 0
        %1823 = vmatpush.bf16.xpose.msra.mxu0 0
        %1824 = vmatpush.bf16.xpose.msra.mxu0 0
        %1825 = vmatpush.bf16.xpose.msra.mxu0 0
        %1826 = vmatpush.bf16.xpose.msra.mxu0 0
        %1827 = vmatpush.bf16.xpose.msra.mxu0 0
        %1828 = vmatpush.bf16.xpose.msra.mxu0 0
        %1829 = vmatpush.bf16.xpose.msra.mxu0 0
        %1830 = vmatpush.bf16.xpose.msra.mxu0 %v1821
        %1831 = vmatmul.bf16.gmra.mxu0 %v1818
        %v1832 = vpop.f32.mrf.mxu0
        %v1833 = vadd.f32 0.0, %v1832
        %v1834 = vpop.f32.mrf.mxu0
        %1835 = vdwg.mxu0
        %v1836 = vmul.f32 %v1833, 0.35355338
        %v1837 = vadd.f32 %v1836, %v1693
        %v1838 = vsel %vm1318, %v1837, -inf
        %1839 = vmax.xlane.f32.xlu0 %v1838
        %v1840 = vpop.xlane.xlu0 %1839
        %v1841 = vsub.f32 %v1837, %v1840
        %v1842 = vmul.f32 %v1841, 1.442695
        %v1843 = vpow.pop %v1842
        %v1844 = vsel %vm1318, %v1843, 0.0
        %1845 = vadd.xlane.f32.xlu0 %v1844
        %v1846 = vpop.xlane.xlu0 %1845
        %v1847 = vrcp.pop %v1846
        %v1848 = vmul.f32 %v1843, %v1847
        %s1849 = scalar_lea.vmem %s1271, 16
        %1850 = vst.msk [vmem:[%s1849] sm:$0xff] %vm1318, %v1848
        %v1851 = vpack.c.bf16 %v1848, %v1848
        %1852 = vrot.lane.b32.xlu0 %v1695, 80
        %v1853 = vpop.permute.xlu0 %1852
        %v1855 = vsel %vm1318, %v1851, 0
        %v1858 = vsel %vm1358, %v1853, 0
        %1860 = vmatpush.bf16.msra.mxu0 0
        %1861 = vmatpush.bf16.msra.mxu0 0
        %1862 = vmatpush.bf16.msra.mxu0 0
        %1863 = vmatpush.bf16.msra.mxu0 0
        %1864 = vmatpush.bf16.msra.mxu0 0
        %1865 = vmatpush.bf16.msra.mxu0 0
        %1866 = vmatpush.bf16.msra.mxu0 0
        %1867 = vmatpush.bf16.msra.mxu0 %v1858
        %1868 = vmatmul.bf16.gmra.mxu0 %v1855
        %v1869 = vpop.f32.mrf.mxu0
        %v1870 = vadd.f32 0.0, %v1869
        %v1871 = vpop.f32.mrf.mxu0
        %1872 = vdwg.mxu0
        %1873 = vrot.lane.b32.xlu0 %v1694, 104
        %v1874 = vpop.permute.xlu0 %1873
        %1875 = vrot.lane.b32.xlu0 %v1695, 104
        %v1876 = vpop.permute.xlu0 %1875
        %v1878 = vsel %vm1318, %v1874, 0
        %v1881 = vsel %vm1318, %v1876, 0
        %1883 = vmatpush.bf16.xpose.msra.mxu0 0
        %1884 = vmatpush.bf16.xpose.msra.mxu0 0
        %1885 = vmatpush.bf16.xpose.msra.mxu0 0
        %1886 = vmatpush.bf16.xpose.msra.mxu0 0
        %1887 = vmatpush.bf16.xpose.msra.mxu0 0
        %1888 = vmatpush.bf16.xpose.msra.mxu0 0
        %1889 = vmatpush.bf16.xpose.msra.mxu0 0
        %1890 = vmatpush.bf16.xpose.msra.mxu0 %v1881
        %1891 = vmatmul.bf16.gmra.mxu0 %v1878
        %v1892 = vpop.f32.mrf.mxu0
        %v1893 = vadd.f32 0.0, %v1892
        %v1894 = vpop.f32.mrf.mxu0
        %1895 = vdwg.mxu0
        %v1896 = vmul.f32 %v1893, 0.35355338
        %v1897 = vadd.f32 %v1896, %v1693
        %v1898 = vsel %vm1318, %v1897, -inf
        %1899 = vmax.xlane.f32.xlu0 %v1898
        %v1900 = vpop.xlane.xlu0 %1899
        %v1901 = vsub.f32 %v1897, %v1900
        %v1902 = vmul.f32 %v1901, 1.442695
        %v1903 = vpow.pop %v1902
        %v1904 = vsel %vm1318, %v1903, 0.0
        %1905 = vadd.xlane.f32.xlu0 %v1904
        %v1906 = vpop.xlane.xlu0 %1905
        %v1907 = vrcp.pop %v1906
        %v1908 = vmul.f32 %v1903, %v1907
        %s1909 = scalar_lea.vmem %s1271, 24
        %1910 = vst.msk [vmem:[%s1909] sm:$0xff] %vm1318, %v1908
        %v1911 = vpack.c.bf16 %v1908, %v1908
        %1912 = vrot.lane.b32.xlu0 %v1695, 72
        %v1913 = vpop.permute.xlu0 %1912
        %v1915 = vsel %vm1318, %v1911, 0
        %v1918 = vsel %vm1358, %v1913, 0
        %1920 = vmatpush.bf16.msra.mxu0 0
        %1921 = vmatpush.bf16.msra.mxu0 0
        %1922 = vmatpush.bf16.msra.mxu0 0
        %1923 = vmatpush.bf16.msra.mxu0 0
        %1924 = vmatpush.bf16.msra.mxu0 0
        %1925 = vmatpush.bf16.msra.mxu0 0
        %1926 = vmatpush.bf16.msra.mxu0 0
        %1927 = vmatpush.bf16.msra.mxu0 %v1918
        %1928 = vmatmul.bf16.gmra.mxu0 %v1915
        %v1929 = vpop.f32.mrf.mxu0
        %v1930 = vadd.f32 0.0, %v1929
        %v1931 = vpop.f32.mrf.mxu0
        %1932 = vdwg.mxu0
        %1934 = vrot.lane.b32.xlu0 %v1810, 8
        %v1935 = vpop.permute.xlu0 %1934
        %1938 = vrot.lane.b32.xlu0 %v1870, 16
        %v1939 = vpop.permute.xlu0 %1938
        %1942 = vrot.lane.b32.xlu0 %v1930, 24
        %v1943 = vpop.permute.xlu0 %1942
        %v1945 = vsel %vm1318, %v1749, %v1935
        %v1946 = vsel %vm1568, %v1945, %v1939
        %v1947 = vsel %vm1570, %v1946, %v1943
        %v1948 = vld [vmem:[%s1215] sm:$0xff]
        %v1949 = vld [vmem:[%s1215 + $0x8] sm:$0xff]
        %v1950 = vld [vmem:[%s1215 + $0x10] sm:$0xff]
        %v1951 = vld [vmem:[%s1215 + $0x18] sm:$0xff]
        %v1952 = vpack.c.bf16 %v1947, %v1947
        %v1953 = vpack.c.bf16 %v1949, %v1948
        %v1954 = vpack.c.bf16 %v1951, %v1950
        %v1955 = vld [vmem:[%s1218] sm:$0x1]
        %v1957 = vperm.slane %v1955, 0
        %v1960 = vsel %vm1296, %v1952, 0
        %1962 = vmatpush.bf16.msra.mxu0 0
        %1963 = vmatpush.bf16.msra.mxu0 0
        %1964 = vmatpush.bf16.msra.mxu0 0
        %1965 = vmatpush.bf16.msra.mxu0 0
        %1966 = vmatpush.bf16.msra.mxu0 0
        %1967 = vmatpush.bf16.msra.mxu0 0
        %1968 = vmatpush.bf16.msra.mxu0 %v1954
        %1969 = vmatpush.bf16.msra.mxu0 %v1953
        %1970 = vmatmul.bf16.gmra.mxu0 %v1960
        %v1971 = vpop.f32.mrf.mxu0
        %v1972 = vadd.f32 %v1957, %v1971
        %v1973 = vpop.f32.mrf.mxu0
        %1974 = vdwg.mxu0
        %v1975 = vadd.f32 %v1638, %v1972
        %v1976 = vld [vmem:[%s1243] sm:$0x1]
        %v1977 = vld [vmem:[%s1246] sm:$0x1]
        %v1978 = vsel %vm1296, %v1975, 0.0
        %1979 = vadd.xlane.f32.xlu0 %v1978
        %v1980 = vpop.xlane.xlu0 %1979
        %v1981 = vmul.f32 %v1980, %v1611
        %v1982 = vsub.f32 %v1975, %v1981
        %v1983 = vmul.f32 %v1982, %v1982
        %v1984 = vsel %vm1296, %v1983, 0.0
        %1985 = vadd.xlane.f32.xlu0 %v1984
        %v1986 = vpop.xlane.xlu0 %1985
        %v1987 = vmul.f32 %v1986, %v1611
        %v1988 = vadd.f32 %v1987, 1e-06
        %v1989 = vrsqrt.pop %v1988
        %v1990 = vmul.f32 %v1989, %v1988
        %v1991 = vmul.f32 %v1990, %v1989
        %v1992 = vmul.f32 0.5, %v1991
        %v1993 = vsub.f32 1.5, %v1992
        %v1994 = vmul.f32 %v1989, %v1993
        %vm1995 = vweird.f32 %v1988
        %vm1996 = vweird.f32 %v1989
        %vm1997 = vmor %vm1995, %vm1996
        %v1998 = vsel %vm1997, %v1989, %v1994
        %v1999 = vmul.f32 %v1982, %v1998
        %v2001 = vperm.slane %v1976, 0
        %v2003 = vmul.f32 %v1999, %v2001
        %v2005 = vperm.slane %v1977, 0
        %v2007 = vadd.f32 %v2003, %v2005
        %v2008 = vld [vmem:[%s1223] sm:$0xff]
        %v2009 = vld [vmem:[%s1223 + $0x8] sm:$0xff]
        %v2010 = vld [vmem:[%s1223 + $0x10] sm:$0xff]
        %v2011 = vld [vmem:[%s1223 + $0x18] sm:$0xff]
        %v2012 = vpack.c.bf16 %v2007, %v2007
        %v2013 = vpack.c.bf16 %v2009, %v2008
        %v2014 = vpack.c.bf16 %v2011, %v2010
        %v2015 = vld [vmem:[%s1226] sm:$0x1]
        %v2017 = vperm.slane %v2015, 0
        %v2020 = vsel %vm1296, %v2012, 0
        %2022 = vmatpush.bf16.msra.mxu0 0
        %2023 = vmatpush.bf16.msra.mxu0 0
        %2024 = vmatpush.bf16.msra.mxu0 0
        %2025 = vmatpush.bf16.msra.mxu0 0
        %2026 = vmatpush.bf16.msra.mxu0 0
        %2027 = vmatpush.bf16.msra.mxu0 0
        %2028 = vmatpush.bf16.msra.mxu0 %v2014
        %2029 = vmatpush.bf16.msra.mxu0 %v2013
        %2030 = vmatmul.bf16.gmra.mxu0 %v2020
        %v2031 = vpop.f32.mrf.mxu0
        %v2032 = vadd.f32 %v2017, %v2031
        %v2033 = vpop.f32.mrf.mxu0
        %2034 = vdwg.mxu0
        %v2035 = vmax.f32 %v2032, 0.0
        %v2036 = vld [vmem:[%s1231] sm:$0xff]
        %v2037 = vld [vmem:[%s1231 + $0x8] sm:$0xff]
        %v2038 = vld [vmem:[%s1231 + $0x10] sm:$0xff]
        %v2039 = vld [vmem:[%s1231 + $0x18] sm:$0xff]
        %v2040 = vld [vmem:[%s1231 + $0x20] sm:$0xff]
        %v2041 = vld [vmem:[%s1231 + $0x28] sm:$0xff]
        %v2042 = vld [vmem:[%s1231 + $0x30] sm:$0xff]
        %v2043 = vld [vmem:[%s1231 + $0x38] sm:$0xff]
        %v2044 = vpack.c.bf16 %v2035, %v2035
        %v2045 = vpack.c.bf16 %v2037, %v2036
        %v2046 = vpack.c.bf16 %v2039, %v2038
        %v2047 = vpack.c.bf16 %v2041, %v2040
        %v2048 = vpack.c.bf16 %v2043, %v2042
        %v2049 = vld [vmem:[%s1234] sm:$0x1]
        %v2051 = vperm.slane %v2049, 0
        %vm2053 = vcmask 523264
        %v2055 = vsel %vm2053, %v2044, 0
        %2057 = vmatpush.bf16.msra.mxu0 0
        %2058 = vmatpush.bf16.msra.mxu0 0
        %2059 = vmatpush.bf16.msra.mxu0 0
        %2060 = vmatpush.bf16.msra.mxu0 0
        %2061 = vmatpush.bf16.msra.mxu0 %v2048
        %2062 = vmatpush.bf16.msra.mxu0 %v2047
        %2063 = vmatpush.bf16.msra.mxu0 %v2046
        %2064 = vmatpush.bf16.msra.mxu0 %v2045
        %2065 = vmatmul.bf16.gmra.mxu0 %v2055
        %v2066 = vpop.f32.mrf.mxu0
        %v2067 = vadd.f32 %v2051, %v2066
        %v2068 = vpop.f32.mrf.mxu0
        %2069 = vdwg.mxu0
        %v2070 = vadd.f32 %v2007, %v2067
        %v2071 = vld [vmem:[%s1249] sm:$0x1]
        %v2072 = vld [vmem:[%s1252] sm:$0x1]
        %v2073 = vsel %vm1296, %v2070, 0.0
        %2074 = vadd.xlane.f32.xlu0 %v2073
        %v2075 = vpop.xlane.xlu0 %2074
        %v2076 = vmul.f32 %v2075, %v1611
        %v2077 = vsub.f32 %v2070, %v2076
        %v2078 = vmul.f32 %v2077, %v2077
        %v2079 = vsel %vm1296, %v2078, 0.0
        %2080 = vadd.xlane.f32.xlu0 %v2079
        %v2081 = vpop.xlane.xlu0 %2080
        %v2082 = vmul.f32 %v2081, %v1611
        %v2083 = vadd.f32 %v2082, 1e-06
        %v2084 = vrsqrt.pop %v2083
        %v2085 = vmul.f32 %v2084, %v2083
        %v2086 = vmul.f32 %v2085, %v2084
        %v2087 = vmul.f32 0.5, %v2086
        %v2088 = vsub.f32 1.5, %v2087
        %v2089 = vmul.f32 %v2084, %v2088
        %vm2090 = vweird.f32 %v2083
        %vm2091 = vweird.f32 %v2084
        %vm2092 = vmor %vm2090, %vm2091
        %v2093 = vsel %vm2092, %v2084, %v2089
        %v2094 = vmul.f32 %v2077, %v2093
        %v2096 = vperm.slane %v2071, 0
        %v2098 = vmul.f32 %v2094, %v2096
        %v2100 = vperm.slane %v2072, 0
        %v2102 = vadd.f32 %v2098, %v2100
        %2103 = vst.msk [vmem:[#allocation2] sm:$0xff] %vm1296, %v2102
        %p2104 = scmp.eq.s32.totalorder %s48, 1
        // Predicated region
        $region129: #{transformer_forward.3} parent=123 // pred_check
          %p2105 = pneg %p2104
        $region130: #{transformer_forward.3} parent=123 // pred_check_branch
          %2107 = sbr.rel (%p2105) target = $region132
        $region131: #{transformer_forward.3} parent=123 // pred_region
          %v2108 = vld [vmem:[%s24] sm:$0xff]
          %v2109 = vld [vmem:[%s24 + $0x8] sm:$0xff]
          %v2110 = vld [vmem:[%s24 + $0x10] sm:$0xff]
          %v2111 = vld [vmem:[%s24 + $0x18] sm:$0xff]
          %v2112 = vpack.c.bf16 %v2102, %v2102
          %v2113 = vpack.c.bf16 %v2109, %v2108
          %v2114 = vpack.c.bf16 %v2111, %v2110
          %v2115 = vld [vmem:[%s25] sm:$0x1]
          %v2117 = vperm.slane %v2115, 0
          %v2120 = vsel %vm1296, %v2112, 0
          %2122 = vmatpush.bf16.msra.mxu0 0
          %2123 = vmatpush.bf16.msra.mxu0 0
          %2124 = vmatpush.bf16.msra.mxu0 0
          %2125 = vmatpush.bf16.msra.mxu0 0
          %2126 = vmatpush.bf16.msra.mxu0 0
          %2127 = vmatpush.bf16.msra.mxu0 0
          %2128 = vmatpush.bf16.msra.mxu0 %v2114
          %2129 = vmatpush.bf16.msra.mxu0 %v2113
          %2130 = vmatmul.bf16.gmra.mxu0 %v2120
          %v2131 = vpop.f32.mrf.mxu0
          %v2132 = vadd.f32 %v2117, %v2131
          %v2133 = vpop.f32.mrf.mxu0
          %2134 = vdwg.mxu0
          %vm2135 = vcmask 392192
          %2136 = vst.msk [vmem:[%s1140] sm:$0xff] %vm2135, %v2132
        $region132: #{transformer_forward.3} parent=123 // pred_fallthru
          _
        %s2137 = sand.u32 %s729, 1
        %s2138 = scalar_lea.sflag [#allocation4], %s2137
        %s2139 = sand.u32 %s729, 1
        %s2140 = smul.addr %s2139, 8
        %s2141 = scalar_lea.vmem [#allocation3], %s2140
        %s2142 = smul.u32 4, %s47
        %p2143 = scmp.lt.s32.totalorder %s48, 1
        %s2144 = scalar_select %p2143, %s48, 1
        %p2145 = scmp.lt.s32.totalorder %s2142, 7
        %s2146 = scalar_select %p2145, %s2142, 7
        %s2147 = smul.addr %s2144, 8
        %s2148 = sadd.s32 %s2146, %s2147
        %s2149 = smul.addr %s2148, 8
        %s2150 = scalar_lea.vmem %s27, %s2149
        %s2151 = smul.u32 4, %s47
        %p2152 = scmp.lt.s32.totalorder %s48, 1
        %s2153 = scalar_select %p2152, %s48, 1
        %p2154 = scmp.lt.s32.totalorder %s2151, 7
        %s2155 = scalar_select %p2154, %s2151, 7
        %s2156 = smul.addr %s2153, 8
        %s2157 = sadd.s32 %s2155, %s2156
        %s2158 = smul.addr %s2157, 8
        %s2159 = scalar_lea.vmem %s28, %s2158
        // Predicated region
        $region133: #{transformer_forward.3} parent=123 // pred_check
          %p2160 = pneg %p739
        $region134: #{transformer_forward.3} parent=123 // pred_check_branch
          %2162 = sbr.rel (%p2160) target = $region136
        $region135: #{transformer_forward.3} parent=123 // pred_region
          %2164 = vsyncadd %s2138, 0
          %s2165 = smul.addr %s47, 8
          %s2166 = scalar_lea.hbm %s26, %s2165
          %s2168 = sshll.u32 %s2141, 4
          %s2169 = int_to_ptr.vmem [resolvable:$true] %s2168
          %s2170 = sshll.u32 %s2166, 4
          %s2171 = int_to_ptr.hbm [resolvable:$true] %s2170
          %2173 = dma.vmem_to_hbm [thread:$0]  %s2169, 128, %s2171, %s2138
        $region136: #{transformer_forward.3} parent=123 // pred_fallthru
          _
        // Predicated region
        $region137: #{transformer_forward.3} parent=123 // pred_check
          %p2174 = pneg %p767
        $region138: #{transformer_forward.3} parent=123 // pred_check_branch
          %2176 = sbr.rel (%p2174) target = $region140
        $region139: #{transformer_forward.3} parent=123 // pred_region
          %s2177 = smul.u32 4, %s47
        $region140: #{transformer_forward.3} parent=123 // pred_fallthru
          _
        // Predicated region
        $region141: #{transformer_forward.3} parent=123 // pred_check
          %p2178 = pneg %p795
        $region142: #{transformer_forward.3} parent=123 // pred_check_branch
          %2180 = sbr.rel (%p2178) target = $region144
        $region143: #{transformer_forward.3} parent=123 // pred_region
          %s2181 = smul.u32 4, %s47
        $region144: #{transformer_forward.3} parent=123 // pred_fallthru
          _
      $region124: #{transformer_forward.3} parent=5 // pred_fallthru
        _
      %p2182 = scmp.le.s32.totalorder 2, %s38
      // Predicated region
      $region145: #{transformer_forward.3} parent=5 // pred_check
        %p2183 = pneg %p2182
      $region146: #{transformer_forward.3} parent=5 // pred_check_branch
        %2185 = sbr.rel (%p2183) target = $region148
      $region147: #{transformer_forward.3} parent=5 // pred_region
        %s2186 = ssub.s32 %s38, 2
        // Predicated region
        $region149: #{transformer_forward.3} parent=147 // pred_check
          %p2187 = pneg %p745
        $region150: #{transformer_forward.3} parent=147 // pred_check_branch
          %2189 = sbr.rel (%p2187) target = $region152
        $region151: #{transformer_forward.3} parent=147 // pred_region
          %s2190 = sand.u32 %s730, 1
          %s2191 = scalar_lea.sflag [#allocation4], %s2190
          %s2192 = sand.u32 %s730, 1
          %s2193 = smul.addr %s2192, 8
          %s2194 = scalar_lea.vmem [#allocation3], %s2193
          %2196 = dma.done %s2191, 128
        $region152: #{transformer_forward.3} parent=147 // pred_fallthru
          _
        // Predicated region
        $region153: #{transformer_forward.3} parent=147 // pred_check
          %p2197 = pneg %p773
        $region154: #{transformer_forward.3} parent=147 // pred_check_branch
          %2199 = sbr.rel (%p2197) target = $region156
        $region155: #{transformer_forward.3} parent=147 // pred_region
          %s2200 = smul.u32 4, %s49
          %p2201 = scmp.lt.s32.totalorder %s50, 1
          %s2202 = scalar_select %p2201, %s50, 1
          %p2203 = scmp.lt.s32.totalorder %s2200, 7
          %s2204 = scalar_select %p2203, %s2200, 7
          %s2205 = smul.addr %s2202, 8
          %s2206 = sadd.s32 %s2204, %s2205
          %s2207 = smul.addr %s2206, 8
          %s2208 = scalar_lea.vmem %s27, %s2207
        $region156: #{transformer_forward.3} parent=147 // pred_fallthru
          _
        // Predicated region
        $region157: #{transformer_forward.3} parent=147 // pred_check
          %p2209 = pneg %p801
        $region158: #{transformer_forward.3} parent=147 // pred_check_branch
          %2211 = sbr.rel (%p2209) target = $region160
        $region159: #{transformer_forward.3} parent=147 // pred_region
          %s2212 = smul.u32 4, %s49
          %p2213 = scmp.lt.s32.totalorder %s50, 1
          %s2214 = scalar_select %p2213, %s50, 1
          %p2215 = scmp.lt.s32.totalorder %s2212, 7
          %s2216 = scalar_select %p2215, %s2212, 7
          %s2217 = smul.addr %s2214, 8
          %s2218 = sadd.s32 %s2216, %s2217
          %s2219 = smul.addr %s2218, 8
          %s2220 = scalar_lea.vmem %s28, %s2219
        $region160: #{transformer_forward.3} parent=147 // pred_fallthru
          _
      $region148: #{transformer_forward.3} parent=5 // pred_fallthru
        _
    $region6: #{transformer_forward.3} parent=1 // loop_footer
      %s42 = sadd.s32 1, %s38
    $region7: #{transformer_forward.3} parent=1 // loop_footer_branch
      %37 = sbr.rel target = $region3
    $region8: #{transformer_forward.3} parent=1 // loop_exit
      _
    %2221 = vsyncpa [#allocation4], 1
    %s2222 = scalar_lea.sflag [#allocation4], 1
    %2223 = vsyncpa %s2222, 1

// kernel: transformer_forward.2
$region0: #{transformer_forward.2}
  #allocation0 [shape = 'u32[]', space=smem, size = 0x4, offset = 0x4, fixed_abs, tag = 'smem constant byte address 0x4 - core index']
  #allocation1 [shape = 'u32[72,128]{1,0:T(1,128)}', space=vmem, size = 0x9000, scoped, tag = 'internal scratch']
  #allocation2 [shape = 'f32[8,32]{1,0:T(8,128)}', space=vmem, size = 0x1000, scoped, tag = 'scratch operand']
  %s0 = inlined_call_operand.vmem [shape: f32[2,8,32], index: 0, kind: input, shape index: {}]
  %s1 = inlined_call_operand.vmem [shape: f32[2,8,8], index: 1, kind: input, shape index: {}]
  %s2 = inlined_call_operand.vmem [shape: f32[2,32,96], index: 2, kind: input, shape index: {}]
  %s3 = inlined_call_operand.vmem [shape: f32[2,1,96], index: 3, kind: input, shape index: {}]
  %s4 = inlined_call_operand.vmem [shape: f32[2,32,32], index: 4, kind: input, shape index: {}]
  %s5 = inlined_call_operand.vmem [shape: f32[2,1,32], index: 5, kind: input, shape index: {}]
  %s6 = inlined_call_operand.vmem [shape: f32[2,32,64], index: 6, kind: input, shape index: {}]
  %s7 = inlined_call_operand.vmem [shape: f32[2,1,64], index: 7, kind: input, shape index: {}]
  %s8 = inlined_call_operand.vmem [shape: f32[2,64,32], index: 8, kind: input, shape index: {}]
  %s9 = inlined_call_operand.vmem [shape: f32[2,1,32], index: 9, kind: input, shape index: {}]
  %s10 = inlined_call_operand.vmem [shape: f32[2,1,32], index: 10, kind: input, shape index: {}]
  %s11 = inlined_call_operand.vmem [shape: f32[2,1,32], index: 11, kind: input, shape index: {}]
  %s12 = inlined_call_operand.vmem [shape: f32[2,1,32], index: 12, kind: input, shape index: {}]
  %s13 = inlined_call_operand.vmem [shape: f32[2,1,32], index: 13, kind: input, shape index: {}]
  %s14 = inlined_call_operand.vmem [shape: f32[2,8,32], index: 14, kind: output, shape index: {}]
  %s15 = sld [smem:[#allocation0]]
  $region93: #{transformer_forward.2} parent=0
    _
  %s17 = ssub.s32 1, %s15
  %s18 = scalar_select 0, %s17, %s15
  loop: start=0, step=1, limit=6
  $region2: #{transformer_forward.2} parent=0 // loop_pre_header
    _
  $region3: #{transformer_forward.2} parent=0 // loop_header
    %s20 = sphi 0, %s24
    %p21 = scmp.ge.s32.totalorder %s20, 6
    %s27 = sphi 0, %s39
    %s28 = sphi 0, %s35
    %s29 = sphi 0, %s27
    %s30 = sphi 0, %s28
    %s31 = sphi 0, %s29
    %s32 = sphi 0, %s30
    %s42 = sphi 0, %s44
    %s45 = sphi 0, %s42
    %s46 = sphi 0, %s45
    %s62 = sphi 0, %s46
    %s68 = sphi 0, %s70
    %s71 = sphi 0, %s68
    %s72 = sphi 0, %s71
    %s88 = sphi 0, %s72
    %s94 = sphi 0, %s96
    %s97 = sphi 0, %s94
    %s98 = sphi 0, %s97
    %s114 = sphi 0, %s98
    %s120 = sphi 0, %s122
    %s123 = sphi 0, %s120
    %s124 = sphi 0, %s123
    %s140 = sphi 0, %s124
    %s146 = sphi 0, %s148
    %s149 = sphi 0, %s146
    %s150 = sphi 0, %s149
    %s166 = sphi 0, %s150
    %s172 = sphi 0, %s174
    %s175 = sphi 0, %s172
    %s176 = sphi 0, %s175
    %s192 = sphi 0, %s176
    %s198 = sphi 0, %s200
    %s201 = sphi 0, %s198
    %s202 = sphi 0, %s201
    %s218 = sphi 0, %s202
    %s224 = sphi 0, %s226
    %s227 = sphi 0, %s224
    %s228 = sphi 0, %s227
    %s244 = sphi 0, %s228
    %s250 = sphi 0, %s252
    %s253 = sphi 0, %s250
    %s254 = sphi 0, %s253
    %s270 = sphi 0, %s254
    %s276 = sphi 0, %s278
    %s279 = sphi 0, %s276
    %s280 = sphi 0, %s279
    %s296 = sphi 0, %s280
    %s302 = sphi 0, %s304
    %s305 = sphi 0, %s302
    %s306 = sphi 0, %s305
    %s322 = sphi 0, %s306
    %s328 = sphi 0, %s330
    %s331 = sphi 0, %s328
    %s332 = sphi 0, %s331
    %s348 = sphi 0, %s332
    %s354 = sphi 0, %s356
    %s357 = sphi 0, %s354
    %s358 = sphi 0, %s357
    %s374 = sphi 0, %s358
    %s380 = sphi 0, %s382
    %s383 = sphi 0, %s380
    %s384 = sphi 0, %s383
    %s400 = sphi 0, %s384
    %s406 = sphi 0, %s408
    %s409 = sphi 0, %s406
    %s410 = sphi 0, %s409
    %s426 = sphi 0, %s410
  $region4: #{transformer_forward.2} parent=0 // loop_header_branch
    %23 = sbr.rel (%p21) target = $region8
  $region5: #{transformer_forward.2} parent=0 // loop_body
    %s25 = ssub.s32 %s20, 1
    %s26 = ssub.s32 %s20, 2
    %s33 = sadd.s32 1, %s28
    %p34 = scmp.ge.s32.totalorder %s33, 2
    %s35 = scalar_select %p34, 0, %s33
    %s36 = sadd.s32 1, %s27
    %s37 = scalar_select %p34, %s36, %s27
    %p38 = scmp.ge.s32.totalorder %s37, 2
    %s39 = scalar_select %p38, 0, %s37
    %s40 = ssub.s32 %s27, %s39
    %p41 = scmp.eq.s32.totalorder %s40, 0
    %s43 = sadd.s32 %s42, 1
    %s44 = scalar_select %p41, %s42, %s43
    %p47 = pneg %p41
    %p48 = scmp.eq.s32.totalorder %s20, 3
    %p49 = por %p47, %p48
    %p50 = scmp.ne.s32.totalorder %s42, %s45
    %p51 = scmp.eq.s32.totalorder %s20, 0
    %p52 = por %p50, %p51
    %p53 = scmp.ne.s32.totalorder %s42, %s45
    %p54 = scmp.eq.s32.totalorder %s25, 3
    %p55 = por %p53, %p54
    %p56 = scmp.ne.s32.totalorder %s45, %s46
    %p57 = scmp.eq.s32.totalorder %s25, 0
    %p58 = por %p56, %p57
    %p59 = scmp.ne.s32.totalorder %s45, %s46
    %p60 = scmp.eq.s32.totalorder %s26, 3
    %p61 = por %p59, %p60
    %p63 = scmp.ne.s32.totalorder %s46, %s62
    %p64 = scmp.eq.s32.totalorder %s26, 0
    %p65 = por %p63, %p64
    %s66 = ssub.s32 %s27, %s39
    %p67 = scmp.eq.s32.totalorder %s66, 0
    %s69 = sadd.s32 %s68, 1
    %s70 = scalar_select %p67, %s68, %s69
    %p73 = pneg %p67
    %p74 = scmp.eq.s32.totalorder %s20, 3
    %p75 = por %p73, %p74
    %p76 = scmp.ne.s32.totalorder %s68, %s71
    %p77 = scmp.eq.s32.totalorder %s20, 0
    %p78 = por %p76, %p77
    %p79 = scmp.ne.s32.totalorder %s68, %s71
    %p80 = scmp.eq.s32.totalorder %s25, 3
    %p81 = por %p79, %p80
    %p82 = scmp.ne.s32.totalorder %s71, %s72
    %p83 = scmp.eq.s32.totalorder %s25, 0
    %p84 = por %p82, %p83
    %p85 = scmp.ne.s32.totalorder %s71, %s72
    %p86 = scmp.eq.s32.totalorder %s26, 3
    %p87 = por %p85, %p86
    %p89 = scmp.ne.s32.totalorder %s72, %s88
    %p90 = scmp.eq.s32.totalorder %s26, 0
    %p91 = por %p89, %p90
    %s92 = ssub.s32 %s28, %s35
    %p93 = scmp.eq.s32.totalorder %s92, 0
    %s95 = sadd.s32 %s94, 1
    %s96 = scalar_select %p93, %s94, %s95
    %p99 = pneg %p93
    %p100 = scmp.eq.s32.totalorder %s20, 3
    %p101 = por %p99, %p100
    %p102 = scmp.ne.s32.totalorder %s94, %s97
    %p103 = scmp.eq.s32.totalorder %s20, 0
    %p104 = por %p102, %p103
    %p105 = scmp.ne.s32.totalorder %s94, %s97
    %p106 = scmp.eq.s32.totalorder %s25, 3
    %p107 = por %p105, %p106
    %p108 = scmp.ne.s32.totalorder %s97, %s98
    %p109 = scmp.eq.s32.totalorder %s25, 0
    %p110 = por %p108, %p109
    %p111 = scmp.ne.s32.totalorder %s97, %s98
    %p112 = scmp.eq.s32.totalorder %s26, 3
    %p113 = por %p111, %p112
    %p115 = scmp.ne.s32.totalorder %s98, %s114
    %p116 = scmp.eq.s32.totalorder %s26, 0
    %p117 = por %p115, %p116
    %s118 = ssub.s32 %s28, %s35
    %p119 = scmp.eq.s32.totalorder %s118, 0
    %s121 = sadd.s32 %s120, 1
    %s122 = scalar_select %p119, %s120, %s121
    %p125 = pneg %p119
    %p126 = scmp.eq.s32.totalorder %s20, 3
    %p127 = por %p125, %p126
    %p128 = scmp.ne.s32.totalorder %s120, %s123
    %p129 = scmp.eq.s32.totalorder %s20, 0
    %p130 = por %p128, %p129
    %p131 = scmp.ne.s32.totalorder %s120, %s123
    %p132 = scmp.eq.s32.totalorder %s25, 3
    %p133 = por %p131, %p132
    %p134 = scmp.ne.s32.totalorder %s123, %s124
    %p135 = scmp.eq.s32.totalorder %s25, 0
    %p136 = por %p134, %p135
    %p137 = scmp.ne.s32.totalorder %s123, %s124
    %p138 = scmp.eq.s32.totalorder %s26, 3
    %p139 = por %p137, %p138
    %p141 = scmp.ne.s32.totalorder %s124, %s140
    %p142 = scmp.eq.s32.totalorder %s26, 0
    %p143 = por %p141, %p142
    %s144 = ssub.s32 %s28, %s35
    %p145 = scmp.eq.s32.totalorder %s144, 0
    %s147 = sadd.s32 %s146, 1
    %s148 = scalar_select %p145, %s146, %s147
    %p151 = pneg %p145
    %p152 = scmp.eq.s32.totalorder %s20, 3
    %p153 = por %p151, %p152
    %p154 = scmp.ne.s32.totalorder %s146, %s149
    %p155 = scmp.eq.s32.totalorder %s20, 0
    %p156 = por %p154, %p155
    %p157 = scmp.ne.s32.totalorder %s146, %s149
    %p158 = scmp.eq.s32.totalorder %s25, 3
    %p159 = por %p157, %p158
    %p160 = scmp.ne.s32.totalorder %s149, %s150
    %p161 = scmp.eq.s32.totalorder %s25, 0
    %p162 = por %p160, %p161
    %p163 = scmp.ne.s32.totalorder %s149, %s150
    %p164 = scmp.eq.s32.totalorder %s26, 3
    %p165 = por %p163, %p164
    %p167 = scmp.ne.s32.totalorder %s150, %s166
    %p168 = scmp.eq.s32.totalorder %s26, 0
    %p169 = por %p167, %p168
    %s170 = ssub.s32 %s28, %s35
    %p171 = scmp.eq.s32.totalorder %s170, 0
    %s173 = sadd.s32 %s172, 1
    %s174 = scalar_select %p171, %s172, %s173
    %p177 = pneg %p171
    %p178 = scmp.eq.s32.totalorder %s20, 3
    %p179 = por %p177, %p178
    %p180 = scmp.ne.s32.totalorder %s172, %s175
    %p181 = scmp.eq.s32.totalorder %s20, 0
    %p182 = por %p180, %p181
    %p183 = scmp.ne.s32.totalorder %s172, %s175
    %p184 = scmp.eq.s32.totalorder %s25, 3
    %p185 = por %p183, %p184
    %p186 = scmp.ne.s32.totalorder %s175, %s176
    %p187 = scmp.eq.s32.totalorder %s25, 0
    %p188 = por %p186, %p187
    %p189 = scmp.ne.s32.totalorder %s175, %s176
    %p190 = scmp.eq.s32.totalorder %s26, 3
    %p191 = por %p189, %p190
    %p193 = scmp.ne.s32.totalorder %s176, %s192
    %p194 = scmp.eq.s32.totalorder %s26, 0
    %p195 = por %p193, %p194
    %s196 = ssub.s32 %s28, %s35
    %p197 = scmp.eq.s32.totalorder %s196, 0
    %s199 = sadd.s32 %s198, 1
    %s200 = scalar_select %p197, %s198, %s199
    %p203 = pneg %p197
    %p204 = scmp.eq.s32.totalorder %s20, 3
    %p205 = por %p203, %p204
    %p206 = scmp.ne.s32.totalorder %s198, %s201
    %p207 = scmp.eq.s32.totalorder %s20, 0
    %p208 = por %p206, %p207
    %p209 = scmp.ne.s32.totalorder %s198, %s201
    %p210 = scmp.eq.s32.totalorder %s25, 3
    %p211 = por %p209, %p210
    %p212 = scmp.ne.s32.totalorder %s201, %s202
    %p213 = scmp.eq.s32.totalorder %s25, 0
    %p214 = por %p212, %p213
    %p215 = scmp.ne.s32.totalorder %s201, %s202
    %p216 = scmp.eq.s32.totalorder %s26, 3
    %p217 = por %p215, %p216
    %p219 = scmp.ne.s32.totalorder %s202, %s218
    %p220 = scmp.eq.s32.totalorder %s26, 0
    %p221 = por %p219, %p220
    %s222 = ssub.s32 %s28, %s35
    %p223 = scmp.eq.s32.totalorder %s222, 0
    %s225 = sadd.s32 %s224, 1
    %s226 = scalar_select %p223, %s224, %s225
    %p229 = pneg %p223
    %p230 = scmp.eq.s32.totalorder %s20, 3
    %p231 = por %p229, %p230
    %p232 = scmp.ne.s32.totalorder %s224, %s227
    %p233 = scmp.eq.s32.totalorder %s20, 0
    %p234 = por %p232, %p233
    %p235 = scmp.ne.s32.totalorder %s224, %s227
    %p236 = scmp.eq.s32.totalorder %s25, 3
    %p237 = por %p235, %p236
    %p238 = scmp.ne.s32.totalorder %s227, %s228
    %p239 = scmp.eq.s32.totalorder %s25, 0
    %p240 = por %p238, %p239
    %p241 = scmp.ne.s32.totalorder %s227, %s228
    %p242 = scmp.eq.s32.totalorder %s26, 3
    %p243 = por %p241, %p242
    %p245 = scmp.ne.s32.totalorder %s228, %s244
    %p246 = scmp.eq.s32.totalorder %s26, 0
    %p247 = por %p245, %p246
    %s248 = ssub.s32 %s28, %s35
    %p249 = scmp.eq.s32.totalorder %s248, 0
    %s251 = sadd.s32 %s250, 1
    %s252 = scalar_select %p249, %s250, %s251
    %p255 = pneg %p249
    %p256 = scmp.eq.s32.totalorder %s20, 3
    %p257 = por %p255, %p256
    %p258 = scmp.ne.s32.totalorder %s250, %s253
    %p259 = scmp.eq.s32.totalorder %s20, 0
    %p260 = por %p258, %p259
    %p261 = scmp.ne.s32.totalorder %s250, %s253
    %p262 = scmp.eq.s32.totalorder %s25, 3
    %p263 = por %p261, %p262
    %p264 = scmp.ne.s32.totalorder %s253, %s254
    %p265 = scmp.eq.s32.totalorder %s25, 0
    %p266 = por %p264, %p265
    %p267 = scmp.ne.s32.totalorder %s253, %s254
    %p268 = scmp.eq.s32.totalorder %s26, 3
    %p269 = por %p267, %p268
    %p271 = scmp.ne.s32.totalorder %s254, %s270
    %p272 = scmp.eq.s32.totalorder %s26, 0
    %p273 = por %p271, %p272
    %s274 = ssub.s32 %s28, %s35
    %p275 = scmp.eq.s32.totalorder %s274, 0
    %s277 = sadd.s32 %s276, 1
    %s278 = scalar_select %p275, %s276, %s277
    %p281 = pneg %p275
    %p282 = scmp.eq.s32.totalorder %s20, 3
    %p283 = por %p281, %p282
    %p284 = scmp.ne.s32.totalorder %s276, %s279
    %p285 = scmp.eq.s32.totalorder %s20, 0
    %p286 = por %p284, %p285
    %p287 = scmp.ne.s32.totalorder %s276, %s279
    %p288 = scmp.eq.s32.totalorder %s25, 3
    %p289 = por %p287, %p288
    %p290 = scmp.ne.s32.totalorder %s279, %s280
    %p291 = scmp.eq.s32.totalorder %s25, 0
    %p292 = por %p290, %p291
    %p293 = scmp.ne.s32.totalorder %s279, %s280
    %p294 = scmp.eq.s32.totalorder %s26, 3
    %p295 = por %p293, %p294
    %p297 = scmp.ne.s32.totalorder %s280, %s296
    %p298 = scmp.eq.s32.totalorder %s26, 0
    %p299 = por %p297, %p298
    %s300 = ssub.s32 %s28, %s35
    %p301 = scmp.eq.s32.totalorder %s300, 0
    %s303 = sadd.s32 %s302, 1
    %s304 = scalar_select %p301, %s302, %s303
    %p307 = pneg %p301
    %p308 = scmp.eq.s32.totalorder %s20, 3
    %p309 = por %p307, %p308
    %p310 = scmp.ne.s32.totalorder %s302, %s305
    %p311 = scmp.eq.s32.totalorder %s20, 0
    %p312 = por %p310, %p311
    %p313 = scmp.ne.s32.totalorder %s302, %s305
    %p314 = scmp.eq.s32.totalorder %s25, 3
    %p315 = por %p313, %p314
    %p316 = scmp.ne.s32.totalorder %s305, %s306
    %p317 = scmp.eq.s32.totalorder %s25, 0
    %p318 = por %p316, %p317
    %p319 = scmp.ne.s32.totalorder %s305, %s306
    %p320 = scmp.eq.s32.totalorder %s26, 3
    %p321 = por %p319, %p320
    %p323 = scmp.ne.s32.totalorder %s306, %s322
    %p324 = scmp.eq.s32.totalorder %s26, 0
    %p325 = por %p323, %p324
    %s326 = ssub.s32 %s28, %s35
    %p327 = scmp.eq.s32.totalorder %s326, 0
    %s329 = sadd.s32 %s328, 1
    %s330 = scalar_select %p327, %s328, %s329
    %p333 = pneg %p327
    %p334 = scmp.eq.s32.totalorder %s20, 3
    %p335 = por %p333, %p334
    %p336 = scmp.ne.s32.totalorder %s328, %s331
    %p337 = scmp.eq.s32.totalorder %s20, 0
    %p338 = por %p336, %p337
    %p339 = scmp.ne.s32.totalorder %s328, %s331
    %p340 = scmp.eq.s32.totalorder %s25, 3
    %p341 = por %p339, %p340
    %p342 = scmp.ne.s32.totalorder %s331, %s332
    %p343 = scmp.eq.s32.totalorder %s25, 0
    %p344 = por %p342, %p343
    %p345 = scmp.ne.s32.totalorder %s331, %s332
    %p346 = scmp.eq.s32.totalorder %s26, 3
    %p347 = por %p345, %p346
    %p349 = scmp.ne.s32.totalorder %s332, %s348
    %p350 = scmp.eq.s32.totalorder %s26, 0
    %p351 = por %p349, %p350
    %s352 = ssub.s32 %s28, %s35
    %p353 = scmp.eq.s32.totalorder %s352, 0
    %s355 = sadd.s32 %s354, 1
    %s356 = scalar_select %p353, %s354, %s355
    %p359 = pneg %p353
    %p360 = scmp.eq.s32.totalorder %s20, 3
    %p361 = por %p359, %p360
    %p362 = scmp.ne.s32.totalorder %s354, %s357
    %p363 = scmp.eq.s32.totalorder %s20, 0
    %p364 = por %p362, %p363
    %p365 = scmp.ne.s32.totalorder %s354, %s357
    %p366 = scmp.eq.s32.totalorder %s25, 3
    %p367 = por %p365, %p366
    %p368 = scmp.ne.s32.totalorder %s357, %s358
    %p369 = scmp.eq.s32.totalorder %s25, 0
    %p370 = por %p368, %p369
    %p371 = scmp.ne.s32.totalorder %s357, %s358
    %p372 = scmp.eq.s32.totalorder %s26, 3
    %p373 = por %p371, %p372
    %p375 = scmp.ne.s32.totalorder %s358, %s374
    %p376 = scmp.eq.s32.totalorder %s26, 0
    %p377 = por %p375, %p376
    %s378 = ssub.s32 %s28, %s35
    %p379 = scmp.eq.s32.totalorder %s378, 0
    %s381 = sadd.s32 %s380, 1
    %s382 = scalar_select %p379, %s380, %s381
    %p385 = pneg %p379
    %p386 = scmp.eq.s32.totalorder %s20, 3
    %p387 = por %p385, %p386
    %p388 = scmp.ne.s32.totalorder %s380, %s383
    %p389 = scmp.eq.s32.totalorder %s20, 0
    %p390 = por %p388, %p389
    %p391 = scmp.ne.s32.totalorder %s380, %s383
    %p392 = scmp.eq.s32.totalorder %s25, 3
    %p393 = por %p391, %p392
    %p394 = scmp.ne.s32.totalorder %s383, %s384
    %p395 = scmp.eq.s32.totalorder %s25, 0
    %p396 = por %p394, %p395
    %p397 = scmp.ne.s32.totalorder %s383, %s384
    %p398 = scmp.eq.s32.totalorder %s26, 3
    %p399 = por %p397, %p398
    %p401 = scmp.ne.s32.totalorder %s384, %s400
    %p402 = scmp.eq.s32.totalorder %s26, 0
    %p403 = por %p401, %p402
    %s404 = ssub.s32 %s27, %s39
    %p405 = scmp.eq.s32.totalorder %s404, 0
    %s407 = sadd.s32 %s406, 1
    %s408 = scalar_select %p405, %s406, %s407
    %p411 = pneg %p405
    %p412 = scmp.eq.s32.totalorder %s20, 3
    %p413 = por %p411, %p412
    %p414 = scmp.ne.s32.totalorder %s406, %s409
    %p415 = scmp.eq.s32.totalorder %s20, 0
    %p416 = por %p414, %p415
    %p417 = scmp.ne.s32.totalorder %s406, %s409
    %p418 = scmp.eq.s32.totalorder %s25, 3
    %p419 = por %p417, %p418
    %p420 = scmp.ne.s32.totalorder %s409, %s410
    %p421 = scmp.eq.s32.totalorder %s25, 0
    %p422 = por %p420, %p421
    %p423 = scmp.ne.s32.totalorder %s409, %s410
    %p424 = scmp.eq.s32.totalorder %s26, 3
    %p425 = por %p423, %p424
    %p427 = scmp.ne.s32.totalorder %s410, %s426
    %p428 = scmp.eq.s32.totalorder %s26, 0
    %p429 = por %p427, %p428
    %p430 = scmp.le.s32.totalorder 1, %s20
    %p431 = scmp.lt.s32.totalorder %s20, 5
    %p432 = pnand %p430, %p431
    %p433 = pneg %p432
    // Predicated region
    $region9: #{transformer_forward.2} parent=5 // pred_check
      _
    $region10: #{transformer_forward.2} parent=5 // pred_check_branch
      %435 = sbr.rel (%p432) target = $region12
    $region11: #{transformer_forward.2} parent=5 // pred_region
      %s436 = ssub.s32 %s20, 1
    $region12: #{transformer_forward.2} parent=5 // pred_fallthru
      _
    %p437 = scmp.lt.s32.totalorder %s20, 4
    // Predicated region
    $region13: #{transformer_forward.2} parent=5 // pred_check
      %p438 = pneg %p437
    $region14: #{transformer_forward.2} parent=5 // pred_check_branch
      %440 = sbr.rel (%p438) target = $region16
    $region15: #{transformer_forward.2} parent=5 // pred_region
      // Predicated region
      $region17: #{transformer_forward.2} parent=15 // pred_check
        %p441 = pneg %p52
      $region18: #{transformer_forward.2} parent=15 // pred_check_branch
        %443 = sbr.rel (%p441) target = $region20
      $region19: #{transformer_forward.2} parent=15 // pred_region
        %p444 = scmp.lt.s32.totalorder %s27, 1
        %s445 = scalar_select %p444, %s27, 1
        %s446 = smul.addr %s445, 8
        %s447 = scalar_lea.vmem %s0, %s446
      $region20: #{transformer_forward.2} parent=15 // pred_fallthru
        _
      // Predicated region
      $region21: #{transformer_forward.2} parent=15 // pred_check
        %p448 = pneg %p78
      $region22: #{transformer_forward.2} parent=15 // pred_check_branch
        %450 = sbr.rel (%p448) target = $region24
      $region23: #{transformer_forward.2} parent=15 // pred_region
        %p451 = scmp.lt.s32.totalorder %s27, 1
        %s452 = scalar_select %p451, %s27, 1
        %s453 = smul.addr %s452, 8
        %s454 = scalar_lea.vmem %s1, %s453
      $region24: #{transformer_forward.2} parent=15 // pred_fallthru
        _
      // Predicated region
      $region25: #{transformer_forward.2} parent=15 // pred_check
        %p455 = pneg %p104
      $region26: #{transformer_forward.2} parent=15 // pred_check_branch
        %457 = sbr.rel (%p455) target = $region28
      $region27: #{transformer_forward.2} parent=15 // pred_region
        %p458 = scmp.lt.s32.totalorder %s28, 1
        %s459 = scalar_select %p458, %s28, 1
        %s460 = smul.addr %s459, 4
        %s461 = smul.addr %s460, 8
        %s462 = scalar_lea.vmem %s2, %s461
      $region28: #{transformer_forward.2} parent=15 // pred_fallthru
        _
      // Predicated region
      $region29: #{transformer_forward.2} parent=15 // pred_check
        %p463 = pneg %p130
      $region30: #{transformer_forward.2} parent=15 // pred_check_branch
        %465 = sbr.rel (%p463) target = $region32
      $region31: #{transformer_forward.2} parent=15 // pred_region
        %p466 = scmp.lt.s32.totalorder %s28, 1
        %s467 = scalar_select %p466, %s28, 1
        %s468 = scalar_lea.vmem %s3, %s467
      $region32: #{transformer_forward.2} parent=15 // pred_fallthru
        _
      // Predicated region
      $region33: #{transformer_forward.2} parent=15 // pred_check
        %p469 = pneg %p156
      $region34: #{transformer_forward.2} parent=15 // pred_check_branch
        %471 = sbr.rel (%p469) target = $region36
      $region35: #{transformer_forward.2} parent=15 // pred_region
        %p472 = scmp.lt.s32.totalorder %s28, 1
        %s473 = scalar_select %p472, %s28, 1
        %s474 = smul.addr %s473, 4
        %s475 = smul.addr %s474, 8
        %s476 = scalar_lea.vmem %s4, %s475
      $region36: #{transformer_forward.2} parent=15 // pred_fallthru
        _
      // Predicated region
      $region37: #{transformer_forward.2} parent=15 // pred_check
        %p477 = pneg %p182
      $region38: #{transformer_forward.2} parent=15 // pred_check_branch
        %479 = sbr.rel (%p477) target = $region40
      $region39: #{transformer_forward.2} parent=15 // pred_region
        %p480 = scmp.lt.s32.totalorder %s28, 1
        %s481 = scalar_select %p480, %s28, 1
        %s482 = scalar_lea.vmem %s5, %s481
      $region40: #{transformer_forward.2} parent=15 // pred_fallthru
        _
      // Predicated region
      $region41: #{transformer_forward.2} parent=15 // pred_check
        %p483 = pneg %p208
      $region42: #{transformer_forward.2} parent=15 // pred_check_branch
        %485 = sbr.rel (%p483) target = $region44
      $region43: #{transformer_forward.2} parent=15 // pred_region
        %p486 = scmp.lt.s32.totalorder %s28, 1
        %s487 = scalar_select %p486, %s28, 1
        %s488 = smul.addr %s487, 4
        %s489 = smul.addr %s488, 8
        %s490 = scalar_lea.vmem %s6, %s489
      $region44: #{transformer_forward.2} parent=15 // pred_fallthru
        _
      // Predicated region
      $region45: #{transformer_forward.2} parent=15 // pred_check
        %p491 = pneg %p234
      $region46: #{transformer_forward.2} parent=15 // pred_check_branch
        %493 = sbr.rel (%p491) target = $region48
      $region47: #{transformer_forward.2} parent=15 // pred_region
        %p494 = scmp.lt.s32.totalorder %s28, 1
        %s495 = scalar_select %p494, %s28, 1
        %s496 = scalar_lea.vmem %s7, %s495
      $region48: #{transformer_forward.2} parent=15 // pred_fallthru
        _
      // Predicated region
      $region49: #{transformer_forward.2} parent=15 // pred_check
        %p497 = pneg %p260
      $region50: #{transformer_forward.2} parent=15 // pred_check_branch
        %499 = sbr.rel (%p497) target = $region52
      $region51: #{transformer_forward.2} parent=15 // pred_region
        %p500 = scmp.lt.s32.totalorder %s28, 1
        %s501 = scalar_select %p500, %s28, 1
        %s502 = smul.addr %s501, 8
        %s503 = smul.addr %s502, 8
        %s504 = scalar_lea.vmem %s8, %s503
      $region52: #{transformer_forward.2} parent=15 // pred_fallthru
        _
      // Predicated region
      $region53: #{transformer_forward.2} parent=15 // pred_check
        %p505 = pneg %p286
      $region54: #{transformer_forward.2} parent=15 // pred_check_branch
        %507 = sbr.rel (%p505) target = $region56
      $region55: #{transformer_forward.2} parent=15 // pred_region
        %p508 = scmp.lt.s32.totalorder %s28, 1
        %s509 = scalar_select %p508, %s28, 1
        %s510 = scalar_lea.vmem %s9, %s509
      $region56: #{transformer_forward.2} parent=15 // pred_fallthru
        _
      // Predicated region
      $region57: #{transformer_forward.2} parent=15 // pred_check
        %p511 = pneg %p312
      $region58: #{transformer_forward.2} parent=15 // pred_check_branch
        %513 = sbr.rel (%p511) target = $region60
      $region59: #{transformer_forward.2} parent=15 // pred_region
        %p514 = scmp.lt.s32.totalorder %s28, 1
        %s515 = scalar_select %p514, %s28, 1
        %s516 = scalar_lea.vmem %s10, %s515
      $region60: #{transformer_forward.2} parent=15 // pred_fallthru
        _
      // Predicated region
      $region61: #{transformer_forward.2} parent=15 // pred_check
        %p517 = pneg %p338
      $region62: #{transformer_forward.2} parent=15 // pred_check_branch
        %519 = sbr.rel (%p517) target = $region64
      $region63: #{transformer_forward.2} parent=15 // pred_region
        %p520 = scmp.lt.s32.totalorder %s28, 1
        %s521 = scalar_select %p520, %s28, 1
        %s522 = scalar_lea.vmem %s11, %s521
      $region64: #{transformer_forward.2} parent=15 // pred_fallthru
        _
      // Predicated region
      $region65: #{transformer_forward.2} parent=15 // pred_check
        %p523 = pneg %p364
      $region66: #{transformer_forward.2} parent=15 // pred_check_branch
        %525 = sbr.rel (%p523) target = $region68
      $region67: #{transformer_forward.2} parent=15 // pred_region
        %p526 = scmp.lt.s32.totalorder %s28, 1
        %s527 = scalar_select %p526, %s28, 1
        %s528 = scalar_lea.vmem %s12, %s527
      $region68: #{transformer_forward.2} parent=15 // pred_fallthru
        _
      // Predicated region
      $region69: #{transformer_forward.2} parent=15 // pred_check
        %p529 = pneg %p390
      $region70: #{transformer_forward.2} parent=15 // pred_check_branch
        %531 = sbr.rel (%p529) target = $region72
      $region71: #{transformer_forward.2} parent=15 // pred_region
        %p532 = scmp.lt.s32.totalorder %s28, 1
        %s533 = scalar_select %p532, %s28, 1
        %s534 = scalar_lea.vmem %s13, %s533
      $region72: #{transformer_forward.2} parent=15 // pred_fallthru
        _
    $region16: #{transformer_forward.2} parent=5 // pred_fallthru
      _
    %p535 = scmp.le.s32.totalorder 1, %s20
    %p536 = scmp.lt.s32.totalorder %s20, 5
    %p537 = pnand %p535, %p536
    %p538 = pneg %p537
    // Predicated region
    $region73: #{transformer_forward.2} parent=5 // pred_check
      _
    $region74: #{transformer_forward.2} parent=5 // pred_check_branch
      %540 = sbr.rel (%p537) target = $region76
    $region75: #{transformer_forward.2} parent=5 // pred_region
      %s541 = ssub.s32 %s20, 1
      %p542 = scmp.lt.s32.totalorder %s29, 1
      %s543 = scalar_select %p542, %s29, 1
      %s544 = smul.addr %s543, 8
      %s545 = scalar_lea.vmem %s0, %s544
      %p546 = pneg %p58
      %p547 = pneg %p55
      %p548 = scmp.lt.s32.totalorder %s29, 1
      %s549 = scalar_select %p548, %s29, 1
      %s550 = smul.addr %s549, 8
      %s551 = scalar_lea.vmem %s1, %s550
      %p552 = pneg %p84
      %p553 = pneg %p81
      %p554 = scmp.lt.s32.totalorder %s30, 1
      %s555 = scalar_select %p554, %s30, 1
      %s556 = smul.addr %s555, 4
      %s557 = smul.addr %s556, 8
      %s558 = scalar_lea.vmem %s2, %s557
      %p559 = pneg %p110
      %p560 = pneg %p107
      %p561 = scmp.lt.s32.totalorder %s30, 1
      %s562 = scalar_select %p561, %s30, 1
      %s563 = scalar_lea.vmem %s3, %s562
      %p564 = pneg %p136
      %p565 = pneg %p133
      %p566 = scmp.lt.s32.totalorder %s30, 1
      %s567 = scalar_select %p566, %s30, 1
      %s568 = smul.addr %s567, 4
      %s569 = smul.addr %s568, 8
      %s570 = scalar_lea.vmem %s4, %s569
      %p571 = pneg %p162
      %p572 = pneg %p159
      %p573 = scmp.lt.s32.totalorder %s30, 1
      %s574 = scalar_select %p573, %s30, 1
      %s575 = scalar_lea.vmem %s5, %s574
      %p576 = pneg %p188
      %p577 = pneg %p185
      %p578 = scmp.lt.s32.totalorder %s30, 1
      %s579 = scalar_select %p578, %s30, 1
      %s580 = smul.addr %s579, 4
      %s581 = smul.addr %s580, 8
      %s582 = scalar_lea.vmem %s6, %s581
      %p583 = pneg %p214
      %p584 = pneg %p211
      %p585 = scmp.lt.s32.totalorder %s30, 1
      %s586 = scalar_select %p585, %s30, 1
      %s587 = scalar_lea.vmem %s7, %s586
      %p588 = pneg %p240
      %p589 = pneg %p237
      %p590 = scmp.lt.s32.totalorder %s30, 1
      %s591 = scalar_select %p590, %s30, 1
      %s592 = smul.addr %s591, 8
      %s593 = smul.addr %s592, 8
      %s594 = scalar_lea.vmem %s8, %s593
      %p595 = pneg %p266
      %p596 = pneg %p263
      %p597 = scmp.lt.s32.totalorder %s30, 1
      %s598 = scalar_select %p597, %s30, 1
      %s599 = scalar_lea.vmem %s9, %s598
      %p600 = pneg %p292
      %p601 = pneg %p289
      %p602 = scmp.lt.s32.totalorder %s30, 1
      %s603 = scalar_select %p602, %s30, 1
      %s604 = scalar_lea.vmem %s10, %s603
      %p605 = pneg %p318
      %p606 = pneg %p315
      %p607 = scmp.lt.s32.totalorder %s30, 1
      %s608 = scalar_select %p607, %s30, 1
      %s609 = scalar_lea.vmem %s11, %s608
      %p610 = pneg %p344
      %p611 = pneg %p341
      %p612 = scmp.lt.s32.totalorder %s30, 1
      %s613 = scalar_select %p612, %s30, 1
      %s614 = scalar_lea.vmem %s12, %s613
      %p615 = pneg %p370
      %p616 = pneg %p367
      %p617 = scmp.lt.s32.totalorder %s30, 1
      %s618 = scalar_select %p617, %s30, 1
      %s619 = scalar_lea.vmem %s13, %s618
      %p620 = pneg %p396
      %p621 = pneg %p393
      %p622 = pneg %p422
      %p623 = pneg %p419
      %p624 = scmp.lt.s32.totalorder %s29, 1
      %s625 = scalar_select %p624, %s29, 1
      %s626 = smul.addr %s625, 8
      %s627 = scalar_lea.vmem %s14, %s626
      %p628 = scmp.lt.s32.totalorder %s29, 1
      %s629 = scalar_select %p628, %s29, 1
      %s630 = smul.addr %s629, 8
      %s631 = scalar_lea.vmem %s0, %s630
      %p632 = scmp.lt.s32.totalorder %s29, 1
      %s633 = scalar_select %p632, %s29, 1
      %s634 = smul.addr %s633, 8
      %s635 = scalar_lea.vmem %s1, %s634
      %p636 = scmp.lt.s32.totalorder %s30, 1
      %s637 = scalar_select %p636, %s30, 1
      %s638 = smul.addr %s637, 4
      %s639 = smul.addr %s638, 8
      %s640 = scalar_lea.vmem %s2, %s639
      %p641 = scmp.lt.s32.totalorder %s30, 1
      %s642 = scalar_select %p641, %s30, 1
      %s643 = scalar_lea.vmem %s3, %s642
      %p644 = scmp.lt.s32.totalorder %s30, 1
      %s645 = scalar_select %p644, %s30, 1
      %s646 = smul.addr %s645, 4
      %s647 = smul.addr %s646, 8
      %s648 = scalar_lea.vmem %s4, %s647
      %p649 = scmp.lt.s32.totalorder %s30, 1
      %s650 = scalar_select %p649, %s30, 1
      %s651 = scalar_lea.vmem %s5, %s650
      %p652 = scmp.lt.s32.totalorder %s30, 1
      %s653 = scalar_select %p652, %s30, 1
      %s654 = smul.addr %s653, 4
      %s655 = smul.addr %s654, 8
      %s656 = scalar_lea.vmem %s6, %s655
      %p657 = scmp.lt.s32.totalorder %s30, 1
      %s658 = scalar_select %p657, %s30, 1
      %s659 = scalar_lea.vmem %s7, %s658
      %p660 = scmp.lt.s32.totalorder %s30, 1
      %s661 = scalar_select %p660, %s30, 1
      %s662 = smul.addr %s661, 8
      %s663 = smul.addr %s662, 8
      %s664 = scalar_lea.vmem %s8, %s663
      %p665 = scmp.lt.s32.totalorder %s30, 1
      %s666 = scalar_select %p665, %s30, 1
      %s667 = scalar_lea.vmem %s9, %s666
      %p668 = scmp.lt.s32.totalorder %s30, 1
      %s669 = scalar_select %p668, %s30, 1
      %s670 = scalar_lea.vmem %s10, %s669
      %p671 = scmp.lt.s32.totalorder %s30, 1
      %s672 = scalar_select %p671, %s30, 1
      %s673 = scalar_lea.vmem %s11, %s672
      %p674 = scmp.lt.s32.totalorder %s30, 1
      %s675 = scalar_select %p674, %s30, 1
      %s676 = scalar_lea.vmem %s12, %s675
      %p677 = scmp.lt.s32.totalorder %s30, 1
      %s678 = scalar_select %p677, %s30, 1
      %s679 = scalar_lea.vmem %s13, %s678
      %p680 = scmp.lt.s32.totalorder %s29, 1
      %s681 = scalar_select %p680, %s29, 1
      %s682 = smul.addr %s681, 8
      %s683 = scalar_lea.vmem %s14, %s682
      %p685 = scmp.eq.s32.totalorder %s30, 0
      // Predicated region
      $region77: #{transformer_forward.2} parent=75 // pred_check
        %p686 = pneg %p685
      $region78: #{transformer_forward.2} parent=75 // pred_check_branch
        %688 = sbr.rel (%p686) target = $region80
      $region79: #{transformer_forward.2} parent=75 // pred_region
        %v689 = vld [vmem:[%s631] sm:$0xff]
        %vm690 = vcmask 261120
        %691 = vst.msk [vmem:[#allocation2] sm:$0xff] %vm690, %v689
      $region80: #{transformer_forward.2} parent=75 // pred_fallthru
        _
      %v692 = vld [vmem:[#allocation2] sm:$0xff]
      %v693 = vld [vmem:[%s635] sm:$0xff]
      %v694 = vld [vmem:[%s640] sm:$0xff]
      %v695 = vld [vmem:[%s640 + $0x8] sm:$0xff]
      %v696 = vld [vmem:[%s640 + $0x10] sm:$0xff]
      %v697 = vld [vmem:[%s640 + $0x18] sm:$0xff]
      %v698 = vpack.c.bf16 %v692, %v692
      %v699 = vpack.c.bf16 %v695, %v694
      %v700 = vpack.c.bf16 %v697, %v696
      %v701 = vld [vmem:[%s643] sm:$0x1]
      %v703 = vperm.slane %v701, 0
      %vm705 = vcmask 261120
      %v707 = vsel %vm705, %v698, 0
      %709 = vmatpush.bf16.msra.mxu0 0
      %710 = vmatpush.bf16.msra.mxu0 0
      %711 = vmatpush.bf16.msra.mxu0 0
      %712 = vmatpush.bf16.msra.mxu0 0
      %713 = vmatpush.bf16.msra.mxu0 0
      %714 = vmatpush.bf16.msra.mxu0 0
      %715 = vmatpush.bf16.msra.mxu0 %v700
      %716 = vmatpush.bf16.msra.mxu0 %v699
      %717 = vmatmul.bf16.gmra.mxu0 %v707
      %v718 = vpop.f32.mrf.mxu0
      %v719 = vadd.f32 %v703, %v718
      %v720 = vpop.f32.mrf.mxu0
      %721 = vdwg.mxu0
      %v722 = vmul.f32 %v693, -1e+09
      %v723 = vpack.c.bf16 %v719, %v719
      %725 = vrot.lane.b32.xlu0 %v723, 96
      %v726 = vpop.permute.xlu0 %725
      %vm727 = vcmask 64512
      %v729 = vsel %vm727, %v723, 0
      %v732 = vsel %vm727, %v726, 0
      %734 = vmatpush.bf16.xpose.msra.mxu0 0
      %735 = vmatpush.bf16.xpose.msra.mxu0 0
      %736 = vmatpush.bf16.xpose.msra.mxu0 0
      %737 = vmatpush.bf16.xpose.msra.mxu0 0
      %738 = vmatpush.bf16.xpose.msra.mxu0 0
      %739 = vmatpush.bf16.xpose.msra.mxu0 0
      %740 = vmatpush.bf16.xpose.msra.mxu0 0
      %741 = vmatpush.bf16.xpose.msra.mxu0 %v732
      %742 = vmatmul.bf16.gmra.mxu0 %v729
      %v743 = vpop.f32.mrf.mxu0
      %v744 = vadd.f32 0.0, %v743
      %v745 = vpop.f32.mrf.mxu0
      %746 = vdwg.mxu0
      %v747 = vmul.f32 %v744, 0.35355338
      %v748 = vadd.f32 %v747, %v722
      %v749 = vsel %vm727, %v748, -inf
      %750 = vmax.xlane.f32.xlu0 %v749
      %v751 = vpop.xlane.xlu0 %750
      %v752 = vsub.f32 %v748, %v751
      %v753 = vmul.f32 %v752, 1.442695
      %v754 = vpow.pop %v753
      %v755 = vsel %vm727, %v754, 0.0
      %756 = vadd.xlane.f32.xlu0 %v755
      %v757 = vpop.xlane.xlu0 %756
      %v758 = vrcp.pop %v757
      %v759 = vmul.f32 %v754, %v758
      %v760 = vpack.c.bf16 %v759, %v759
      %761 = vrot.lane.b32.xlu0 %v723, 64
      %v762 = vpop.permute.xlu0 %761
      %v764 = vsel %vm727, %v760, 0
      %vm766 = vcmask 1043456
      %v768 = vsel %vm766, %v762, 0
      %770 = vmatpush.bf16.msra.mxu0 0
      %771 = vmatpush.bf16.msra.mxu0 0
      %772 = vmatpush.bf16.msra.mxu0 0
      %773 = vmatpush.bf16.msra.mxu0 0
      %774 = vmatpush.bf16.msra.mxu0 0
      %775 = vmatpush.bf16.msra.mxu0 0
      %776 = vmatpush.bf16.msra.mxu0 0
      %777 = vmatpush.bf16.msra.mxu0 %v768
      %778 = vmatmul.bf16.gmra.mxu0 %v764
      %v779 = vpop.f32.mrf.mxu0
      %v780 = vadd.f32 0.0, %v779
      %v781 = vpop.f32.mrf.mxu0
      %782 = vdwg.mxu0
      %783 = vrot.lane.b32.xlu0 %v723, 120
      %v784 = vpop.permute.xlu0 %783
      %785 = vrot.lane.b32.xlu0 %v723, 88
      %v786 = vpop.permute.xlu0 %785
      %v788 = vsel %vm727, %v784, 0
      %v791 = vsel %vm727, %v786, 0
      %793 = vmatpush.bf16.xpose.msra.mxu0 0
      %794 = vmatpush.bf16.xpose.msra.mxu0 0
      %795 = vmatpush.bf16.xpose.msra.mxu0 0
      %796 = vmatpush.bf16.xpose.msra.mxu0 0
      %797 = vmatpush.bf16.xpose.msra.mxu0 0
      %798 = vmatpush.bf16.xpose.msra.mxu0 0
      %799 = vmatpush.bf16.xpose.msra.mxu0 0
      %800 = vmatpush.bf16.xpose.msra.mxu0 %v791
      %801 = vmatmul.bf16.gmra.mxu0 %v788
      %v802 = vpop.f32.mrf.mxu0
      %v803 = vadd.f32 0.0, %v802
      %v804 = vpop.f32.mrf.mxu0
      %805 = vdwg.mxu0
      %v806 = vmul.f32 %v803, 0.35355338
      %v807 = vadd.f32 %v806, %v722
      %v808 = vsel %vm727, %v807, -inf
      %809 = vmax.xlane.f32.xlu0 %v808
      %v810 = vpop.xlane.xlu0 %809
      %v811 = vsub.f32 %v807, %v810
      %v812 = vmul.f32 %v811, 1.442695
      %v813 = vpow.pop %v812
      %v814 = vsel %vm727, %v813, 0.0
      %815 = vadd.xlane.f32.xlu0 %v814
      %v816 = vpop.xlane.xlu0 %815
      %v817 = vrcp.pop %v816
      %v818 = vmul.f32 %v813, %v817
      %v819 = vpack.c.bf16 %v818, %v818
      %820 = vrot.lane.b32.xlu0 %v723, 56
      %v821 = vpop.permute.xlu0 %820
      %v823 = vsel %vm727, %v819, 0
      %v826 = vsel %vm766, %v821, 0
      %828 = vmatpush.bf16.msra.mxu0 0
      %829 = vmatpush.bf16.msra.mxu0 0
      %830 = vmatpush.bf16.msra.mxu0 0
      %831 = vmatpush.bf16.msra.mxu0 0
      %832 = vmatpush.bf16.msra.mxu0 0
      %833 = vmatpush.bf16.msra.mxu0 0
      %834 = vmatpush.bf16.msra.mxu0 0
      %835 = vmatpush.bf16.msra.mxu0 %v826
      %836 = vmatmul.bf16.gmra.mxu0 %v823
      %v837 = vpop.f32.mrf.mxu0
      %v838 = vadd.f32 0.0, %v837
      %v839 = vpop.f32.mrf.mxu0
      %840 = vdwg.mxu0
      %841 = vrot.lane.b32.xlu0 %v723, 112
      %v842 = vpop.permute.xlu0 %841
      %843 = vrot.lane.b32.xlu0 %v723, 80
      %v844 = vpop.permute.xlu0 %843
      %v846 = vsel %vm727, %v842, 0
      %v849 = vsel %vm727, %v844, 0
      %851 = vmatpush.bf16.xpose.msra.mxu0 0
      %852 = vmatpush.bf16.xpose.msra.mxu0 0
      %853 = vmatpush.bf16.xpose.msra.mxu0 0
      %854 = vmatpush.bf16.xpose.msra.mxu0 0
      %855 = vmatpush.bf16.xpose.msra.mxu0 0
      %856 = vmatpush.bf16.xpose.msra.mxu0 0
      %857 = vmatpush.bf16.xpose.msra.mxu0 0
      %858 = vmatpush.bf16.xpose.msra.mxu0 %v849
      %859 = vmatmul.bf16.gmra.mxu0 %v846
      %v860 = vpop.f32.mrf.mxu0
      %v861 = vadd.f32 0.0, %v860
      %v862 = vpop.f32.mrf.mxu0
      %863 = vdwg.mxu0
      %v864 = vmul.f32 %v861, 0.35355338
      %v865 = vadd.f32 %v864, %v722
      %v866 = vsel %vm727, %v865, -inf
      %867 = vmax.xlane.f32.xlu0 %v866
      %v868 = vpop.xlane.xlu0 %867
      %v869 = vsub.f32 %v865, %v868
      %v870 = vmul.f32 %v869, 1.442695
      %v871 = vpow.pop %v870
      %v872 = vsel %vm727, %v871, 0.0
      %873 = vadd.xlane.f32.xlu0 %v872
      %v874 = vpop.xlane.xlu0 %873
      %v875 = vrcp.pop %v874
      %v876 = vmul.f32 %v871, %v875
      %v877 = vpack.c.bf16 %v876, %v876
      %878 = vrot.lane.b32.xlu0 %v723, 48
      %v879 = vpop.permute.xlu0 %878
      %v881 = vsel %vm727, %v877, 0
      %v884 = vsel %vm766, %v879, 0
      %886 = vmatpush.bf16.msra.mxu0 0
      %887 = vmatpush.bf16.msra.mxu0 0
      %888 = vmatpush.bf16.msra.mxu0 0
      %889 = vmatpush.bf16.msra.mxu0 0
      %890 = vmatpush.bf16.msra.mxu0 0
      %891 = vmatpush.bf16.msra.mxu0 0
      %892 = vmatpush.bf16.msra.mxu0 0
      %893 = vmatpush.bf16.msra.mxu0 %v884
      %894 = vmatmul.bf16.gmra.mxu0 %v881
      %v895 = vpop.f32.mrf.mxu0
      %v896 = vadd.f32 0.0, %v895
      %v897 = vpop.f32.mrf.mxu0
      %898 = vdwg.mxu0
      %899 = vrot.lane.b32.xlu0 %v723, 104
      %v900 = vpop.permute.xlu0 %899
      %901 = vrot.lane.b32.xlu0 %v723, 72
      %v902 = vpop.permute.xlu0 %901
      %v904 = vsel %vm727, %v900, 0
      %v907 = vsel %vm727, %v902, 0
      %909 = vmatpush.bf16.xpose.msra.mxu0 0
      %910 = vmatpush.bf16.xpose.msra.mxu0 0
      %911 = vmatpush.bf16.xpose.msra.mxu0 0
      %912 = vmatpush.bf16.xpose.msra.mxu0 0
      %913 = vmatpush.bf16.xpose.msra.mxu0 0
      %914 = vmatpush.bf16.xpose.msra.mxu0 0
      %915 = vmatpush.bf16.xpose.msra.mxu0 0
      %916 = vmatpush.bf16.xpose.msra.mxu0 %v907
      %917 = vmatmul.bf16.gmra.mxu0 %v904
      %v918 = vpop.f32.mrf.mxu0
      %v919 = vadd.f32 0.0, %v918
      %v920 = vpop.f32.mrf.mxu0
      %921 = vdwg.mxu0
      %v922 = vmul.f32 %v919, 0.35355338
      %v923 = vadd.f32 %v922, %v722
      %v924 = vsel %vm727, %v923, -inf
      %925 = vmax.xlane.f32.xlu0 %v924
      %v926 = vpop.xlane.xlu0 %925
      %v927 = vsub.f32 %v923, %v926
      %v928 = vmul.f32 %v927, 1.442695
      %v929 = vpow.pop %v928
      %v930 = vsel %vm727, %v929, 0.0
      %931 = vadd.xlane.f32.xlu0 %v930
      %v932 = vpop.xlane.xlu0 %931
      %v933 = vrcp.pop %v932
      %v934 = vmul.f32 %v929, %v933
      %v935 = vpack.c.bf16 %v934, %v934
      %936 = vrot.lane.b32.xlu0 %v723, 40
      %v937 = vpop.permute.xlu0 %936
      %v939 = vsel %vm727, %v935, 0
      %v942 = vsel %vm766, %v937, 0
      %944 = vmatpush.bf16.msra.mxu0 0
      %945 = vmatpush.bf16.msra.mxu0 0
      %946 = vmatpush.bf16.msra.mxu0 0
      %947 = vmatpush.bf16.msra.mxu0 0
      %948 = vmatpush.bf16.msra.mxu0 0
      %949 = vmatpush.bf16.msra.mxu0 0
      %950 = vmatpush.bf16.msra.mxu0 0
      %951 = vmatpush.bf16.msra.mxu0 %v942
      %952 = vmatmul.bf16.gmra.mxu0 %v939
      %v953 = vpop.f32.mrf.mxu0
      %v954 = vadd.f32 0.0, %v953
      %v955 = vpop.f32.mrf.mxu0
      %956 = vdwg.mxu0
      %958 = vrot.lane.b32.xlu0 %v838, 8
      %v959 = vpop.permute.xlu0 %958
      %962 = vrot.lane.b32.xlu0 %v896, 16
      %v963 = vpop.permute.xlu0 %962
      %966 = vrot.lane.b32.xlu0 %v954, 24
      %v967 = vpop.permute.xlu0 %966
      %v969 = vsel %vm727, %v780, %v959
      %vm970 = vcmask 130048
      %v971 = vsel %vm970, %v969, %v963
      %vm972 = vcmask 195584
      %v973 = vsel %vm972, %v971, %v967
      %v974 = vld [vmem:[%s648] sm:$0xff]
      %v975 = vld [vmem:[%s648 + $0x8] sm:$0xff]
      %v976 = vld [vmem:[%s648 + $0x10] sm:$0xff]
      %v977 = vld [vmem:[%s648 + $0x18] sm:$0xff]
      %v978 = vpack.c.bf16 %v973, %v973
      %v979 = vpack.c.bf16 %v975, %v974
      %v980 = vpack.c.bf16 %v977, %v976
      %v981 = vld [vmem:[%s651] sm:$0x1]
      %v983 = vperm.slane %v981, 0
      %v986 = vsel %vm705, %v978, 0
      %988 = vmatpush.bf16.msra.mxu0 0
      %989 = vmatpush.bf16.msra.mxu0 0
      %990 = vmatpush.bf16.msra.mxu0 0
      %991 = vmatpush.bf16.msra.mxu0 0
      %992 = vmatpush.bf16.msra.mxu0 0
      %993 = vmatpush.bf16.msra.mxu0 0
      %994 = vmatpush.bf16.msra.mxu0 %v980
      %995 = vmatpush.bf16.msra.mxu0 %v979
      %996 = vmatmul.bf16.gmra.mxu0 %v986
      %v997 = vpop.f32.mrf.mxu0
      %v998 = vadd.f32 %v983, %v997
      %v999 = vpop.f32.mrf.mxu0
      %1000 = vdwg.mxu0
      %v1001 = vadd.f32 %v692, %v998
      %v1002 = vld [vmem:[%s670] sm:$0x1]
      %v1003 = vld [vmem:[%s673] sm:$0x1]
      %v1004 = vsel %vm705, %v1001, 0.0
      %1005 = vadd.xlane.f32.xlu0 %v1004
      %v1006 = vpop.xlane.xlu0 %1005
      %v1007 = vrcp.pop 32.0
      %v1008 = vmul.f32 32.0, %v1007
      %v1009 = vsub.f32 1.0, %v1008
      %v1010 = vmul.f32 %v1007, %v1009
      %v1011 = vadd.f32 %v1007, %v1010
      %vm1012 = vweird.f32 %v1007
      %v1013 = vsel %vm1012, %v1007, %v1011
      %v1014 = vmul.f32 %v1006, %v1013
      %v1015 = vsub.f32 %v1001, %v1014
      %v1016 = vmul.f32 %v1015, %v1015
      %v1017 = vsel %vm705, %v1016, 0.0
      %1018 = vadd.xlane.f32.xlu0 %v1017
      %v1019 = vpop.xlane.xlu0 %1018
      %v1020 = vmul.f32 %v1019, %v1013
      %v1021 = vadd.f32 %v1020, 1e-06
      %v1022 = vrsqrt.pop %v1021
      %v1023 = vmul.f32 %v1022, %v1021
      %v1024 = vmul.f32 %v1023, %v1022
      %v1025 = vmul.f32 0.5, %v1024
      %v1026 = vsub.f32 1.5, %v1025
      %v1027 = vmul.f32 %v1022, %v1026
      %vm1028 = vweird.f32 %v1021
      %vm1029 = vweird.f32 %v1022
      %vm1030 = vmor %vm1028, %vm1029
      %v1031 = vsel %vm1030, %v1022, %v1027
      %v1032 = vmul.f32 %v1015, %v1031
      %v1034 = vperm.slane %v1002, 0
      %v1036 = vmul.f32 %v1032, %v1034
      %v1038 = vperm.slane %v1003, 0
      %v1040 = vadd.f32 %v1036, %v1038
      %v1041 = vld [vmem:[%s656] sm:$0xff]
      %v1042 = vld [vmem:[%s656 + $0x8] sm:$0xff]
      %v1043 = vld [vmem:[%s656 + $0x10] sm:$0xff]
      %v1044 = vld [vmem:[%s656 + $0x18] sm:$0xff]
      %v1045 = vpack.c.bf16 %v1040, %v1040
      %v1046 = vpack.c.bf16 %v1042, %v1041
      %v1047 = vpack.c.bf16 %v1044, %v1043
      %v1048 = vld [vmem:[%s659] sm:$0x1]
      %v1050 = vperm.slane %v1048, 0
      %v1053 = vsel %vm705, %v1045, 0
      %1055 = vmatpush.bf16.msra.mxu0 0
      %1056 = vmatpush.bf16.msra.mxu0 0
      %1057 = vmatpush.bf16.msra.mxu0 0
      %1058 = vmatpush.bf16.msra.mxu0 0
      %1059 = vmatpush.bf16.msra.mxu0 0
      %1060 = vmatpush.bf16.msra.mxu0 0
      %1061 = vmatpush.bf16.msra.mxu0 %v1047
      %1062 = vmatpush.bf16.msra.mxu0 %v1046
      %1063 = vmatmul.bf16.gmra.mxu0 %v1053
      %v1064 = vpop.f32.mrf.mxu0
      %v1065 = vadd.f32 %v1050, %v1064
      %v1066 = vpop.f32.mrf.mxu0
      %1067 = vdwg.mxu0
      %v1068 = vmax.f32 %v1065, 0.0
      %v1069 = vld [vmem:[%s664] sm:$0xff]
      %v1070 = vld [vmem:[%s664 + $0x8] sm:$0xff]
      %v1071 = vld [vmem:[%s664 + $0x10] sm:$0xff]
      %v1072 = vld [vmem:[%s664 + $0x18] sm:$0xff]
      %v1073 = vld [vmem:[%s664 + $0x20] sm:$0xff]
      %v1074 = vld [vmem:[%s664 + $0x28] sm:$0xff]
      %v1075 = vld [vmem:[%s664 + $0x30] sm:$0xff]
      %v1076 = vld [vmem:[%s664 + $0x38] sm:$0xff]
      %v1077 = vpack.c.bf16 %v1068, %v1068
      %v1078 = vpack.c.bf16 %v1070, %v1069
      %v1079 = vpack.c.bf16 %v1072, %v1071
      %v1080 = vpack.c.bf16 %v1074, %v1073
      %v1081 = vpack.c.bf16 %v1076, %v1075
      %v1082 = vld [vmem:[%s667] sm:$0x1]
      %v1084 = vperm.slane %v1082, 0
      %vm1086 = vcmask 523264
      %v1088 = vsel %vm1086, %v1077, 0
      %1090 = vmatpush.bf16.msra.mxu0 0
      %1091 = vmatpush.bf16.msra.mxu0 0
      %1092 = vmatpush.bf16.msra.mxu0 0
      %1093 = vmatpush.bf16.msra.mxu0 0
      %1094 = vmatpush.bf16.msra.mxu0 %v1081
      %1095 = vmatpush.bf16.msra.mxu0 %v1080
      %1096 = vmatpush.bf16.msra.mxu0 %v1079
      %1097 = vmatpush.bf16.msra.mxu0 %v1078
      %1098 = vmatmul.bf16.gmra.mxu0 %v1088
      %v1099 = vpop.f32.mrf.mxu0
      %v1100 = vadd.f32 %v1084, %v1099
      %v1101 = vpop.f32.mrf.mxu0
      %1102 = vdwg.mxu0
      %v1103 = vadd.f32 %v1040, %v1100
      %v1104 = vld [vmem:[%s676] sm:$0x1]
      %v1105 = vld [vmem:[%s679] sm:$0x1]
      %v1106 = vsel %vm705, %v1103, 0.0
      %1107 = vadd.xlane.f32.xlu0 %v1106
      %v1108 = vpop.xlane.xlu0 %1107
      %v1109 = vmul.f32 %v1108, %v1013
      %v1110 = vsub.f32 %v1103, %v1109
      %v1111 = vmul.f32 %v1110, %v1110
      %v1112 = vsel %vm705, %v1111, 0.0
      %1113 = vadd.xlane.f32.xlu0 %v1112
      %v1114 = vpop.xlane.xlu0 %1113
      %v1115 = vmul.f32 %v1114, %v1013
      %v1116 = vadd.f32 %v1115, 1e-06
      %v1117 = vrsqrt.pop %v1116
      %v1118 = vmul.f32 %v1117, %v1116
      %v1119 = vmul.f32 %v1118, %v1117
      %v1120 = vmul.f32 0.5, %v1119
      %v1121 = vsub.f32 1.5, %v1120
      %v1122 = vmul.f32 %v1117, %v1121
      %vm1123 = vweird.f32 %v1116
      %vm1124 = vweird.f32 %v1117
      %vm1125 = vmor %vm1123, %vm1124
      %v1126 = vsel %vm1125, %v1117, %v1122
      %v1127 = vmul.f32 %v1110, %v1126
      %v1129 = vperm.slane %v1104, 0
      %v1131 = vmul.f32 %v1127, %v1129
      %v1133 = vperm.slane %v1105, 0
      %v1135 = vadd.f32 %v1131, %v1133
      %1136 = vst.msk [vmem:[#allocation2] sm:$0xff] %vm705, %v1135
      %1137 = vst.msk [vmem:[%s683] sm:$0xff] %vm705, %v1135
      %p1138 = scmp.lt.s32.totalorder %s29, 1
      %s1139 = scalar_select %p1138, %s29, 1
      %s1140 = smul.addr %s1139, 8
      %s1141 = scalar_lea.vmem %s14, %s1140
      // Predicated region
      $region81: #{transformer_forward.2} parent=75 // pred_check
        %p1142 = pneg %p419
      $region82: #{transformer_forward.2} parent=75 // pred_check_branch
        %1144 = sbr.rel (%p1142) target = $region84
      $region83: #{transformer_forward.2} parent=75 // pred_region
        _
      $region84: #{transformer_forward.2} parent=75 // pred_fallthru
        _
    $region76: #{transformer_forward.2} parent=5 // pred_fallthru
      _
    %p1145 = scmp.le.s32.totalorder 2, %s20
    // Predicated region
    $region85: #{transformer_forward.2} parent=5 // pred_check
      %p1146 = pneg %p1145
    $region86: #{transformer_forward.2} parent=5 // pred_check_branch
      %1148 = sbr.rel (%p1146) target = $region88
    $region87: #{transformer_forward.2} parent=5 // pred_region
      %s1149 = ssub.s32 %s20, 2
      // Predicated region
      $region89: #{transformer_forward.2} parent=87 // pred_check
        %p1150 = pneg %p425
      $region90: #{transformer_forward.2} parent=87 // pred_check_branch
        %1152 = sbr.rel (%p1150) target = $region92
      $region91: #{transformer_forward.2} parent=87 // pred_region
        %p1153 = scmp.lt.s32.totalorder %s31, 1
        %s1154 = scalar_select %p1153, %s31, 1
        %s1155 = smul.addr %s1154, 8
        %s1156 = scalar_lea.vmem %s14, %s1155
      $region92: #{transformer_forward.2} parent=87 // pred_fallthru
        _
    $region88: #{transformer_forward.2} parent=5 // pred_fallthru
      _
  $region6: #{transformer_forward.2} parent=0 // loop_footer
    %s24 = sadd.s32 1, %s20
  $region7: #{transformer_forward.2} parent=0 // loop_footer_branch
    %19 = sbr.rel target = $region3
  $region8: #{transformer_forward.2} parent=0 // loop_exit
    _

</llo_original>
